<compile_context>
chip_gen: v7x
topology: tpu7x:2x2x1
jax: 0.10.0
libtpu: 0.0.40
codegen_flags: <defaults>
</compile_context>

<pallas_src>
import functools
import math

import jax
import jax.numpy as jnp
import numpy as np
from jax import lax
from jax.experimental import pallas as pl
from jax.experimental.pallas import tpu as pltpu


# ----------------------------- in-kernel helpers -----------------------------

def _mha(q_in, kv_in, wq_ref, wk_ref, wv_ref, wo_ref, n_heads):
    """Multi-head attention on 2-D (seq, d_model) tiles.

    Per-head weights: wq/wk/wv: (H, D, E), wo: (H, E, D). The head loop is
    statically unrolled so every op is a plain 2-D matmul on the MXU.
    """
    L, D = q_in.shape
    E = D // n_heads
    scale = 1.0 / math.sqrt(E)
    out = jnp.zeros((L, D), dtype=jnp.float32)
    for h in range(n_heads):
        qh = jnp.dot(q_in, wq_ref[h], preferred_element_type=jnp.float32)   # (L, E)
        kh = jnp.dot(kv_in, wk_ref[h], preferred_element_type=jnp.float32)  # (S, E)
        vh = jnp.dot(kv_in, wv_ref[h], preferred_element_type=jnp.float32)  # (S, E)
        sc = lax.dot_general(qh, kh, (((1,), (1,)), ((), ())),
                             preferred_element_type=jnp.float32) * scale    # (L, S)
        p = jax.nn.softmax(sc, axis=-1)
        oh = jnp.dot(p, vh, preferred_element_type=jnp.float32)             # (L, E)
        out = out + jnp.dot(oh, wo_ref[h], preferred_element_type=jnp.float32)
    return out


def _series_decomp(x, avg_mat, pad):
    """series_decomp: edge-replicate pad along time + moving average.

    The moving average is a banded-matrix matmul on the MXU. x: (L, D).
    Returns (residual, moving_mean).
    """
    L, D = x.shape
    front = jnp.broadcast_to(x[0:1, :], (pad, D))
    end = jnp.broadcast_to(x[L - 1:L, :], (pad, D))
    xp = jnp.concatenate([front, x, end], axis=0)                      # (L + 2*pad, D)
    mean = jnp.dot(avg_mat, xp, preferred_element_type=jnp.float32)    # (L, D)
    return x - mean, mean


# --------------------------------- kernel ------------------------------------

def decoder_layer_kernel(x_ref, cross_ref,
                         wq_s_ref, wk_s_ref, wv_s_ref, wo_s_ref,
                         wq_c_ref, wk_c_ref, wv_c_ref, wo_c_ref,
                         w1_ref, w2_ref, wproj_ref,
                         x_out_ref, trend_out_ref,
                         *, n_heads, ma_kernel):
    x = x_ref[0].astype(jnp.float32)            # (L, D)
    cross = cross_ref[0].astype(jnp.float32)    # (S, D)
    L, D = x.shape
    c_out = trend_out_ref.shape[-1]

    # Banded moving-average matrix: row t averages padded rows [t, t + k).
    pad = (ma_kernel - 1) // 2
    Lp = L + 2 * pad
    row = lax.broadcasted_iota(jnp.int32, (L, Lp), 0)
    col = lax.broadcasted_iota(jnp.int32, (L, Lp), 1)
    avg_mat = jnp.where((col >= row) & (col < row + ma_kernel),
                        jnp.float32(1.0 / ma_kernel), jnp.float32(0.0))

    # NOTE: dropout (p=0.1) is inference-mode identity; attn_mask = None.

    # 1) self attention + residual, decomp1
    x = x + _mha(x, x, wq_s_ref, wk_s_ref, wv_s_ref, wo_s_ref, n_heads)
    x, trend1 = _series_decomp(x, avg_mat, pad)

    # 2) cross attention + residual, decomp2
    x = x + _mha(x, cross, wq_c_ref, wk_c_ref, wv_c_ref, wo_c_ref, n_heads)
    x, trend2 = _series_decomp(x, avg_mat, pad)

    # 3) position-wise FFN (kernel_size=1 convs == matmuls) + decomp3
    y = jnp.maximum(jnp.dot(x, w1_ref[...], preferred_element_type=jnp.float32), 0.0)
    y = jnp.dot(y, w2_ref[...], preferred_element_type=jnp.float32)
    x, trend3 = _series_decomp(x + y, avg_mat, pad)

    # 4) trend projection: Conv1d(d_model -> c_out, kernel=3, circular pad=1)
    rt = trend1 + trend2 + trend3                                    # (L, D)
    tp = jnp.concatenate([rt[L - 1:L, :], rt, rt[0:1, :]], axis=0)   # (L + 2, D)
    proj = jnp.zeros((L, c_out), dtype=jnp.float32)
    for k in range(3):
        proj = proj + jnp.dot(tp[k:k + L, :], wproj_ref[k],
                              preferred_element_type=jnp.float32)

    x_out_ref[0] = x.astype(x_out_ref.dtype)
    trend_out_ref[0] = proj.astype(trend_out_ref.dtype)


# --------------------------------- wrapper -----------------------------------

def decoder_layer(x, cross, params, *, n_heads, ma_kernel):
    """x: [B, L, D], cross: [B, S, D] -> (x_out [B, L, D], trend [B, L, c_out])."""
    B, L, D = x.shape
    S = cross.shape[1]
    (wq_s, wk_s, wv_s, wo_s, wq_c, wk_c, wv_c, wo_c, w1, w2, wproj) = params
    c_out = wproj.shape[-1]

    kernel = functools.partial(decoder_layer_kernel,
                               n_heads=n_heads, ma_kernel=ma_kernel)

    def wspec(shape):
        # Grid-invariant weight: same block for every grid step (resident in VMEM).
        return pl.BlockSpec(shape, lambda b: (0,) * len(shape))

    out_x, out_trend = pl.pallas_call(
        kernel,
        out_shape=(
            jax.ShapeDtypeStruct((B, L, D), jnp.float32),
            jax.ShapeDtypeStruct((B, L, c_out), jnp.float32),
        ),
        grid_spec=pltpu.PrefetchScalarGridSpec(
            num_scalar_prefetch=0,
            grid=(B,),
            in_specs=[
                pl.BlockSpec((1, L, D), lambda b: (b, 0, 0)),
                pl.BlockSpec((1, S, D), lambda b: (b, 0, 0)),
                wspec(wq_s.shape), wspec(wk_s.shape), wspec(wv_s.shape), wspec(wo_s.shape),
                wspec(wq_c.shape), wspec(wk_c.shape), wspec(wv_c.shape), wspec(wo_c.shape),
                wspec(w1.shape), wspec(w2.shape), wspec(wproj.shape),
            ],
            out_specs=(
                pl.BlockSpec((1, L, D), lambda b: (b, 0, 0)),
                pl.BlockSpec((1, L, c_out), lambda b: (b, 0, 0)),
            ),
        ),
        compiler_params=pltpu.CompilerParams(
            dimension_semantics=("parallel",),   # shards batch across v7x TCs
        ),
    )(x, cross, wq_s, wk_s, wv_s, wo_s, wq_c, wk_c, wv_c, wo_c, w1, w2, wproj)
    return out_x, out_trend


# -------------------------------- reference ----------------------------------

def _mha_ref(q_in, kv_in, wq, wk, wv, wo):
    E = wq.shape[-1]
    q = jnp.einsum('bld,hde->bhle', q_in, wq)
    k = jnp.einsum('bsd,hde->bhse', kv_in, wk)
    v = jnp.einsum('bsd,hde->bhse', kv_in, wv)
    sc = jnp.einsum('bhle,bhse->bhls', q, k) / math.sqrt(E)
    p = jax.nn.softmax(sc, axis=-1)
    o = jnp.einsum('bhls,bhse->bhle', p, v)
    return jnp.einsum('bhle,hed->bld', o, wo)


def _series_decomp_ref(x, ma_kernel):
    pad = (ma_kernel - 1) // 2
    L = x.shape[1]
    front = jnp.repeat(x[:, 0:1, :], pad, axis=1)
    end = jnp.repeat(x[:, -1:, :], pad, axis=1)
    xp = jnp.concatenate([front, x, end], axis=1)
    mean = jnp.mean(
        jnp.stack([xp[:, j:j + L, :] for j in range(ma_kernel)], axis=0), axis=0)
    return x - mean, mean


def decoder_layer_ref(x, cross, params, *, n_heads, ma_kernel):
    (wq_s, wk_s, wv_s, wo_s, wq_c, wk_c, wv_c, wo_c, w1, w2, wproj) = params
    L = x.shape[1]
    D = x.shape[2]
    x = x + _mha_ref(x, x, wq_s, wk_s, wv_s, wo_s)
    x, t1 = _series_decomp_ref(x, ma_kernel)
    x = x + _mha_ref(x, cross, wq_c, wk_c, wv_c, wo_c)
    x, t2 = _series_decomp_ref(x, ma_kernel)
    y = jnp.maximum(jnp.einsum('bld,df->blf', x, w1), 0.0)
    y = jnp.einsum('blf,fd->bld', y, w2)
    x, t3 = _series_decomp_ref(x + y, ma_kernel)
    rt = t1 + t2 + t3
    tp = jnp.concatenate([rt[:, L - 1:L, :], rt, rt[:, 0:1, :]], axis=1)
    trend = sum(jnp.einsum('bld,dc->blc', tp[:, k:k + L, :], wproj[k])
                for k in range(3))
    return x, trend


# ----------------------------------- main ------------------------------------

if __name__ == "__main__":
    B, L, S = 2, 8, 16
    d_model, n_heads, d_ff, c_out = 32, 4, 128, 16
    ma_kernel = 25
    E = d_model // n_heads

    key = jax.random.PRNGKey(0)
    keys = jax.random.split(key, 16)

    def w(k, shape, s=0.1):
        return (s * jax.random.normal(k, shape)).astype(jnp.float32)

    x = w(keys[0], (B, L, d_model), 1.0)
    cross = w(keys[1], (B, S, d_model), 1.0)

    params = (
        w(keys[2], (n_heads, d_model, E)),    # wq_s
        w(keys[3], (n_heads, d_model, E)),    # wk_s
        w(keys[4], (n_heads, d_model, E)),    # wv_s
        w(keys[5], (n_heads, E, d_model)),    # wo_s
        w(keys[6], (n_heads, d_model, E)),    # wq_c
        w(keys[7], (n_heads, d_model, E)),    # wk_c
        w(keys[8], (n_heads, d_model, E)),    # wv_c
        w(keys[9], (n_heads, E, d_model)),    # wo_c
        w(keys[10], (d_model, d_ff)),         # conv1 (k=1, no bias)
        w(keys[11], (d_ff, d_model)),         # conv2 (k=1, no bias)
        w(keys[12], (3, d_model, c_out)),     # projection conv (k=3, circular)
    )

    out_x, out_trend = decoder_layer(x, cross, params,
                                     n_heads=n_heads, ma_kernel=ma_kernel)
    out_x = jax.block_until_ready(out_x)
    out_trend = jax.block_until_ready(out_trend)

    ref_x, ref_trend = decoder_layer_ref(x, cross, params,
                                         n_heads=n_heads, ma_kernel=ma_kernel)

    assert out_x.shape == (B, L, d_model)
    assert out_trend.shape == (B, L, c_out)
    np.testing.assert_allclose(np.asarray(out_x), np.asarray(ref_x),
                               rtol=1e-4, atol=1e-4)
    np.testing.assert_allclose(np.asarray(out_trend), np.asarray(ref_trend),
                               rtol=1e-4, atol=1e-4)

    print("KERNEL_OK")
</pallas_src>

<mosaic_0001>
module attributes {stable_mosaic.version = 11 : i64} {
  func.func @decoder_layer_kernel(%arg0: i32, %arg1: memref<1x8x32xf32, #tpu.memory_space<vmem>>, %arg2: memref<1x16x32xf32, #tpu.memory_space<vmem>>, %arg3: memref<4x32x8xf32, #tpu.memory_space<vmem>>, %arg4: memref<4x32x8xf32, #tpu.memory_space<vmem>>, %arg5: memref<4x32x8xf32, #tpu.memory_space<vmem>>, %arg6: memref<4x8x32xf32, #tpu.memory_space<vmem>>, %arg7: memref<4x32x8xf32, #tpu.memory_space<vmem>>, %arg8: memref<4x32x8xf32, #tpu.memory_space<vmem>>, %arg9: memref<4x32x8xf32, #tpu.memory_space<vmem>>, %arg10: memref<4x8x32xf32, #tpu.memory_space<vmem>>, %arg11: memref<32x128xf32, #tpu.memory_space<vmem>>, %arg12: memref<128x32xf32, #tpu.memory_space<vmem>>, %arg13: memref<3x32x16xf32, #tpu.memory_space<vmem>>, %arg14: memref<1x8x32xf32, #tpu.memory_space<vmem>>, %arg15: memref<1x8x16xf32, #tpu.memory_space<vmem>>) attributes {dimension_semantics = [#tpu.dimension_semantics<parallel>], iteration_bounds = array<i64: 2>, scalar_prefetch = 0 : i64, scratch_operands = 0 : i64, tpu.core_type = #tpu.core_type<tc>, window_params = [{transform_indices = @transform_0, window_bounds = array<i64: 1, 8, 32>}, {transform_indices = @transform_1, window_bounds = array<i64: 1, 16, 32>}, {pipeline_mode = #tpu.pipeline_mode<synchronous>, transform_indices = @transform_2, window_bounds = array<i64: 4, 32, 8>}, {pipeline_mode = #tpu.pipeline_mode<synchronous>, transform_indices = @transform_3, window_bounds = array<i64: 4, 32, 8>}, {pipeline_mode = #tpu.pipeline_mode<synchronous>, transform_indices = @transform_4, window_bounds = array<i64: 4, 32, 8>}, {pipeline_mode = #tpu.pipeline_mode<synchronous>, transform_indices = @transform_5, window_bounds = array<i64: 4, 8, 32>}, {pipeline_mode = #tpu.pipeline_mode<synchronous>, transform_indices = @transform_6, window_bounds = array<i64: 4, 32, 8>}, {pipeline_mode = #tpu.pipeline_mode<synchronous>, transform_indices = @transform_7, window_bounds = array<i64: 4, 32, 8>}, {pipeline_mode = #tpu.pipeline_mode<synchronous>, transform_indices = @transform_8, window_bounds = array<i64: 4, 32, 8>}, {pipeline_mode = #tpu.pipeline_mode<synchronous>, transform_indices = @transform_9, window_bounds = array<i64: 4, 8, 32>}, {pipeline_mode = #tpu.pipeline_mode<synchronous>, transform_indices = @transform_10, window_bounds = array<i64: 32, 128>}, {pipeline_mode = #tpu.pipeline_mode<synchronous>, transform_indices = @transform_11, window_bounds = array<i64: 128, 32>}, {pipeline_mode = #tpu.pipeline_mode<synchronous>, transform_indices = @transform_12, window_bounds = array<i64: 3, 32, 16>}, {transform_indices = @transform_13, window_bounds = array<i64: 1, 8, 32>}, {transform_indices = @transform_14, window_bounds = array<i64: 1, 8, 16>}]} {
    %c0 = arith.constant 0 : index
    %c0_0 = arith.constant 0 : index
    %c0_1 = arith.constant 0 : index
    %0 = vector.load %arg1[%c0, %c0_0, %c0_1] : memref<1x8x32xf32, #tpu.memory_space<vmem>>, vector<1x8x32xf32>
    %1 = vector.shape_cast %0 : vector<1x8x32xf32> to vector<8x32xf32>
    %c0_2 = arith.constant 0 : index
    %c0_3 = arith.constant 0 : index
    %c0_4 = arith.constant 0 : index
    %2 = vector.load %arg2[%c0_2, %c0_3, %c0_4] : memref<1x16x32xf32, #tpu.memory_space<vmem>>, vector<1x16x32xf32>
    %3 = vector.shape_cast %2 : vector<1x16x32xf32> to vector<16x32xf32>
    %4 = tpu.iota {dimensions = array<i32: 0>} : vector<8x32xi32>
    %5 = tpu.iota {dimensions = array<i32: 1>} : vector<8x32xi32>
    %6 = arith.cmpi sge, %5, %4 : vector<8x32xi32>
    %c25_i32 = arith.constant 25 : i32
    %7 = vector.broadcast %c25_i32 : i32 to vector<8x32xi32>
    %8 = arith.addi %4, %7 : vector<8x32xi32>
    %9 = arith.cmpi slt, %5, %8 : vector<8x32xi32>
    %10 = arith.andi %6, %9 : vector<8x32xi1>
    %cst = arith.constant 4.000000e-02 : f32
    %cst_5 = arith.constant 0.000000e+00 : f32
    %11 = vector.broadcast %cst : f32 to vector<8x32xf32>
    %12 = vector.broadcast %cst_5 : f32 to vector<8x32xf32>
    %13 = arith.select %10, %11, %12 : vector<8x32xi1>, vector<8x32xf32>
    %cst_6 = arith.constant 0.000000e+00 : f32
    %14 = vector.broadcast %cst_6 : f32 to vector<8x32xf32>
    %c0_7 = arith.constant 0 : index
    %c0_8 = arith.constant 0 : index
    %c0_9 = arith.constant 0 : index
    %15 = vector.load %arg3[%c0_7, %c0_8, %c0_9] : memref<4x32x8xf32, #tpu.memory_space<vmem>>, vector<1x32x8xf32>
    %16 = vector.shape_cast %15 : vector<1x32x8xf32> to vector<32x8xf32>
    %cst_10 = arith.constant dense<0.000000e+00> : vector<8x8xf32>
    %17 = tpu.matmul %1, %16, %cst_10 {dimension_numbers = #tpu.dot_dimension_numbers<[1], [0], [0], [1], [0, 0, 1, 1], [], []>} : vector<8x32xf32>, vector<32x8xf32>, vector<8x8xf32> -> vector<8x8xf32>
    %c0_11 = arith.constant 0 : index
    %c0_12 = arith.constant 0 : index
    %c0_13 = arith.constant 0 : index
    %18 = vector.load %arg4[%c0_11, %c0_12, %c0_13] : memref<4x32x8xf32, #tpu.memory_space<vmem>>, vector<1x32x8xf32>
    %19 = vector.shape_cast %18 : vector<1x32x8xf32> to vector<32x8xf32>
    %cst_14 = arith.constant dense<0.000000e+00> : vector<8x8xf32>
    %20 = tpu.matmul %1, %19, %cst_14 {dimension_numbers = #tpu.dot_dimension_numbers<[1], [0], [0], [1], [0, 0, 1, 1], [], []>} : vector<8x32xf32>, vector<32x8xf32>, vector<8x8xf32> -> vector<8x8xf32>
    %c0_15 = arith.constant 0 : index
    %c0_16 = arith.constant 0 : index
    %c0_17 = arith.constant 0 : index
    %21 = vector.load %arg5[%c0_15, %c0_16, %c0_17] : memref<4x32x8xf32, #tpu.memory_space<vmem>>, vector<1x32x8xf32>
    %22 = vector.shape_cast %21 : vector<1x32x8xf32> to vector<32x8xf32>
    %cst_18 = arith.constant dense<0.000000e+00> : vector<8x8xf32>
    %23 = tpu.matmul %1, %22, %cst_18 {dimension_numbers = #tpu.dot_dimension_numbers<[1], [0], [0], [1], [0, 0, 1, 1], [], []>} : vector<8x32xf32>, vector<32x8xf32>, vector<8x8xf32> -> vector<8x8xf32>
    %cst_19 = arith.constant dense<0.000000e+00> : vector<8x8xf32>
    %24 = tpu.matmul %17, %20, %cst_19 {dimension_numbers = #tpu.dot_dimension_numbers<[1], [1], [0], [0], [0, 0, 1, 0], [], []>} : vector<8x8xf32>, vector<8x8xf32>, vector<8x8xf32> -> vector<8x8xf32>
    %cst_20 = arith.constant 0.353553385 : f32
    %25 = vector.broadcast %cst_20 : f32 to vector<8x8xf32>
    %26 = arith.mulf %24, %25 : vector<8x8xf32>
    %cst_21 = arith.constant dense<0xFF800000> : vector<8xf32>
    %27 = vector.multi_reduction <maximumf>, %26, %cst_21 [1] : vector<8x8xf32> to vector<8xf32>
    %cst_22 = arith.constant 0xFF800000 : f32
    %28 = vector.broadcast %cst_22 : f32 to vector<8xf32>
    %29 = arith.maximumf %28, %27 : vector<8xf32>
    %30 = vector.shape_cast %29 : vector<8xf32> to vector<8x1xf32>
    %31 = vector.broadcast %30 : vector<8x1xf32> to vector<8x8xf32>
    %32 = arith.subf %26, %31 : vector<8x8xf32>
    %33 = math.exp %32 : vector<8x8xf32>
    %cst_23 = arith.constant dense<0.000000e+00> : vector<8xf32>
    %34 = vector.multi_reduction <add>, %33, %cst_23 [1] : vector<8x8xf32> to vector<8xf32>
    %35 = vector.shape_cast %34 : vector<8xf32> to vector<8x1xf32>
    %36 = vector.broadcast %35 : vector<8x1xf32> to vector<8x8xf32>
    %37 = arith.divf %33, %36 : vector<8x8xf32>
    %cst_24 = arith.constant dense<0.000000e+00> : vector<8x8xf32>
    %38 = tpu.matmul %37, %23, %cst_24 {dimension_numbers = #tpu.dot_dimension_numbers<[1], [0], [0], [1], [0, 0, 1, 1], [], []>} : vector<8x8xf32>, vector<8x8xf32>, vector<8x8xf32> -> vector<8x8xf32>
    %c0_25 = arith.constant 0 : index
    %c0_26 = arith.constant 0 : index
    %c0_27 = arith.constant 0 : index
    %39 = vector.load %arg6[%c0_25, %c0_26, %c0_27] : memref<4x8x32xf32, #tpu.memory_space<vmem>>, vector<1x8x32xf32>
    %40 = vector.shape_cast %39 : vector<1x8x32xf32> to vector<8x32xf32>
    %cst_28 = arith.constant dense<0.000000e+00> : vector<8x32xf32>
    %41 = tpu.matmul %38, %40, %cst_28 {dimension_numbers = #tpu.dot_dimension_numbers<[1], [0], [0], [1], [0, 0, 1, 1], [], []>} : vector<8x8xf32>, vector<8x32xf32>, vector<8x32xf32> -> vector<8x32xf32>
    %42 = arith.addf %14, %41 : vector<8x32xf32>
    %c1 = arith.constant 1 : index
    %c0_29 = arith.constant 0 : index
    %c0_30 = arith.constant 0 : index
    %43 = vector.load %arg3[%c1, %c0_29, %c0_30] : memref<4x32x8xf32, #tpu.memory_space<vmem>>, vector<1x32x8xf32>
    %44 = vector.shape_cast %43 : vector<1x32x8xf32> to vector<32x8xf32>
    %cst_31 = arith.constant dense<0.000000e+00> : vector<8x8xf32>
    %45 = tpu.matmul %1, %44, %cst_31 {dimension_numbers = #tpu.dot_dimension_numbers<[1], [0], [0], [1], [0, 0, 1, 1], [], []>} : vector<8x32xf32>, vector<32x8xf32>, vector<8x8xf32> -> vector<8x8xf32>
    %c1_32 = arith.constant 1 : index
    %c0_33 = arith.constant 0 : index
    %c0_34 = arith.constant 0 : index
    %46 = vector.load %arg4[%c1_32, %c0_33, %c0_34] : memref<4x32x8xf32, #tpu.memory_space<vmem>>, vector<1x32x8xf32>
    %47 = vector.shape_cast %46 : vector<1x32x8xf32> to vector<32x8xf32>
    %cst_35 = arith.constant dense<0.000000e+00> : vector<8x8xf32>
    %48 = tpu.matmul %1, %47, %cst_35 {dimension_numbers = #tpu.dot_dimension_numbers<[1], [0], [0], [1], [0, 0, 1, 1], [], []>} : vector<8x32xf32>, vector<32x8xf32>, vector<8x8xf32> -> vector<8x8xf32>
    %c1_36 = arith.constant 1 : index
    %c0_37 = arith.constant 0 : index
    %c0_38 = arith.constant 0 : index
    %49 = vector.load %arg5[%c1_36, %c0_37, %c0_38] : memref<4x32x8xf32, #tpu.memory_space<vmem>>, vector<1x32x8xf32>
    %50 = vector.shape_cast %49 : vector<1x32x8xf32> to vector<32x8xf32>
    %cst_39 = arith.constant dense<0.000000e+00> : vector<8x8xf32>
    %51 = tpu.matmul %1, %50, %cst_39 {dimension_numbers = #tpu.dot_dimension_numbers<[1], [0], [0], [1], [0, 0, 1, 1], [], []>} : vector<8x32xf32>, vector<32x8xf32>, vector<8x8xf32> -> vector<8x8xf32>
    %cst_40 = arith.constant dense<0.000000e+00> : vector<8x8xf32>
    %52 = tpu.matmul %45, %48, %cst_40 {dimension_numbers = #tpu.dot_dimension_numbers<[1], [1], [0], [0], [0, 0, 1, 0], [], []>} : vector<8x8xf32>, vector<8x8xf32>, vector<8x8xf32> -> vector<8x8xf32>
    %cst_41 = arith.constant 0.353553385 : f32
    %53 = vector.broadcast %cst_41 : f32 to vector<8x8xf32>
    %54 = arith.mulf %52, %53 : vector<8x8xf32>
    %cst_42 = arith.constant dense<0xFF800000> : vector<8xf32>
    %55 = vector.multi_reduction <maximumf>, %54, %cst_42 [1] : vector<8x8xf32> to vector<8xf32>
    %cst_43 = arith.constant 0xFF800000 : f32
    %56 = vector.broadcast %cst_43 : f32 to vector<8xf32>
    %57 = arith.maximumf %56, %55 : vector<8xf32>
    %58 = vector.shape_cast %57 : vector<8xf32> to vector<8x1xf32>
    %59 = vector.broadcast %58 : vector<8x1xf32> to vector<8x8xf32>
    %60 = arith.subf %54, %59 : vector<8x8xf32>
    %61 = math.exp %60 : vector<8x8xf32>
    %cst_44 = arith.constant dense<0.000000e+00> : vector<8xf32>
    %62 = vector.multi_reduction <add>, %61, %cst_44 [1] : vector<8x8xf32> to vector<8xf32>
    %63 = vector.shape_cast %62 : vector<8xf32> to vector<8x1xf32>
    %64 = vector.broadcast %63 : vector<8x1xf32> to vector<8x8xf32>
    %65 = arith.divf %61, %64 : vector<8x8xf32>
    %cst_45 = arith.constant dense<0.000000e+00> : vector<8x8xf32>
    %66 = tpu.matmul %65, %51, %cst_45 {dimension_numbers = #tpu.dot_dimension_numbers<[1], [0], [0], [1], [0, 0, 1, 1], [], []>} : vector<8x8xf32>, vector<8x8xf32>, vector<8x8xf32> -> vector<8x8xf32>
    %c1_46 = arith.constant 1 : index
    %c0_47 = arith.constant 0 : index
    %c0_48 = arith.constant 0 : index
    %67 = vector.load %arg6[%c1_46, %c0_47, %c0_48] : memref<4x8x32xf32, #tpu.memory_space<vmem>>, vector<1x8x32xf32>
    %68 = vector.shape_cast %67 : vector<1x8x32xf32> to vector<8x32xf32>
    %cst_49 = arith.constant dense<0.000000e+00> : vector<8x32xf32>
    %69 = tpu.matmul %66, %68, %cst_49 {dimension_numbers = #tpu.dot_dimension_numbers<[1], [0], [0], [1], [0, 0, 1, 1], [], []>} : vector<8x8xf32>, vector<8x32xf32>, vector<8x32xf32> -> vector<8x32xf32>
    %70 = arith.addf %42, %69 : vector<8x32xf32>
    %c2 = arith.constant 2 : index
    %c0_50 = arith.constant 0 : index
    %c0_51 = arith.constant 0 : index
    %71 = vector.load %arg3[%c2, %c0_50, %c0_51] : memref<4x32x8xf32, #tpu.memory_space<vmem>>, vector<1x32x8xf32>
    %72 = vector.shape_cast %71 : vector<1x32x8xf32> to vector<32x8xf32>
    %cst_52 = arith.constant dense<0.000000e+00> : vector<8x8xf32>
    %73 = tpu.matmul %1, %72, %cst_52 {dimension_numbers = #tpu.dot_dimension_numbers<[1], [0], [0], [1], [0, 0, 1, 1], [], []>} : vector<8x32xf32>, vector<32x8xf32>, vector<8x8xf32> -> vector<8x8xf32>
    %c2_53 = arith.constant 2 : index
    %c0_54 = arith.constant 0 : index
    %c0_55 = arith.constant 0 : index
    %74 = vector.load %arg4[%c2_53, %c0_54, %c0_55] : memref<4x32x8xf32, #tpu.memory_space<vmem>>, vector<1x32x8xf32>
    %75 = vector.shape_cast %74 : vector<1x32x8xf32> to vector<32x8xf32>
    %cst_56 = arith.constant dense<0.000000e+00> : vector<8x8xf32>
    %76 = tpu.matmul %1, %75, %cst_56 {dimension_numbers = #tpu.dot_dimension_numbers<[1], [0], [0], [1], [0, 0, 1, 1], [], []>} : vector<8x32xf32>, vector<32x8xf32>, vector<8x8xf32> -> vector<8x8xf32>
    %c2_57 = arith.constant 2 : index
    %c0_58 = arith.constant 0 : index
    %c0_59 = arith.constant 0 : index
    %77 = vector.load %arg5[%c2_57, %c0_58, %c0_59] : memref<4x32x8xf32, #tpu.memory_space<vmem>>, vector<1x32x8xf32>
    %78 = vector.shape_cast %77 : vector<1x32x8xf32> to vector<32x8xf32>
    %cst_60 = arith.constant dense<0.000000e+00> : vector<8x8xf32>
    %79 = tpu.matmul %1, %78, %cst_60 {dimension_numbers = #tpu.dot_dimension_numbers<[1], [0], [0], [1], [0, 0, 1, 1], [], []>} : vector<8x32xf32>, vector<32x8xf32>, vector<8x8xf32> -> vector<8x8xf32>
    %cst_61 = arith.constant dense<0.000000e+00> : vector<8x8xf32>
    %80 = tpu.matmul %73, %76, %cst_61 {dimension_numbers = #tpu.dot_dimension_numbers<[1], [1], [0], [0], [0, 0, 1, 0], [], []>} : vector<8x8xf32>, vector<8x8xf32>, vector<8x8xf32> -> vector<8x8xf32>
    %cst_62 = arith.constant 0.353553385 : f32
    %81 = vector.broadcast %cst_62 : f32 to vector<8x8xf32>
    %82 = arith.mulf %80, %81 : vector<8x8xf32>
    %cst_63 = arith.constant dense<0xFF800000> : vector<8xf32>
    %83 = vector.multi_reduction <maximumf>, %82, %cst_63 [1] : vector<8x8xf32> to vector<8xf32>
    %cst_64 = arith.constant 0xFF800000 : f32
    %84 = vector.broadcast %cst_64 : f32 to vector<8xf32>
    %85 = arith.maximumf %84, %83 : vector<8xf32>
    %86 = vector.shape_cast %85 : vector<8xf32> to vector<8x1xf32>
    %87 = vector.broadcast %86 : vector<8x1xf32> to vector<8x8xf32>
    %88 = arith.subf %82, %87 : vector<8x8xf32>
    %89 = math.exp %88 : vector<8x8xf32>
    %cst_65 = arith.constant dense<0.000000e+00> : vector<8xf32>
    %90 = vector.multi_reduction <add>, %89, %cst_65 [1] : vector<8x8xf32> to vector<8xf32>
    %91 = vector.shape_cast %90 : vector<8xf32> to vector<8x1xf32>
    %92 = vector.broadcast %91 : vector<8x1xf32> to vector<8x8xf32>
    %93 = arith.divf %89, %92 : vector<8x8xf32>
    %cst_66 = arith.constant dense<0.000000e+00> : vector<8x8xf32>
    %94 = tpu.matmul %93, %79, %cst_66 {dimension_numbers = #tpu.dot_dimension_numbers<[1], [0], [0], [1], [0, 0, 1, 1], [], []>} : vector<8x8xf32>, vector<8x8xf32>, vector<8x8xf32> -> vector<8x8xf32>
    %c2_67 = arith.constant 2 : index
    %c0_68 = arith.constant 0 : index
    %c0_69 = arith.constant 0 : index
    %95 = vector.load %arg6[%c2_67, %c0_68, %c0_69] : memref<4x8x32xf32, #tpu.memory_space<vmem>>, vector<1x8x32xf32>
    %96 = vector.shape_cast %95 : vector<1x8x32xf32> to vector<8x32xf32>
    %cst_70 = arith.constant dense<0.000000e+00> : vector<8x32xf32>
    %97 = tpu.matmul %94, %96, %cst_70 {dimension_numbers = #tpu.dot_dimension_numbers<[1], [0], [0], [1], [0, 0, 1, 1], [], []>} : vector<8x8xf32>, vector<8x32xf32>, vector<8x32xf32> -> vector<8x32xf32>
    %98 = arith.addf %70, %97 : vector<8x32xf32>
    %c3 = arith.constant 3 : index
    %c0_71 = arith.constant 0 : index
    %c0_72 = arith.constant 0 : index
    %99 = vector.load %arg3[%c3, %c0_71, %c0_72] : memref<4x32x8xf32, #tpu.memory_space<vmem>>, vector<1x32x8xf32>
    %100 = vector.shape_cast %99 : vector<1x32x8xf32> to vector<32x8xf32>
    %cst_73 = arith.constant dense<0.000000e+00> : vector<8x8xf32>
    %101 = tpu.matmul %1, %100, %cst_73 {dimension_numbers = #tpu.dot_dimension_numbers<[1], [0], [0], [1], [0, 0, 1, 1], [], []>} : vector<8x32xf32>, vector<32x8xf32>, vector<8x8xf32> -> vector<8x8xf32>
    %c3_74 = arith.constant 3 : index
    %c0_75 = arith.constant 0 : index
    %c0_76 = arith.constant 0 : index
    %102 = vector.load %arg4[%c3_74, %c0_75, %c0_76] : memref<4x32x8xf32, #tpu.memory_space<vmem>>, vector<1x32x8xf32>
    %103 = vector.shape_cast %102 : vector<1x32x8xf32> to vector<32x8xf32>
    %cst_77 = arith.constant dense<0.000000e+00> : vector<8x8xf32>
    %104 = tpu.matmul %1, %103, %cst_77 {dimension_numbers = #tpu.dot_dimension_numbers<[1], [0], [0], [1], [0, 0, 1, 1], [], []>} : vector<8x32xf32>, vector<32x8xf32>, vector<8x8xf32> -> vector<8x8xf32>
    %c3_78 = arith.constant 3 : index
    %c0_79 = arith.constant 0 : index
    %c0_80 = arith.constant 0 : index
    %105 = vector.load %arg5[%c3_78, %c0_79, %c0_80] : memref<4x32x8xf32, #tpu.memory_space<vmem>>, vector<1x32x8xf32>
    %106 = vector.shape_cast %105 : vector<1x32x8xf32> to vector<32x8xf32>
    %cst_81 = arith.constant dense<0.000000e+00> : vector<8x8xf32>
    %107 = tpu.matmul %1, %106, %cst_81 {dimension_numbers = #tpu.dot_dimension_numbers<[1], [0], [0], [1], [0, 0, 1, 1], [], []>} : vector<8x32xf32>, vector<32x8xf32>, vector<8x8xf32> -> vector<8x8xf32>
    %cst_82 = arith.constant dense<0.000000e+00> : vector<8x8xf32>
    %108 = tpu.matmul %101, %104, %cst_82 {dimension_numbers = #tpu.dot_dimension_numbers<[1], [1], [0], [0], [0, 0, 1, 0], [], []>} : vector<8x8xf32>, vector<8x8xf32>, vector<8x8xf32> -> vector<8x8xf32>
    %cst_83 = arith.constant 0.353553385 : f32
    %109 = vector.broadcast %cst_83 : f32 to vector<8x8xf32>
    %110 = arith.mulf %108, %109 : vector<8x8xf32>
    %cst_84 = arith.constant dense<0xFF800000> : vector<8xf32>
    %111 = vector.multi_reduction <maximumf>, %110, %cst_84 [1] : vector<8x8xf32> to vector<8xf32>
    %cst_85 = arith.constant 0xFF800000 : f32
    %112 = vector.broadcast %cst_85 : f32 to vector<8xf32>
    %113 = arith.maximumf %112, %111 : vector<8xf32>
    %114 = vector.shape_cast %113 : vector<8xf32> to vector<8x1xf32>
    %115 = vector.broadcast %114 : vector<8x1xf32> to vector<8x8xf32>
    %116 = arith.subf %110, %115 : vector<8x8xf32>
    %117 = math.exp %116 : vector<8x8xf32>
    %cst_86 = arith.constant dense<0.000000e+00> : vector<8xf32>
    %118 = vector.multi_reduction <add>, %117, %cst_86 [1] : vector<8x8xf32> to vector<8xf32>
    %119 = vector.shape_cast %118 : vector<8xf32> to vector<8x1xf32>
    %120 = vector.broadcast %119 : vector<8x1xf32> to vector<8x8xf32>
    %121 = arith.divf %117, %120 : vector<8x8xf32>
    %cst_87 = arith.constant dense<0.000000e+00> : vector<8x8xf32>
    %122 = tpu.matmul %121, %107, %cst_87 {dimension_numbers = #tpu.dot_dimension_numbers<[1], [0], [0], [1], [0, 0, 1, 1], [], []>} : vector<8x8xf32>, vector<8x8xf32>, vector<8x8xf32> -> vector<8x8xf32>
    %c3_88 = arith.constant 3 : index
    %c0_89 = arith.constant 0 : index
    %c0_90 = arith.constant 0 : index
    %123 = vector.load %arg6[%c3_88, %c0_89, %c0_90] : memref<4x8x32xf32, #tpu.memory_space<vmem>>, vector<1x8x32xf32>
    %124 = vector.shape_cast %123 : vector<1x8x32xf32> to vector<8x32xf32>
    %cst_91 = arith.constant dense<0.000000e+00> : vector<8x32xf32>
    %125 = tpu.matmul %122, %124, %cst_91 {dimension_numbers = #tpu.dot_dimension_numbers<[1], [0], [0], [1], [0, 0, 1, 1], [], []>} : vector<8x8xf32>, vector<8x32xf32>, vector<8x32xf32> -> vector<8x32xf32>
    %126 = arith.addf %98, %125 : vector<8x32xf32>
    %127 = arith.addf %1, %126 : vector<8x32xf32>
    %128 = vector.extract_strided_slice %127 {offsets = [0, 0], sizes = [1, 32], strides = [1, 1]} : vector<8x32xf32> to vector<1x32xf32>
    %129 = vector.shape_cast %128 : vector<1x32xf32> to vector<1x32xf32>
    %130 = vector.broadcast %129 : vector<1x32xf32> to vector<12x32xf32>
    %131 = vector.extract_strided_slice %127 {offsets = [7, 0], sizes = [1, 32], strides = [1, 1]} : vector<8x32xf32> to vector<1x32xf32>
    %132 = vector.shape_cast %131 : vector<1x32xf32> to vector<1x32xf32>
    %133 = vector.broadcast %132 : vector<1x32xf32> to vector<12x32xf32>
    %134 = tpu.concatenate %130, %127, %133 in 0 : vector<12x32xf32>, vector<8x32xf32>, vector<12x32xf32> -> vector<32x32xf32>
    %cst_92 = arith.constant dense<0.000000e+00> : vector<8x32xf32>
    %135 = tpu.matmul %13, %134, %cst_92 {dimension_numbers = #tpu.dot_dimension_numbers<[1], [0], [0], [1], [0, 0, 1, 1], [], []>} : vector<8x32xf32>, vector<32x32xf32>, vector<8x32xf32> -> vector<8x32xf32>
    %136 = arith.subf %127, %135 : vector<8x32xf32>
    %cst_93 = arith.constant 0.000000e+00 : f32
    %137 = vector.broadcast %cst_93 : f32 to vector<8x32xf32>
    %c0_94 = arith.constant 0 : index
    %c0_95 = arith.constant 0 : index
    %c0_96 = arith.constant 0 : index
    %138 = vector.load %arg7[%c0_94, %c0_95, %c0_96] : memref<4x32x8xf32, #tpu.memory_space<vmem>>, vector<1x32x8xf32>
    %139 = vector.shape_cast %138 : vector<1x32x8xf32> to vector<32x8xf32>
    %cst_97 = arith.constant dense<0.000000e+00> : vector<8x8xf32>
    %140 = tpu.matmul %136, %139, %cst_97 {dimension_numbers = #tpu.dot_dimension_numbers<[1], [0], [0], [1], [0, 0, 1, 1], [], []>} : vector<8x32xf32>, vector<32x8xf32>, vector<8x8xf32> -> vector<8x8xf32>
    %c0_98 = arith.constant 0 : index
    %c0_99 = arith.constant 0 : index
    %c0_100 = arith.constant 0 : index
    %141 = vector.load %arg8[%c0_98, %c0_99, %c0_100] : memref<4x32x8xf32, #tpu.memory_space<vmem>>, vector<1x32x8xf32>
    %142 = vector.shape_cast %141 : vector<1x32x8xf32> to vector<32x8xf32>
    %cst_101 = arith.constant dense<0.000000e+00> : vector<16x8xf32>
    %143 = tpu.matmul %3, %142, %cst_101 {dimension_numbers = #tpu.dot_dimension_numbers<[1], [0], [0], [1], [0, 0, 1, 1], [], []>} : vector<16x32xf32>, vector<32x8xf32>, vector<16x8xf32> -> vector<16x8xf32>
    %c0_102 = arith.constant 0 : index
    %c0_103 = arith.constant 0 : index
    %c0_104 = arith.constant 0 : index
    %144 = vector.load %arg9[%c0_102, %c0_103, %c0_104] : memref<4x32x8xf32, #tpu.memory_space<vmem>>, vector<1x32x8xf32>
    %145 = vector.shape_cast %144 : vector<1x32x8xf32> to vector<32x8xf32>
    %cst_105 = arith.constant dense<0.000000e+00> : vector<16x8xf32>
    %146 = tpu.matmul %3, %145, %cst_105 {dimension_numbers = #tpu.dot_dimension_numbers<[1], [0], [0], [1], [0, 0, 1, 1], [], []>} : vector<16x32xf32>, vector<32x8xf32>, vector<16x8xf32> -> vector<16x8xf32>
    %cst_106 = arith.constant dense<0.000000e+00> : vector<8x16xf32>
    %147 = tpu.matmul %140, %143, %cst_106 {dimension_numbers = #tpu.dot_dimension_numbers<[1], [1], [0], [0], [0, 0, 1, 0], [], []>} : vector<8x8xf32>, vector<16x8xf32>, vector<8x16xf32> -> vector<8x16xf32>
    %cst_107 = arith.constant 0.353553385 : f32
    %148 = vector.broadcast %cst_107 : f32 to vector<8x16xf32>
    %149 = arith.mulf %147, %148 : vector<8x16xf32>
    %cst_108 = arith.constant dense<0xFF800000> : vector<8xf32>
    %150 = vector.multi_reduction <maximumf>, %149, %cst_108 [1] : vector<8x16xf32> to vector<8xf32>
    %cst_109 = arith.constant 0xFF800000 : f32
    %151 = vector.broadcast %cst_109 : f32 to vector<8xf32>
    %152 = arith.maximumf %151, %150 : vector<8xf32>
    %153 = vector.shape_cast %152 : vector<8xf32> to vector<8x1xf32>
    %154 = vector.broadcast %153 : vector<8x1xf32> to vector<8x16xf32>
    %155 = arith.subf %149, %154 : vector<8x16xf32>
    %156 = math.exp %155 : vector<8x16xf32>
    %cst_110 = arith.constant dense<0.000000e+00> : vector<8xf32>
    %157 = vector.multi_reduction <add>, %156, %cst_110 [1] : vector<8x16xf32> to vector<8xf32>
    %158 = vector.shape_cast %157 : vector<8xf32> to vector<8x1xf32>
    %159 = vector.broadcast %158 : vector<8x1xf32> to vector<8x16xf32>
    %160 = arith.divf %156, %159 : vector<8x16xf32>
    %cst_111 = arith.constant dense<0.000000e+00> : vector<8x8xf32>
    %161 = tpu.matmul %160, %146, %cst_111 {dimension_numbers = #tpu.dot_dimension_numbers<[1], [0], [0], [1], [0, 0, 1, 1], [], []>} : vector<8x16xf32>, vector<16x8xf32>, vector<8x8xf32> -> vector<8x8xf32>
    %c0_112 = arith.constant 0 : index
    %c0_113 = arith.constant 0 : index
    %c0_114 = arith.constant 0 : index
    %162 = vector.load %arg10[%c0_112, %c0_113, %c0_114] : memref<4x8x32xf32, #tpu.memory_space<vmem>>, vector<1x8x32xf32>
    %163 = vector.shape_cast %162 : vector<1x8x32xf32> to vector<8x32xf32>
    %cst_115 = arith.constant dense<0.000000e+00> : vector<8x32xf32>
    %164 = tpu.matmul %161, %163, %cst_115 {dimension_numbers = #tpu.dot_dimension_numbers<[1], [0], [0], [1], [0, 0, 1, 1], [], []>} : vector<8x8xf32>, vector<8x32xf32>, vector<8x32xf32> -> vector<8x32xf32>
    %165 = arith.addf %137, %164 : vector<8x32xf32>
    %c1_116 = arith.constant 1 : index
    %c0_117 = arith.constant 0 : index
    %c0_118 = arith.constant 0 : index
    %166 = vector.load %arg7[%c1_116, %c0_117, %c0_118] : memref<4x32x8xf32, #tpu.memory_space<vmem>>, vector<1x32x8xf32>
    %167 = vector.shape_cast %166 : vector<1x32x8xf32> to vector<32x8xf32>
    %cst_119 = arith.constant dense<0.000000e+00> : vector<8x8xf32>
    %168 = tpu.matmul %136, %167, %cst_119 {dimension_numbers = #tpu.dot_dimension_numbers<[1], [0], [0], [1], [0, 0, 1, 1], [], []>} : vector<8x32xf32>, vector<32x8xf32>, vector<8x8xf32> -> vector<8x8xf32>
    %c1_120 = arith.constant 1 : index
    %c0_121 = arith.constant 0 : index
    %c0_122 = arith.constant 0 : index
    %169 = vector.load %arg8[%c1_120, %c0_121, %c0_122] : memref<4x32x8xf32, #tpu.memory_space<vmem>>, vector<1x32x8xf32>
    %170 = vector.shape_cast %169 : vector<1x32x8xf32> to vector<32x8xf32>
    %cst_123 = arith.constant dense<0.000000e+00> : vector<16x8xf32>
    %171 = tpu.matmul %3, %170, %cst_123 {dimension_numbers = #tpu.dot_dimension_numbers<[1], [0], [0], [1], [0, 0, 1, 1], [], []>} : vector<16x32xf32>, vector<32x8xf32>, vector<16x8xf32> -> vector<16x8xf32>
    %c1_124 = arith.constant 1 : index
    %c0_125 = arith.constant 0 : index
    %c0_126 = arith.constant 0 : index
    %172 = vector.load %arg9[%c1_124, %c0_125, %c0_126] : memref<4x32x8xf32, #tpu.memory_space<vmem>>, vector<1x32x8xf32>
    %173 = vector.shape_cast %172 : vector<1x32x8xf32> to vector<32x8xf32>
    %cst_127 = arith.constant dense<0.000000e+00> : vector<16x8xf32>
    %174 = tpu.matmul %3, %173, %cst_127 {dimension_numbers = #tpu.dot_dimension_numbers<[1], [0], [0], [1], [0, 0, 1, 1], [], []>} : vector<16x32xf32>, vector<32x8xf32>, vector<16x8xf32> -> vector<16x8xf32>
    %cst_128 = arith.constant dense<0.000000e+00> : vector<8x16xf32>
    %175 = tpu.matmul %168, %171, %cst_128 {dimension_numbers = #tpu.dot_dimension_numbers<[1], [1], [0], [0], [0, 0, 1, 0], [], []>} : vector<8x8xf32>, vector<16x8xf32>, vector<8x16xf32> -> vector<8x16xf32>
    %cst_129 = arith.constant 0.353553385 : f32
    %176 = vector.broadcast %cst_129 : f32 to vector<8x16xf32>
    %177 = arith.mulf %175, %176 : vector<8x16xf32>
    %cst_130 = arith.constant dense<0xFF800000> : vector<8xf32>
    %178 = vector.multi_reduction <maximumf>, %177, %cst_130 [1] : vector<8x16xf32> to vector<8xf32>
    %cst_131 = arith.constant 0xFF800000 : f32
    %179 = vector.broadcast %cst_131 : f32 to vector<8xf32>
    %180 = arith.maximumf %179, %178 : vector<8xf32>
    %181 = vector.shape_cast %180 : vector<8xf32> to vector<8x1xf32>
    %182 = vector.broadcast %181 : vector<8x1xf32> to vector<8x16xf32>
    %183 = arith.subf %177, %182 : vector<8x16xf32>
    %184 = math.exp %183 : vector<8x16xf32>
    %cst_132 = arith.constant dense<0.000000e+00> : vector<8xf32>
    %185 = vector.multi_reduction <add>, %184, %cst_132 [1] : vector<8x16xf32> to vector<8xf32>
    %186 = vector.shape_cast %185 : vector<8xf32> to vector<8x1xf32>
    %187 = vector.broadcast %186 : vector<8x1xf32> to vector<8x16xf32>
    %188 = arith.divf %184, %187 : vector<8x16xf32>
    %cst_133 = arith.constant dense<0.000000e+00> : vector<8x8xf32>
    %189 = tpu.matmul %188, %174, %cst_133 {dimension_numbers = #tpu.dot_dimension_numbers<[1], [0], [0], [1], [0, 0, 1, 1], [], []>} : vector<8x16xf32>, vector<16x8xf32>, vector<8x8xf32> -> vector<8x8xf32>
    %c1_134 = arith.constant 1 : index
    %c0_135 = arith.constant 0 : index
    %c0_136 = arith.constant 0 : index
    %190 = vector.load %arg10[%c1_134, %c0_135, %c0_136] : memref<4x8x32xf32, #tpu.memory_space<vmem>>, vector<1x8x32xf32>
    %191 = vector.shape_cast %190 : vector<1x8x32xf32> to vector<8x32xf32>
    %cst_137 = arith.constant dense<0.000000e+00> : vector<8x32xf32>
    %192 = tpu.matmul %189, %191, %cst_137 {dimension_numbers = #tpu.dot_dimension_numbers<[1], [0], [0], [1], [0, 0, 1, 1], [], []>} : vector<8x8xf32>, vector<8x32xf32>, vector<8x32xf32> -> vector<8x32xf32>
    %193 = arith.addf %165, %192 : vector<8x32xf32>
    %c2_138 = arith.constant 2 : index
    %c0_139 = arith.constant 0 : index
    %c0_140 = arith.constant 0 : index
    %194 = vector.load %arg7[%c2_138, %c0_139, %c0_140] : memref<4x32x8xf32, #tpu.memory_space<vmem>>, vector<1x32x8xf32>
    %195 = vector.shape_cast %194 : vector<1x32x8xf32> to vector<32x8xf32>
    %cst_141 = arith.constant dense<0.000000e+00> : vector<8x8xf32>
    %196 = tpu.matmul %136, %195, %cst_141 {dimension_numbers = #tpu.dot_dimension_numbers<[1], [0], [0], [1], [0, 0, 1, 1], [], []>} : vector<8x32xf32>, vector<32x8xf32>, vector<8x8xf32> -> vector<8x8xf32>
    %c2_142 = arith.constant 2 : index
    %c0_143 = arith.constant 0 : index
    %c0_144 = arith.constant 0 : index
    %197 = vector.load %arg8[%c2_142, %c0_143, %c0_144] : memref<4x32x8xf32, #tpu.memory_space<vmem>>, vector<1x32x8xf32>
    %198 = vector.shape_cast %197 : vector<1x32x8xf32> to vector<32x8xf32>
    %cst_145 = arith.constant dense<0.000000e+00> : vector<16x8xf32>
    %199 = tpu.matmul %3, %198, %cst_145 {dimension_numbers = #tpu.dot_dimension_numbers<[1], [0], [0], [1], [0, 0, 1, 1], [], []>} : vector<16x32xf32>, vector<32x8xf32>, vector<16x8xf32> -> vector<16x8xf32>
    %c2_146 = arith.constant 2 : index
    %c0_147 = arith.constant 0 : index
    %c0_148 = arith.constant 0 : index
    %200 = vector.load %arg9[%c2_146, %c0_147, %c0_148] : memref<4x32x8xf32, #tpu.memory_space<vmem>>, vector<1x32x8xf32>
    %201 = vector.shape_cast %200 : vector<1x32x8xf32> to vector<32x8xf32>
    %cst_149 = arith.constant dense<0.000000e+00> : vector<16x8xf32>
    %202 = tpu.matmul %3, %201, %cst_149 {dimension_numbers = #tpu.dot_dimension_numbers<[1], [0], [0], [1], [0, 0, 1, 1], [], []>} : vector<16x32xf32>, vector<32x8xf32>, vector<16x8xf32> -> vector<16x8xf32>
    %cst_150 = arith.constant dense<0.000000e+00> : vector<8x16xf32>
    %203 = tpu.matmul %196, %199, %cst_150 {dimension_numbers = #tpu.dot_dimension_numbers<[1], [1], [0], [0], [0, 0, 1, 0], [], []>} : vector<8x8xf32>, vector<16x8xf32>, vector<8x16xf32> -> vector<8x16xf32>
    %cst_151 = arith.constant 0.353553385 : f32
    %204 = vector.broadcast %cst_151 : f32 to vector<8x16xf32>
    %205 = arith.mulf %203, %204 : vector<8x16xf32>
    %cst_152 = arith.constant dense<0xFF800000> : vector<8xf32>
    %206 = vector.multi_reduction <maximumf>, %205, %cst_152 [1] : vector<8x16xf32> to vector<8xf32>
    %cst_153 = arith.constant 0xFF800000 : f32
    %207 = vector.broadcast %cst_153 : f32 to vector<8xf32>
    %208 = arith.maximumf %207, %206 : vector<8xf32>
    %209 = vector.shape_cast %208 : vector<8xf32> to vector<8x1xf32>
    %210 = vector.broadcast %209 : vector<8x1xf32> to vector<8x16xf32>
    %211 = arith.subf %205, %210 : vector<8x16xf32>
    %212 = math.exp %211 : vector<8x16xf32>
    %cst_154 = arith.constant dense<0.000000e+00> : vector<8xf32>
    %213 = vector.multi_reduction <add>, %212, %cst_154 [1] : vector<8x16xf32> to vector<8xf32>
    %214 = vector.shape_cast %213 : vector<8xf32> to vector<8x1xf32>
    %215 = vector.broadcast %214 : vector<8x1xf32> to vector<8x16xf32>
    %216 = arith.divf %212, %215 : vector<8x16xf32>
    %cst_155 = arith.constant dense<0.000000e+00> : vector<8x8xf32>
    %217 = tpu.matmul %216, %202, %cst_155 {dimension_numbers = #tpu.dot_dimension_numbers<[1], [0], [0], [1], [0, 0, 1, 1], [], []>} : vector<8x16xf32>, vector<16x8xf32>, vector<8x8xf32> -> vector<8x8xf32>
    %c2_156 = arith.constant 2 : index
    %c0_157 = arith.constant 0 : index
    %c0_158 = arith.constant 0 : index
    %218 = vector.load %arg10[%c2_156, %c0_157, %c0_158] : memref<4x8x32xf32, #tpu.memory_space<vmem>>, vector<1x8x32xf32>
    %219 = vector.shape_cast %218 : vector<1x8x32xf32> to vector<8x32xf32>
    %cst_159 = arith.constant dense<0.000000e+00> : vector<8x32xf32>
    %220 = tpu.matmul %217, %219, %cst_159 {dimension_numbers = #tpu.dot_dimension_numbers<[1], [0], [0], [1], [0, 0, 1, 1], [], []>} : vector<8x8xf32>, vector<8x32xf32>, vector<8x32xf32> -> vector<8x32xf32>
    %221 = arith.addf %193, %220 : vector<8x32xf32>
    %c3_160 = arith.constant 3 : index
    %c0_161 = arith.constant 0 : index
    %c0_162 = arith.constant 0 : index
    %222 = vector.load %arg7[%c3_160, %c0_161, %c0_162] : memref<4x32x8xf32, #tpu.memory_space<vmem>>, vector<1x32x8xf32>
    %223 = vector.shape_cast %222 : vector<1x32x8xf32> to vector<32x8xf32>
    %cst_163 = arith.constant dense<0.000000e+00> : vector<8x8xf32>
    %224 = tpu.matmul %136, %223, %cst_163 {dimension_numbers = #tpu.dot_dimension_numbers<[1], [0], [0], [1], [0, 0, 1, 1], [], []>} : vector<8x32xf32>, vector<32x8xf32>, vector<8x8xf32> -> vector<8x8xf32>
    %c3_164 = arith.constant 3 : index
    %c0_165 = arith.constant 0 : index
    %c0_166 = arith.constant 0 : index
    %225 = vector.load %arg8[%c3_164, %c0_165, %c0_166] : memref<4x32x8xf32, #tpu.memory_space<vmem>>, vector<1x32x8xf32>
    %226 = vector.shape_cast %225 : vector<1x32x8xf32> to vector<32x8xf32>
    %cst_167 = arith.constant dense<0.000000e+00> : vector<16x8xf32>
    %227 = tpu.matmul %3, %226, %cst_167 {dimension_numbers = #tpu.dot_dimension_numbers<[1], [0], [0], [1], [0, 0, 1, 1], [], []>} : vector<16x32xf32>, vector<32x8xf32>, vector<16x8xf32> -> vector<16x8xf32>
    %c3_168 = arith.constant 3 : index
    %c0_169 = arith.constant 0 : index
    %c0_170 = arith.constant 0 : index
    %228 = vector.load %arg9[%c3_168, %c0_169, %c0_170] : memref<4x32x8xf32, #tpu.memory_space<vmem>>, vector<1x32x8xf32>
    %229 = vector.shape_cast %228 : vector<1x32x8xf32> to vector<32x8xf32>
    %cst_171 = arith.constant dense<0.000000e+00> : vector<16x8xf32>
    %230 = tpu.matmul %3, %229, %cst_171 {dimension_numbers = #tpu.dot_dimension_numbers<[1], [0], [0], [1], [0, 0, 1, 1], [], []>} : vector<16x32xf32>, vector<32x8xf32>, vector<16x8xf32> -> vector<16x8xf32>
    %cst_172 = arith.constant dense<0.000000e+00> : vector<8x16xf32>
    %231 = tpu.matmul %224, %227, %cst_172 {dimension_numbers = #tpu.dot_dimension_numbers<[1], [1], [0], [0], [0, 0, 1, 0], [], []>} : vector<8x8xf32>, vector<16x8xf32>, vector<8x16xf32> -> vector<8x16xf32>
    %cst_173 = arith.constant 0.353553385 : f32
    %232 = vector.broadcast %cst_173 : f32 to vector<8x16xf32>
    %233 = arith.mulf %231, %232 : vector<8x16xf32>
    %cst_174 = arith.constant dense<0xFF800000> : vector<8xf32>
    %234 = vector.multi_reduction <maximumf>, %233, %cst_174 [1] : vector<8x16xf32> to vector<8xf32>
    %cst_175 = arith.constant 0xFF800000 : f32
    %235 = vector.broadcast %cst_175 : f32 to vector<8xf32>
    %236 = arith.maximumf %235, %234 : vector<8xf32>
    %237 = vector.shape_cast %236 : vector<8xf32> to vector<8x1xf32>
    %238 = vector.broadcast %237 : vector<8x1xf32> to vector<8x16xf32>
    %239 = arith.subf %233, %238 : vector<8x16xf32>
    %240 = math.exp %239 : vector<8x16xf32>
    %cst_176 = arith.constant dense<0.000000e+00> : vector<8xf32>
    %241 = vector.multi_reduction <add>, %240, %cst_176 [1] : vector<8x16xf32> to vector<8xf32>
    %242 = vector.shape_cast %241 : vector<8xf32> to vector<8x1xf32>
    %243 = vector.broadcast %242 : vector<8x1xf32> to vector<8x16xf32>
    %244 = arith.divf %240, %243 : vector<8x16xf32>
    %cst_177 = arith.constant dense<0.000000e+00> : vector<8x8xf32>
    %245 = tpu.matmul %244, %230, %cst_177 {dimension_numbers = #tpu.dot_dimension_numbers<[1], [0], [0], [1], [0, 0, 1, 1], [], []>} : vector<8x16xf32>, vector<16x8xf32>, vector<8x8xf32> -> vector<8x8xf32>
    %c3_178 = arith.constant 3 : index
    %c0_179 = arith.constant 0 : index
    %c0_180 = arith.constant 0 : index
    %246 = vector.load %arg10[%c3_178, %c0_179, %c0_180] : memref<4x8x32xf32, #tpu.memory_space<vmem>>, vector<1x8x32xf32>
    %247 = vector.shape_cast %246 : vector<1x8x32xf32> to vector<8x32xf32>
    %cst_181 = arith.constant dense<0.000000e+00> : vector<8x32xf32>
    %248 = tpu.matmul %245, %247, %cst_181 {dimension_numbers = #tpu.dot_dimension_numbers<[1], [0], [0], [1], [0, 0, 1, 1], [], []>} : vector<8x8xf32>, vector<8x32xf32>, vector<8x32xf32> -> vector<8x32xf32>
    %249 = arith.addf %221, %248 : vector<8x32xf32>
    %250 = arith.addf %136, %249 : vector<8x32xf32>
    %251 = vector.extract_strided_slice %250 {offsets = [0, 0], sizes = [1, 32], strides = [1, 1]} : vector<8x32xf32> to vector<1x32xf32>
    %252 = vector.shape_cast %251 : vector<1x32xf32> to vector<1x32xf32>
    %253 = vector.broadcast %252 : vector<1x32xf32> to vector<12x32xf32>
    %254 = vector.extract_strided_slice %250 {offsets = [7, 0], sizes = [1, 32], strides = [1, 1]} : vector<8x32xf32> to vector<1x32xf32>
    %255 = vector.shape_cast %254 : vector<1x32xf32> to vector<1x32xf32>
    %256 = vector.broadcast %255 : vector<1x32xf32> to vector<12x32xf32>
    %257 = tpu.concatenate %253, %250, %256 in 0 : vector<12x32xf32>, vector<8x32xf32>, vector<12x32xf32> -> vector<32x32xf32>
    %cst_182 = arith.constant dense<0.000000e+00> : vector<8x32xf32>
    %258 = tpu.matmul %13, %257, %cst_182 {dimension_numbers = #tpu.dot_dimension_numbers<[1], [0], [0], [1], [0, 0, 1, 1], [], []>} : vector<8x32xf32>, vector<32x32xf32>, vector<8x32xf32> -> vector<8x32xf32>
    %259 = arith.subf %250, %258 : vector<8x32xf32>
    %c0_183 = arith.constant 0 : index
    %c0_184 = arith.constant 0 : index
    %260 = vector.load %arg11[%c0_183, %c0_184] : memref<32x128xf32, #tpu.memory_space<vmem>>, vector<32x128xf32>
    %cst_185 = arith.constant dense<0.000000e+00> : vector<8x128xf32>
    %261 = tpu.matmul %259, %260, %cst_185 {dimension_numbers = #tpu.dot_dimension_numbers<[1], [0], [0], [1], [0, 0, 1, 1], [], []>} : vector<8x32xf32>, vector<32x128xf32>, vector<8x128xf32> -> vector<8x128xf32>
    %cst_186 = arith.constant 0.000000e+00 : f32
    %262 = vector.broadcast %cst_186 : f32 to vector<8x128xf32>
    %263 = arith.maximumf %261, %262 : vector<8x128xf32>
    %c0_187 = arith.constant 0 : index
    %c0_188 = arith.constant 0 : index
    %264 = vector.load %arg12[%c0_187, %c0_188] : memref<128x32xf32, #tpu.memory_space<vmem>>, vector<128x32xf32>
    %cst_189 = arith.constant dense<0.000000e+00> : vector<8x32xf32>
    %265 = tpu.matmul %263, %264, %cst_189 {dimension_numbers = #tpu.dot_dimension_numbers<[1], [0], [0], [1], [0, 0, 1, 1], [], []>} : vector<8x128xf32>, vector<128x32xf32>, vector<8x32xf32> -> vector<8x32xf32>
    %266 = arith.addf %259, %265 : vector<8x32xf32>
    %267 = vector.extract_strided_slice %266 {offsets = [0, 0], sizes = [1, 32], strides = [1, 1]} : vector<8x32xf32> to vector<1x32xf32>
    %268 = vector.shape_cast %267 : vector<1x32xf32> to vector<1x32xf32>
    %269 = vector.broadcast %268 : vector<1x32xf32> to vector<12x32xf32>
    %270 = vector.extract_strided_slice %266 {offsets = [7, 0], sizes = [1, 32], strides = [1, 1]} : vector<8x32xf32> to vector<1x32xf32>
    %271 = vector.shape_cast %270 : vector<1x32xf32> to vector<1x32xf32>
    %272 = vector.broadcast %271 : vector<1x32xf32> to vector<12x32xf32>
    %273 = tpu.concatenate %269, %266, %272 in 0 : vector<12x32xf32>, vector<8x32xf32>, vector<12x32xf32> -> vector<32x32xf32>
    %cst_190 = arith.constant dense<0.000000e+00> : vector<8x32xf32>
    %274 = tpu.matmul %13, %273, %cst_190 {dimension_numbers = #tpu.dot_dimension_numbers<[1], [0], [0], [1], [0, 0, 1, 1], [], []>} : vector<8x32xf32>, vector<32x32xf32>, vector<8x32xf32> -> vector<8x32xf32>
    %275 = arith.subf %266, %274 : vector<8x32xf32>
    %276 = arith.addf %135, %258 : vector<8x32xf32>
    %277 = arith.addf %276, %274 : vector<8x32xf32>
    %278 = vector.extract_strided_slice %277 {offsets = [7, 0], sizes = [1, 32], strides = [1, 1]} : vector<8x32xf32> to vector<1x32xf32>
    %279 = vector.extract_strided_slice %277 {offsets = [0, 0], sizes = [1, 32], strides = [1, 1]} : vector<8x32xf32> to vector<1x32xf32>
    %280 = tpu.concatenate %278, %277, %279 in 0 : vector<1x32xf32>, vector<8x32xf32>, vector<1x32xf32> -> vector<10x32xf32>
    %cst_191 = arith.constant 0.000000e+00 : f32
    %281 = vector.broadcast %cst_191 : f32 to vector<8x16xf32>
    %282 = vector.extract_strided_slice %280 {offsets = [0, 0], sizes = [8, 32], strides = [1, 1]} : vector<10x32xf32> to vector<8x32xf32>
    %c0_192 = arith.constant 0 : index
    %c0_193 = arith.constant 0 : index
    %c0_194 = arith.constant 0 : index
    %283 = vector.load %arg13[%c0_192, %c0_193, %c0_194] : memref<3x32x16xf32, #tpu.memory_space<vmem>>, vector<1x32x16xf32>
    %284 = vector.shape_cast %283 : vector<1x32x16xf32> to vector<32x16xf32>
    %cst_195 = arith.constant dense<0.000000e+00> : vector<8x16xf32>
    %285 = tpu.matmul %282, %284, %cst_195 {dimension_numbers = #tpu.dot_dimension_numbers<[1], [0], [0], [1], [0, 0, 1, 1], [], []>} : vector<8x32xf32>, vector<32x16xf32>, vector<8x16xf32> -> vector<8x16xf32>
    %286 = arith.addf %281, %285 : vector<8x16xf32>
    %287 = vector.extract_strided_slice %280 {offsets = [1, 0], sizes = [8, 32], strides = [1, 1]} : vector<10x32xf32> to vector<8x32xf32>
    %c1_196 = arith.constant 1 : index
    %c0_197 = arith.constant 0 : index
    %c0_198 = arith.constant 0 : index
    %288 = vector.load %arg13[%c1_196, %c0_197, %c0_198] : memref<3x32x16xf32, #tpu.memory_space<vmem>>, vector<1x32x16xf32>
    %289 = vector.shape_cast %288 : vector<1x32x16xf32> to vector<32x16xf32>
    %cst_199 = arith.constant dense<0.000000e+00> : vector<8x16xf32>
    %290 = tpu.matmul %287, %289, %cst_199 {dimension_numbers = #tpu.dot_dimension_numbers<[1], [0], [0], [1], [0, 0, 1, 1], [], []>} : vector<8x32xf32>, vector<32x16xf32>, vector<8x16xf32> -> vector<8x16xf32>
    %291 = arith.addf %286, %290 : vector<8x16xf32>
    %292 = vector.extract_strided_slice %280 {offsets = [2, 0], sizes = [8, 32], strides = [1, 1]} : vector<10x32xf32> to vector<8x32xf32>
    %c2_200 = arith.constant 2 : index
    %c0_201 = arith.constant 0 : index
    %c0_202 = arith.constant 0 : index
    %293 = vector.load %arg13[%c2_200, %c0_201, %c0_202] : memref<3x32x16xf32, #tpu.memory_space<vmem>>, vector<1x32x16xf32>
    %294 = vector.shape_cast %293 : vector<1x32x16xf32> to vector<32x16xf32>
    %cst_203 = arith.constant dense<0.000000e+00> : vector<8x16xf32>
    %295 = tpu.matmul %292, %294, %cst_203 {dimension_numbers = #tpu.dot_dimension_numbers<[1], [0], [0], [1], [0, 0, 1, 1], [], []>} : vector<8x32xf32>, vector<32x16xf32>, vector<8x16xf32> -> vector<8x16xf32>
    %296 = arith.addf %291, %295 : vector<8x16xf32>
    %c0_204 = arith.constant 0 : index
    %c0_205 = arith.constant 0 : index
    %c0_206 = arith.constant 0 : index
    %297 = vector.load %arg14[%c0_204, %c0_205, %c0_206] : memref<1x8x32xf32, #tpu.memory_space<vmem>>, vector<1x8x32xf32>
    %298 = vector.shape_cast %297 : vector<1x8x32xf32> to vector<8x32xf32>
    %299 = vector.shape_cast %275 : vector<8x32xf32> to vector<1x8x32xf32>
    tpu.vector_store %arg14[%c0_204, %c0_205, %c0_206], %299 {strides = array<i32>} : memref<1x8x32xf32, #tpu.memory_space<vmem>>, vector<1x8x32xf32>,
    %c0_207 = arith.constant 0 : index
    %c0_208 = arith.constant 0 : index
    %c0_209 = arith.constant 0 : index
    %300 = vector.load %arg15[%c0_207, %c0_208, %c0_209] : memref<1x8x16xf32, #tpu.memory_space<vmem>>, vector<1x8x16xf32>
    %301 = vector.shape_cast %300 : vector<1x8x16xf32> to vector<8x16xf32>
    %302 = vector.shape_cast %296 : vector<8x16xf32> to vector<1x8x16xf32>
    tpu.vector_store %arg15[%c0_207, %c0_208, %c0_209], %302 {strides = array<i32>} : memref<1x8x16xf32, #tpu.memory_space<vmem>>, vector<1x8x16xf32>,
    return
  }
  func.func @transform_0(%arg0: i32) -> (i32, i32, i32) {
    %c0_i32 = arith.constant 0 : i32
    %c0_i32_0 = arith.constant 0 : i32
    %c0_i32_1 = arith.constant 0 : i32
    return %arg0, %c0_i32, %c0_i32_0 : i32, i32, i32
  }
  func.func @transform_1(%arg0: i32) -> (i32, i32, i32) {
    %c0_i32 = arith.constant 0 : i32
    %c0_i32_0 = arith.constant 0 : i32
    %c0_i32_1 = arith.constant 0 : i32
    return %arg0, %c0_i32, %c0_i32_0 : i32, i32, i32
  }
  func.func @transform_2(%arg0: i32) -> (i32, i32, i32) {
    %c0_i32 = arith.constant 0 : i32
    %c0_i32_0 = arith.constant 0 : i32
    %c0_i32_1 = arith.constant 0 : i32
    %c0_i32_2 = arith.constant 0 : i32
    return %c0_i32, %c0_i32_0, %c0_i32_1 : i32, i32, i32
  }
  func.func @transform_3(%arg0: i32) -> (i32, i32, i32) {
    %c0_i32 = arith.constant 0 : i32
    %c0_i32_0 = arith.constant 0 : i32
    %c0_i32_1 = arith.constant 0 : i32
    %c0_i32_2 = arith.constant 0 : i32
    return %c0_i32, %c0_i32_0, %c0_i32_1 : i32, i32, i32
  }
  func.func @transform_4(%arg0: i32) -> (i32, i32, i32) {
    %c0_i32 = arith.constant 0 : i32
    %c0_i32_0 = arith.constant 0 : i32
    %c0_i32_1 = arith.constant 0 : i32
    %c0_i32_2 = arith.constant 0 : i32
    return %c0_i32, %c0_i32_0, %c0_i32_1 : i32, i32, i32
  }
  func.func @transform_5(%arg0: i32) -> (i32, i32, i32) {
    %c0_i32 = arith.constant 0 : i32
    %c0_i32_0 = arith.constant 0 : i32
    %c0_i32_1 = arith.constant 0 : i32
    %c0_i32_2 = arith.constant 0 : i32
    return %c0_i32, %c0_i32_0, %c0_i32_1 : i32, i32, i32
  }
  func.func @transform_6(%arg0: i32) -> (i32, i32, i32) {
    %c0_i32 = arith.constant 0 : i32
    %c0_i32_0 = arith.constant 0 : i32
    %c0_i32_1 = arith.constant 0 : i32
    %c0_i32_2 = arith.constant 0 : i32
    return %c0_i32, %c0_i32_0, %c0_i32_1 : i32, i32, i32
  }
  func.func @transform_7(%arg0: i32) -> (i32, i32, i32) {
    %c0_i32 = arith.constant 0 : i32
    %c0_i32_0 = arith.constant 0 : i32
    %c0_i32_1 = arith.constant 0 : i32
    %c0_i32_2 = arith.constant 0 : i32
    return %c0_i32, %c0_i32_0, %c0_i32_1 : i32, i32, i32
  }
  func.func @transform_8(%arg0: i32) -> (i32, i32, i32) {
    %c0_i32 = arith.constant 0 : i32
    %c0_i32_0 = arith.constant 0 : i32
    %c0_i32_1 = arith.constant 0 : i32
    %c0_i32_2 = arith.constant 0 : i32
    return %c0_i32, %c0_i32_0, %c0_i32_1 : i32, i32, i32
  }
  func.func @transform_9(%arg0: i32) -> (i32, i32, i32) {
    %c0_i32 = arith.constant 0 : i32
    %c0_i32_0 = arith.constant 0 : i32
    %c0_i32_1 = arith.constant 0 : i32
    %c0_i32_2 = arith.constant 0 : i32
    return %c0_i32, %c0_i32_0, %c0_i32_1 : i32, i32, i32
  }
  func.func @transform_10(%arg0: i32) -> (i32, i32) {
    %c0_i32 = arith.constant 0 : i32
    %c0_i32_0 = arith.constant 0 : i32
    %c0_i32_1 = arith.constant 0 : i32
    return %c0_i32, %c0_i32_0 : i32, i32
  }
  func.func @transform_11(%arg0: i32) -> (i32, i32) {
    %c0_i32 = arith.constant 0 : i32
    %c0_i32_0 = arith.constant 0 : i32
    %c0_i32_1 = arith.constant 0 : i32
    return %c0_i32, %c0_i32_0 : i32, i32
  }
  func.func @transform_12(%arg0: i32) -> (i32, i32, i32) {
    %c0_i32 = arith.constant 0 : i32
    %c0_i32_0 = arith.constant 0 : i32
    %c0_i32_1 = arith.constant 0 : i32
    %c0_i32_2 = arith.constant 0 : i32
    return %c0_i32, %c0_i32_0, %c0_i32_1 : i32, i32, i32
  }
  func.func @transform_13(%arg0: i32) -> (i32, i32, i32) {
    %c0_i32 = arith.constant 0 : i32
    %c0_i32_0 = arith.constant 0 : i32
    %c0_i32_1 = arith.constant 0 : i32
    return %arg0, %c0_i32, %c0_i32_0 : i32, i32, i32
  }
  func.func @transform_14(%arg0: i32) -> (i32, i32, i32) {
    %c0_i32 = arith.constant 0 : i32
    %c0_i32_0 = arith.constant 0 : i32
    %c0_i32_1 = arith.constant 0 : i32
    return %arg0, %c0_i32, %c0_i32_0 : i32, i32, i32
  }
}

</mosaic_0001>

<llo_original>
// kernel: tpu_custom_call.1
$region0: #{tpu_custom_call.1}
  #allocation0 [shape = 'u32[]', space=smem, size = 0x4, offset = 0x4, fixed_abs, tag = 'smem constant byte address 0x4 - core index']
  #allocation1 [shape = 'u32[144,128]{1,0:T(1,128)}', space=vmem, size = 0x12000, scoped, tag = 'internal scratch']
  %s0 = inlined_call_operand.vmem [shape: f32[2,8,32], index: 0, kind: input, shape index: {}]
  %s1 = inlined_call_operand.vmem [shape: f32[2,16,32], index: 1, kind: input, shape index: {}]
  %s2 = inlined_call_operand.vmem [shape: f32[4,32,8], index: 2, kind: input, shape index: {}]
  %s3 = inlined_call_operand.vmem [shape: f32[4,32,8], index: 3, kind: input, shape index: {}]
  %s4 = inlined_call_operand.vmem [shape: f32[4,32,8], index: 4, kind: input, shape index: {}]
  %s5 = inlined_call_operand.vmem [shape: f32[4,8,32], index: 5, kind: input, shape index: {}]
  %s6 = inlined_call_operand.vmem [shape: f32[4,32,8], index: 6, kind: input, shape index: {}]
  %s7 = inlined_call_operand.vmem [shape: f32[4,32,8], index: 7, kind: input, shape index: {}]
  %s8 = inlined_call_operand.vmem [shape: f32[4,32,8], index: 8, kind: input, shape index: {}]
  %s9 = inlined_call_operand.vmem [shape: f32[4,8,32], index: 9, kind: input, shape index: {}]
  %s10 = inlined_call_operand.vmem [shape: f32[32,128], index: 10, kind: input, shape index: {}]
  %s11 = inlined_call_operand.vmem [shape: f32[128,32], index: 11, kind: input, shape index: {}]
  %s12 = inlined_call_operand.vmem [shape: f32[3,32,16], index: 12, kind: input, shape index: {}]
  %s13 = inlined_call_operand.hbm [shape: f32[2,8,32], index: 13, kind: output, shape index: {0}]
  %s14 = inlined_call_operand.hbm [shape: f32[2,8,16], index: 14, kind: output, shape index: {1}]
  %15 = xla_tuple %s13, %s14
  %s16 = sld [smem:[#allocation0]]
  $region93: #{tpu_custom_call.1} parent=0
    _
  %s18 = ssub.s32 1, %s16
  %s19 = scalar_select 0, %s18, %s16
  $region1: #{tpu_custom_call.1} parent=0
    #allocation2 [shape = 'u8[8192]{0}', space=vmem, size = 0x2000, scoped, tag = 'output window, operand 0']
    #allocation3 [shape = 's32[2]{0}', space=sflag, size = 0x8, scoped, tag = 'scoped memory for tpu_custom_call.1']
    #allocation4 [shape = 'u8[8192]{0}', space=vmem, size = 0x2000, scoped, tag = 'output window, operand 1']
    #allocation5 [shape = 's32[2]{0}', space=sflag, size = 0x8, scoped, tag = 'scoped memory for tpu_custom_call.1']
    %20 = vsyncpa [#allocation3], 0
    %s21 = scalar_lea.sflag [#allocation3], 1
    %22 = vsyncpa %s21, 0
    %23 = vsyncpa [#allocation5], 0
    %s24 = scalar_lea.sflag [#allocation5], 1
    %25 = vsyncpa %s24, 0
    loop: start=0, step=1, limit=4
    $region2: #{tpu_custom_call.1} parent=1 // loop_pre_header
      _
    $region3: #{tpu_custom_call.1} parent=1 // loop_header
      %s27 = sphi 0, %s31
      %p28 = scmp.ge.s32.totalorder %s27, 4
      %s37 = sphi 0, %s39
      %s40 = sphi 0, %s37
      %s41 = sphi 0, %s40
      %s57 = sphi 0, %s41
      %s63 = sphi 0, %s65
      %s66 = sphi 0, %s63
      %s67 = sphi 0, %s66
      %s83 = sphi 0, %s67
      %s87 = sphi 0, %s87
      %s89 = sphi 0, %s87
      %s90 = sphi 0, %s89
      %s104 = sphi 0, %s90
      %s108 = sphi 0, %s108
      %s110 = sphi 0, %s108
      %s111 = sphi 0, %s110
      %s125 = sphi 0, %s111
      %s129 = sphi 0, %s129
      %s131 = sphi 0, %s129
      %s132 = sphi 0, %s131
      %s146 = sphi 0, %s132
      %s150 = sphi 0, %s150
      %s152 = sphi 0, %s150
      %s153 = sphi 0, %s152
      %s167 = sphi 0, %s153
      %s171 = sphi 0, %s171
      %s173 = sphi 0, %s171
      %s174 = sphi 0, %s173
      %s188 = sphi 0, %s174
      %s192 = sphi 0, %s192
      %s194 = sphi 0, %s192
      %s195 = sphi 0, %s194
      %s209 = sphi 0, %s195
      %s213 = sphi 0, %s213
      %s215 = sphi 0, %s213
      %s216 = sphi 0, %s215
      %s230 = sphi 0, %s216
      %s234 = sphi 0, %s234
      %s236 = sphi 0, %s234
      %s237 = sphi 0, %s236
      %s251 = sphi 0, %s237
      %s255 = sphi 0, %s255
      %s257 = sphi 0, %s255
      %s258 = sphi 0, %s257
      %s272 = sphi 0, %s258
      %s276 = sphi 0, %s276
      %s278 = sphi 0, %s276
      %s279 = sphi 0, %s278
      %s293 = sphi 0, %s279
      %s297 = sphi 0, %s297
      %s299 = sphi 0, %s297
      %s300 = sphi 0, %s299
      %s314 = sphi 0, %s300
      %s320 = sphi 0, %s322
      %s323 = sphi 0, %s320
      %s324 = sphi 0, %s323
      %s340 = sphi 0, %s324
      %s346 = sphi 0, %s348
      %s349 = sphi 0, %s346
      %s350 = sphi 0, %s349
      %s366 = sphi 0, %s350
    $region4: #{tpu_custom_call.1} parent=1 // loop_header_branch
      %30 = sbr.rel (%p28) target = $region8
    $region5: #{tpu_custom_call.1} parent=1 // loop_body
      %s32 = ssub.s32 %s27, 1
      %s33 = ssub.s32 %s27, 2
      %s34 = sadd.s32 %s27, 1
      %s35 = ssub.s32 %s27, %s34
      %p36 = scmp.eq.s32.totalorder %s35, 0
      %s38 = sadd.s32 %s37, 1
      %s39 = scalar_select %p36, %s37, %s38
      %p42 = pneg %p36
      %p43 = scmp.eq.s32.totalorder %s27, 1
      %p44 = por %p42, %p43
      %p45 = scmp.ne.s32.totalorder %s37, %s40
      %p46 = scmp.eq.s32.totalorder %s27, 0
      %p47 = por %p45, %p46
      %p48 = scmp.ne.s32.totalorder %s37, %s40
      %p49 = scmp.eq.s32.totalorder %s32, 1
      %p50 = por %p48, %p49
      %p51 = scmp.ne.s32.totalorder %s40, %s41
      %p52 = scmp.eq.s32.totalorder %s32, 0
      %p53 = por %p51, %p52
      %p54 = scmp.ne.s32.totalorder %s40, %s41
      %p55 = scmp.eq.s32.totalorder %s33, 1
      %p56 = por %p54, %p55
      %p58 = scmp.ne.s32.totalorder %s41, %s57
      %p59 = scmp.eq.s32.totalorder %s33, 0
      %p60 = por %p58, %p59
      %s61 = ssub.s32 %s27, %s34
      %p62 = scmp.eq.s32.totalorder %s61, 0
      %s64 = sadd.s32 %s63, 1
      %s65 = scalar_select %p62, %s63, %s64
      %p68 = pneg %p62
      %p69 = scmp.eq.s32.totalorder %s27, 1
      %p70 = por %p68, %p69
      %p71 = scmp.ne.s32.totalorder %s63, %s66
      %p72 = scmp.eq.s32.totalorder %s27, 0
      %p73 = por %p71, %p72
      %p74 = scmp.ne.s32.totalorder %s63, %s66
      %p75 = scmp.eq.s32.totalorder %s32, 1
      %p76 = por %p74, %p75
      %p77 = scmp.ne.s32.totalorder %s66, %s67
      %p78 = scmp.eq.s32.totalorder %s32, 0
      %p79 = por %p77, %p78
      %p80 = scmp.ne.s32.totalorder %s66, %s67
      %p81 = scmp.eq.s32.totalorder %s33, 1
      %p82 = por %p80, %p81
      %p84 = scmp.ne.s32.totalorder %s67, %s83
      %p85 = scmp.eq.s32.totalorder %s33, 0
      %p86 = por %p84, %p85
      %s88 = sadd.s32 %s87, 1
      %p91 = scmp.eq.s32.totalorder %s27, 1
      %p92 = scmp.ne.s32.totalorder %s87, %s89
      %p93 = scmp.eq.s32.totalorder %s27, 0
      %p94 = por %p92, %p93
      %p95 = scmp.ne.s32.totalorder %s87, %s89
      %p96 = scmp.eq.s32.totalorder %s32, 1
      %p97 = por %p95, %p96
      %p98 = scmp.ne.s32.totalorder %s89, %s90
      %p99 = scmp.eq.s32.totalorder %s32, 0
      %p100 = por %p98, %p99
      %p101 = scmp.ne.s32.totalorder %s89, %s90
      %p102 = scmp.eq.s32.totalorder %s33, 1
      %p103 = por %p101, %p102
      %p105 = scmp.ne.s32.totalorder %s90, %s104
      %p106 = scmp.eq.s32.totalorder %s33, 0
      %p107 = por %p105, %p106
      %s109 = sadd.s32 %s108, 1
      %p112 = scmp.eq.s32.totalorder %s27, 1
      %p113 = scmp.ne.s32.totalorder %s108, %s110
      %p114 = scmp.eq.s32.totalorder %s27, 0
      %p115 = por %p113, %p114
      %p116 = scmp.ne.s32.totalorder %s108, %s110
      %p117 = scmp.eq.s32.totalorder %s32, 1
      %p118 = por %p116, %p117
      %p119 = scmp.ne.s32.totalorder %s110, %s111
      %p120 = scmp.eq.s32.totalorder %s32, 0
      %p121 = por %p119, %p120
      %p122 = scmp.ne.s32.totalorder %s110, %s111
      %p123 = scmp.eq.s32.totalorder %s33, 1
      %p124 = por %p122, %p123
      %p126 = scmp.ne.s32.totalorder %s111, %s125
      %p127 = scmp.eq.s32.totalorder %s33, 0
      %p128 = por %p126, %p127
      %s130 = sadd.s32 %s129, 1
      %p133 = scmp.eq.s32.totalorder %s27, 1
      %p134 = scmp.ne.s32.totalorder %s129, %s131
      %p135 = scmp.eq.s32.totalorder %s27, 0
      %p136 = por %p134, %p135
      %p137 = scmp.ne.s32.totalorder %s129, %s131
      %p138 = scmp.eq.s32.totalorder %s32, 1
      %p139 = por %p137, %p138
      %p140 = scmp.ne.s32.totalorder %s131, %s132
      %p141 = scmp.eq.s32.totalorder %s32, 0
      %p142 = por %p140, %p141
      %p143 = scmp.ne.s32.totalorder %s131, %s132
      %p144 = scmp.eq.s32.totalorder %s33, 1
      %p145 = por %p143, %p144
      %p147 = scmp.ne.s32.totalorder %s132, %s146
      %p148 = scmp.eq.s32.totalorder %s33, 0
      %p149 = por %p147, %p148
      %s151 = sadd.s32 %s150, 1
      %p154 = scmp.eq.s32.totalorder %s27, 1
      %p155 = scmp.ne.s32.totalorder %s150, %s152
      %p156 = scmp.eq.s32.totalorder %s27, 0
      %p157 = por %p155, %p156
      %p158 = scmp.ne.s32.totalorder %s150, %s152
      %p159 = scmp.eq.s32.totalorder %s32, 1
      %p160 = por %p158, %p159
      %p161 = scmp.ne.s32.totalorder %s152, %s153
      %p162 = scmp.eq.s32.totalorder %s32, 0
      %p163 = por %p161, %p162
      %p164 = scmp.ne.s32.totalorder %s152, %s153
      %p165 = scmp.eq.s32.totalorder %s33, 1
      %p166 = por %p164, %p165
      %p168 = scmp.ne.s32.totalorder %s153, %s167
      %p169 = scmp.eq.s32.totalorder %s33, 0
      %p170 = por %p168, %p169
      %s172 = sadd.s32 %s171, 1
      %p175 = scmp.eq.s32.totalorder %s27, 1
      %p176 = scmp.ne.s32.totalorder %s171, %s173
      %p177 = scmp.eq.s32.totalorder %s27, 0
      %p178 = por %p176, %p177
      %p179 = scmp.ne.s32.totalorder %s171, %s173
      %p180 = scmp.eq.s32.totalorder %s32, 1
      %p181 = por %p179, %p180
      %p182 = scmp.ne.s32.totalorder %s173, %s174
      %p183 = scmp.eq.s32.totalorder %s32, 0
      %p184 = por %p182, %p183
      %p185 = scmp.ne.s32.totalorder %s173, %s174
      %p186 = scmp.eq.s32.totalorder %s33, 1
      %p187 = por %p185, %p186
      %p189 = scmp.ne.s32.totalorder %s174, %s188
      %p190 = scmp.eq.s32.totalorder %s33, 0
      %p191 = por %p189, %p190
      %s193 = sadd.s32 %s192, 1
      %p196 = scmp.eq.s32.totalorder %s27, 1
      %p197 = scmp.ne.s32.totalorder %s192, %s194
      %p198 = scmp.eq.s32.totalorder %s27, 0
      %p199 = por %p197, %p198
      %p200 = scmp.ne.s32.totalorder %s192, %s194
      %p201 = scmp.eq.s32.totalorder %s32, 1
      %p202 = por %p200, %p201
      %p203 = scmp.ne.s32.totalorder %s194, %s195
      %p204 = scmp.eq.s32.totalorder %s32, 0
      %p205 = por %p203, %p204
      %p206 = scmp.ne.s32.totalorder %s194, %s195
      %p207 = scmp.eq.s32.totalorder %s33, 1
      %p208 = por %p206, %p207
      %p210 = scmp.ne.s32.totalorder %s195, %s209
      %p211 = scmp.eq.s32.totalorder %s33, 0
      %p212 = por %p210, %p211
      %s214 = sadd.s32 %s213, 1
      %p217 = scmp.eq.s32.totalorder %s27, 1
      %p218 = scmp.ne.s32.totalorder %s213, %s215
      %p219 = scmp.eq.s32.totalorder %s27, 0
      %p220 = por %p218, %p219
      %p221 = scmp.ne.s32.totalorder %s213, %s215
      %p222 = scmp.eq.s32.totalorder %s32, 1
      %p223 = por %p221, %p222
      %p224 = scmp.ne.s32.totalorder %s215, %s216
      %p225 = scmp.eq.s32.totalorder %s32, 0
      %p226 = por %p224, %p225
      %p227 = scmp.ne.s32.totalorder %s215, %s216
      %p228 = scmp.eq.s32.totalorder %s33, 1
      %p229 = por %p227, %p228
      %p231 = scmp.ne.s32.totalorder %s216, %s230
      %p232 = scmp.eq.s32.totalorder %s33, 0
      %p233 = por %p231, %p232
      %s235 = sadd.s32 %s234, 1
      %p238 = scmp.eq.s32.totalorder %s27, 1
      %p239 = scmp.ne.s32.totalorder %s234, %s236
      %p240 = scmp.eq.s32.totalorder %s27, 0
      %p241 = por %p239, %p240
      %p242 = scmp.ne.s32.totalorder %s234, %s236
      %p243 = scmp.eq.s32.totalorder %s32, 1
      %p244 = por %p242, %p243
      %p245 = scmp.ne.s32.totalorder %s236, %s237
      %p246 = scmp.eq.s32.totalorder %s32, 0
      %p247 = por %p245, %p246
      %p248 = scmp.ne.s32.totalorder %s236, %s237
      %p249 = scmp.eq.s32.totalorder %s33, 1
      %p250 = por %p248, %p249
      %p252 = scmp.ne.s32.totalorder %s237, %s251
      %p253 = scmp.eq.s32.totalorder %s33, 0
      %p254 = por %p252, %p253
      %s256 = sadd.s32 %s255, 1
      %p259 = scmp.eq.s32.totalorder %s27, 1
      %p260 = scmp.ne.s32.totalorder %s255, %s257
      %p261 = scmp.eq.s32.totalorder %s27, 0
      %p262 = por %p260, %p261
      %p263 = scmp.ne.s32.totalorder %s255, %s257
      %p264 = scmp.eq.s32.totalorder %s32, 1
      %p265 = por %p263, %p264
      %p266 = scmp.ne.s32.totalorder %s257, %s258
      %p267 = scmp.eq.s32.totalorder %s32, 0
      %p268 = por %p266, %p267
      %p269 = scmp.ne.s32.totalorder %s257, %s258
      %p270 = scmp.eq.s32.totalorder %s33, 1
      %p271 = por %p269, %p270
      %p273 = scmp.ne.s32.totalorder %s258, %s272
      %p274 = scmp.eq.s32.totalorder %s33, 0
      %p275 = por %p273, %p274
      %s277 = sadd.s32 %s276, 1
      %p280 = scmp.eq.s32.totalorder %s27, 1
      %p281 = scmp.ne.s32.totalorder %s276, %s278
      %p282 = scmp.eq.s32.totalorder %s27, 0
      %p283 = por %p281, %p282
      %p284 = scmp.ne.s32.totalorder %s276, %s278
      %p285 = scmp.eq.s32.totalorder %s32, 1
      %p286 = por %p284, %p285
      %p287 = scmp.ne.s32.totalorder %s278, %s279
      %p288 = scmp.eq.s32.totalorder %s32, 0
      %p289 = por %p287, %p288
      %p290 = scmp.ne.s32.totalorder %s278, %s279
      %p291 = scmp.eq.s32.totalorder %s33, 1
      %p292 = por %p290, %p291
      %p294 = scmp.ne.s32.totalorder %s279, %s293
      %p295 = scmp.eq.s32.totalorder %s33, 0
      %p296 = por %p294, %p295
      %s298 = sadd.s32 %s297, 1
      %p301 = scmp.eq.s32.totalorder %s27, 1
      %p302 = scmp.ne.s32.totalorder %s297, %s299
      %p303 = scmp.eq.s32.totalorder %s27, 0
      %p304 = por %p302, %p303
      %p305 = scmp.ne.s32.totalorder %s297, %s299
      %p306 = scmp.eq.s32.totalorder %s32, 1
      %p307 = por %p305, %p306
      %p308 = scmp.ne.s32.totalorder %s299, %s300
      %p309 = scmp.eq.s32.totalorder %s32, 0
      %p310 = por %p308, %p309
      %p311 = scmp.ne.s32.totalorder %s299, %s300
      %p312 = scmp.eq.s32.totalorder %s33, 1
      %p313 = por %p311, %p312
      %p315 = scmp.ne.s32.totalorder %s300, %s314
      %p316 = scmp.eq.s32.totalorder %s33, 0
      %p317 = por %p315, %p316
      %s318 = ssub.s32 %s27, %s34
      %p319 = scmp.eq.s32.totalorder %s318, 0
      %s321 = sadd.s32 %s320, 1
      %s322 = scalar_select %p319, %s320, %s321
      %p325 = pneg %p319
      %p326 = scmp.eq.s32.totalorder %s27, 1
      %p327 = por %p325, %p326
      %p328 = scmp.ne.s32.totalorder %s320, %s323
      %p329 = scmp.eq.s32.totalorder %s27, 0
      %p330 = por %p328, %p329
      %p331 = scmp.ne.s32.totalorder %s320, %s323
      %p332 = scmp.eq.s32.totalorder %s32, 1
      %p333 = por %p331, %p332
      %p334 = scmp.ne.s32.totalorder %s323, %s324
      %p335 = scmp.eq.s32.totalorder %s32, 0
      %p336 = por %p334, %p335
      %p337 = scmp.ne.s32.totalorder %s323, %s324
      %p338 = scmp.eq.s32.totalorder %s33, 1
      %p339 = por %p337, %p338
      %p341 = scmp.ne.s32.totalorder %s324, %s340
      %p342 = scmp.eq.s32.totalorder %s33, 0
      %p343 = por %p341, %p342
      %s344 = ssub.s32 %s27, %s34
      %p345 = scmp.eq.s32.totalorder %s344, 0
      %s347 = sadd.s32 %s346, 1
      %s348 = scalar_select %p345, %s346, %s347
      %p351 = pneg %p345
      %p352 = scmp.eq.s32.totalorder %s27, 1
      %p353 = por %p351, %p352
      %p354 = scmp.ne.s32.totalorder %s346, %s349
      %p355 = scmp.eq.s32.totalorder %s27, 0
      %p356 = por %p354, %p355
      %p357 = scmp.ne.s32.totalorder %s346, %s349
      %p358 = scmp.eq.s32.totalorder %s32, 1
      %p359 = por %p357, %p358
      %p360 = scmp.ne.s32.totalorder %s349, %s350
      %p361 = scmp.eq.s32.totalorder %s32, 0
      %p362 = por %p360, %p361
      %p363 = scmp.ne.s32.totalorder %s349, %s350
      %p364 = scmp.eq.s32.totalorder %s33, 1
      %p365 = por %p363, %p364
      %p367 = scmp.ne.s32.totalorder %s350, %s366
      %p368 = scmp.eq.s32.totalorder %s33, 0
      %p369 = por %p367, %p368
      %p370 = scmp.le.s32.totalorder 1, %s27
      %p371 = scmp.lt.s32.totalorder %s27, 3
      %p372 = pnand %p370, %p371
      %p373 = pneg %p372
      // Predicated region
      $region9: #{tpu_custom_call.1} parent=5 // pred_check
        _
      $region10: #{tpu_custom_call.1} parent=5 // pred_check_branch
        %375 = sbr.rel (%p372) target = $region12
      $region11: #{tpu_custom_call.1} parent=5 // pred_region
        %s376 = ssub.s32 %s27, 1
        // Predicated region
        $region13: #{tpu_custom_call.1} parent=11 // pred_check
          %p377 = pneg %p100
        $region14: #{tpu_custom_call.1} parent=11 // pred_check_branch
          %379 = sbr.rel (%p377) target = $region16
        $region15: #{tpu_custom_call.1} parent=11 // pred_region
          _
        $region16: #{tpu_custom_call.1} parent=11 // pred_fallthru
          _
        // Predicated region
        $region17: #{tpu_custom_call.1} parent=11 // pred_check
          %p380 = pneg %p121
        $region18: #{tpu_custom_call.1} parent=11 // pred_check_branch
          %382 = sbr.rel (%p380) target = $region20
        $region19: #{tpu_custom_call.1} parent=11 // pred_region
          _
        $region20: #{tpu_custom_call.1} parent=11 // pred_fallthru
          _
        // Predicated region
        $region21: #{tpu_custom_call.1} parent=11 // pred_check
          %p383 = pneg %p142
        $region22: #{tpu_custom_call.1} parent=11 // pred_check_branch
          %385 = sbr.rel (%p383) target = $region24
        $region23: #{tpu_custom_call.1} parent=11 // pred_region
          _
        $region24: #{tpu_custom_call.1} parent=11 // pred_fallthru
          _
        // Predicated region
        $region25: #{tpu_custom_call.1} parent=11 // pred_check
          %p386 = pneg %p163
        $region26: #{tpu_custom_call.1} parent=11 // pred_check_branch
          %388 = sbr.rel (%p386) target = $region28
        $region27: #{tpu_custom_call.1} parent=11 // pred_region
          _
        $region28: #{tpu_custom_call.1} parent=11 // pred_fallthru
          _
        // Predicated region
        $region29: #{tpu_custom_call.1} parent=11 // pred_check
          %p389 = pneg %p184
        $region30: #{tpu_custom_call.1} parent=11 // pred_check_branch
          %391 = sbr.rel (%p389) target = $region32
        $region31: #{tpu_custom_call.1} parent=11 // pred_region
          _
        $region32: #{tpu_custom_call.1} parent=11 // pred_fallthru
          _
        // Predicated region
        $region33: #{tpu_custom_call.1} parent=11 // pred_check
          %p392 = pneg %p205
        $region34: #{tpu_custom_call.1} parent=11 // pred_check_branch
          %394 = sbr.rel (%p392) target = $region36
        $region35: #{tpu_custom_call.1} parent=11 // pred_region
          _
        $region36: #{tpu_custom_call.1} parent=11 // pred_fallthru
          _
        // Predicated region
        $region37: #{tpu_custom_call.1} parent=11 // pred_check
          %p395 = pneg %p226
        $region38: #{tpu_custom_call.1} parent=11 // pred_check_branch
          %397 = sbr.rel (%p395) target = $region40
        $region39: #{tpu_custom_call.1} parent=11 // pred_region
          _
        $region40: #{tpu_custom_call.1} parent=11 // pred_fallthru
          _
        // Predicated region
        $region41: #{tpu_custom_call.1} parent=11 // pred_check
          %p398 = pneg %p247
        $region42: #{tpu_custom_call.1} parent=11 // pred_check_branch
          %400 = sbr.rel (%p398) target = $region44
        $region43: #{tpu_custom_call.1} parent=11 // pred_region
          _
        $region44: #{tpu_custom_call.1} parent=11 // pred_fallthru
          _
        // Predicated region
        $region45: #{tpu_custom_call.1} parent=11 // pred_check
          %p401 = pneg %p268
        $region46: #{tpu_custom_call.1} parent=11 // pred_check_branch
          %403 = sbr.rel (%p401) target = $region48
        $region47: #{tpu_custom_call.1} parent=11 // pred_region
          _
        $region48: #{tpu_custom_call.1} parent=11 // pred_fallthru
          _
        // Predicated region
        $region49: #{tpu_custom_call.1} parent=11 // pred_check
          %p404 = pneg %p289
        $region50: #{tpu_custom_call.1} parent=11 // pred_check_branch
          %406 = sbr.rel (%p404) target = $region52
        $region51: #{tpu_custom_call.1} parent=11 // pred_region
          _
        $region52: #{tpu_custom_call.1} parent=11 // pred_fallthru
          _
        // Predicated region
        $region53: #{tpu_custom_call.1} parent=11 // pred_check
          %p407 = pneg %p310
        $region54: #{tpu_custom_call.1} parent=11 // pred_check_branch
          %409 = sbr.rel (%p407) target = $region56
        $region55: #{tpu_custom_call.1} parent=11 // pred_region
          _
        $region56: #{tpu_custom_call.1} parent=11 // pred_fallthru
          _
      $region12: #{tpu_custom_call.1} parent=5 // pred_fallthru
        _
      %p410 = scmp.lt.s32.totalorder %s27, 2
      // Predicated region
      $region57: #{tpu_custom_call.1} parent=5 // pred_check
        %p411 = pneg %p410
      $region58: #{tpu_custom_call.1} parent=5 // pred_check_branch
        %413 = sbr.rel (%p411) target = $region60
      $region59: #{tpu_custom_call.1} parent=5 // pred_region
        // Predicated region
        $region61: #{tpu_custom_call.1} parent=59 // pred_check
          %p414 = pneg %p47
        $region62: #{tpu_custom_call.1} parent=59 // pred_check_branch
          %416 = sbr.rel (%p414) target = $region64
        $region63: #{tpu_custom_call.1} parent=59 // pred_region
          %p417 = scmp.lt.s32.totalorder %s27, 1
          %s418 = scalar_select %p417, %s27, 1
          %s419 = smul.addr %s418, 8
          %s420 = scalar_lea.vmem %s0, %s419
        $region64: #{tpu_custom_call.1} parent=59 // pred_fallthru
          _
        // Predicated region
        $region65: #{tpu_custom_call.1} parent=59 // pred_check
          %p421 = pneg %p73
        $region66: #{tpu_custom_call.1} parent=59 // pred_check_branch
          %423 = sbr.rel (%p421) target = $region68
        $region67: #{tpu_custom_call.1} parent=59 // pred_region
          %p424 = scmp.lt.s32.totalorder %s27, 1
          %s425 = scalar_select %p424, %s27, 1
          %s426 = smul.addr %s425, 2
          %s427 = smul.addr %s426, 8
          %s428 = scalar_lea.vmem %s1, %s427
        $region68: #{tpu_custom_call.1} parent=59 // pred_fallthru
          _
      $region60: #{tpu_custom_call.1} parent=5 // pred_fallthru
        _
      %p429 = scmp.le.s32.totalorder 1, %s27
      %p430 = scmp.lt.s32.totalorder %s27, 3
      %p431 = pnand %p429, %p430
      %p432 = pneg %p431
      // Predicated region
      $region69: #{tpu_custom_call.1} parent=5 // pred_check
        _
      $region70: #{tpu_custom_call.1} parent=5 // pred_check_branch
        %434 = sbr.rel (%p431) target = $region72
      $region71: #{tpu_custom_call.1} parent=5 // pred_region
        %s435 = ssub.s32 %s27, 1
        %p436 = scmp.lt.s32.totalorder %s32, 1
        %s437 = scalar_select %p436, %s32, 1
        %s438 = smul.addr %s437, 8
        %s439 = scalar_lea.vmem %s0, %s438
        %p440 = pneg %p53
        %p441 = pneg %p50
        %p442 = scmp.lt.s32.totalorder %s32, 1
        %s443 = scalar_select %p442, %s32, 1
        %s444 = smul.addr %s443, 2
        %s445 = smul.addr %s444, 8
        %s446 = scalar_lea.vmem %s1, %s445
        %p447 = pneg %p79
        %p448 = pneg %p76
        %p449 = pneg %p100
        %p450 = pneg %p97
        %p451 = pneg %p121
        %p452 = pneg %p118
        %p453 = pneg %p142
        %p454 = pneg %p139
        %p455 = pneg %p163
        %p456 = pneg %p160
        %p457 = pneg %p184
        %p458 = pneg %p181
        %p459 = pneg %p205
        %p460 = pneg %p202
        %p461 = pneg %p226
        %p462 = pneg %p223
        %p463 = pneg %p247
        %p464 = pneg %p244
        %p465 = pneg %p268
        %p466 = pneg %p265
        %p467 = pneg %p289
        %p468 = pneg %p286
        %p469 = pneg %p310
        %p470 = pneg %p307
        %p471 = pneg %p336
        %p472 = pneg %p333
        %s473 = sand.u32 %s323, 1
        %s474 = scalar_lea.sflag [#allocation3], %s473
        %s475 = sand.u32 %s323, 1
        %s476 = smul.addr %s475, 8
        %s477 = scalar_lea.vmem [#allocation2], %s476
        %p478 = pneg %p362
        %p479 = pneg %p359
        %s480 = sand.u32 %s349, 1
        %s481 = scalar_lea.sflag [#allocation5], %s480
        %s482 = sand.u32 %s349, 1
        %s483 = smul.addr %s482, 8
        %s484 = scalar_lea.vmem [#allocation4], %s483
        %p485 = scmp.lt.s32.totalorder %s32, 1
        %s486 = scalar_select %p485, %s32, 1
        %s487 = smul.addr %s486, 8
        %s488 = scalar_lea.vmem %s0, %s487
        %p489 = scmp.lt.s32.totalorder %s32, 1
        %s490 = scalar_select %p489, %s32, 1
        %s491 = smul.addr %s490, 2
        %s492 = smul.addr %s491, 8
        %s493 = scalar_lea.vmem %s1, %s492
        %v494 = vld [vmem:[%s488] sm:$0xff]
        %v495 = vld [vmem:[%s493] sm:$0xff]
        %v496 = vld [vmem:[%s493 + $0x8] sm:$0xff]
        %v497 = vlaneseq
        %v498 = vshrl.u32 %v497, 7
        %v499 = vlaneseq
        %v500 = vand.u32 %v499, 127
        %vm501 = vcmp.ge.s32.totalorder %v500, %v498
        %v502 = vadd.s32 %v498, 25
        %vm503 = vcmp.lt.s32.totalorder %v500, %v502
        %vm504 = vmand %vm501, %vm503
        %v505 = vsel %vm504, 0.04, 0.0
        %v506 = vld [vmem:[%s2] sm:$0xff]
        %v507 = vld [vmem:[%s2 + $0x8] sm:$0xff]
        %v508 = vld [vmem:[%s2 + $0x10] sm:$0xff]
        %v509 = vld [vmem:[%s2 + $0x18] sm:$0xff]
        %vm510 = vcmask 261120
        %v512 = vsel %vm510, %v494, 0
        %514 = vmatprep.subr.mxu0 0.0
        %515 = vmatpush1.msra.mxu0 %v506
        %516 = vmatprep.subr.mxu0 0.0
        %517 = vmatpush1.msra.mxu0 %v507
        %518 = vmatprep.subr.mxu0 0.0
        %519 = vmatpush1.msra.mxu0 %v508
        %520 = vmatprep.subr.mxu0 0.0
        %521 = vmatpush1.msra.mxu0 %v509
        %522 = vmatprep.subr.mxu0 0.0
        %523 = vmatpush1.msra.mxu0 0.0
        %524 = vmatprep.subr.mxu0 0.0
        %525 = vmatpush1.msra.mxu0 0.0
        %526 = vmatprep.subr.mxu0 0.0
        %527 = vmatpush1.msra.mxu0 0.0
        %528 = vmatprep.subr.mxu0 0.0
        %529 = vmatpush1.msra.mxu0 0.0
        %530 = vmatprep.subr.mxu0 0.0
        %531 = vmatpush1.msra.mxu0 0.0
        %532 = vmatprep.subr.mxu0 0.0
        %533 = vmatpush1.msra.mxu0 0.0
        %534 = vmatprep.subr.mxu0 0.0
        %535 = vmatpush1.msra.mxu0 0.0
        %536 = vmatprep.subr.mxu0 0.0
        %537 = vmatpush1.msra.mxu0 0.0
        %538 = vmatprep.subr.mxu0 0.0
        %539 = vmatpush1.msra.mxu0 0.0
        %540 = vmatprep.subr.mxu0 0.0
        %541 = vmatpush1.msra.mxu0 0.0
        %542 = vmatprep.subr.mxu0 0.0
        %543 = vmatpush1.msra.mxu0 0.0
        %544 = vmatprep.subr.mxu0 0.0
        %545 = vmatpush1.msra.mxu0 0.0
        %546 = vmatprep.subr.mxu0 0.0
        %547 = vmatpush1.msra.mxu0 0.0
        %548 = vmatprep.subr.mxu0 0.0
        %549 = vmatpush1.msra.mxu0 0.0
        %550 = vmatprep.subr.mxu0 0.0
        %551 = vmatpush1.msra.mxu0 0.0
        %552 = vmatprep.subr.mxu0 0.0
        %553 = vmatpush1.msra.mxu0 0.0
        %554 = vmatprep.subr.mxu0 0.0
        %555 = vmatpush1.msra.mxu0 0.0
        %556 = vmatprep.subr.mxu0 0.0
        %557 = vmatpush1.msra.mxu0 0.0
        %558 = vmatprep.subr.mxu0 0.0
        %559 = vmatpush1.msra.mxu0 0.0
        %560 = vmatprep.subr.mxu0 0.0
        %561 = vmatpush1.msra.mxu0 0.0
        %562 = vmatprep.subr.mxu0 0.0
        %563 = vmatpush1.msra.mxu0 0.0
        %564 = vmatprep.subr.mxu0 0.0
        %565 = vmatpush1.msra.mxu0 0.0
        %566 = vmatprep.subr.mxu0 0.0
        %567 = vmatpush1.msra.mxu0 0.0
        %568 = vmatprep.subr.mxu0 0.0
        %569 = vmatpush1.msra.mxu0 0.0
        %570 = vmatprep.subr.mxu0 0.0
        %571 = vmatpush1.msra.mxu0 0.0
        %572 = vmatprep.subr.mxu0 0.0
        %573 = vmatpush1.msra.mxu0 0.0
        %574 = vmatprep.subr.mxu0 0.0
        %575 = vmatpush1.msra.mxu0 0.0
        %576 = vmatprep.subr.mxu0 0.0
        %577 = vmatpush1.msra.mxu0 0.0
        %578 = vmatprep.mubr.f32.mxu0 0.0
        %579 = vmatmul.mubr.f32.gmra.mrb[0].mxu0 %v512
        %v580 = vpop.f32.mrb[0].mxu0
        %v581 = vadd.f32 0.0, %v580
        %v582 = vpop.f32.mrb[0].mxu0
        %583 = vdwg.mxu0
        %v584 = vld [vmem:[%s3] sm:$0xff]
        %v585 = vld [vmem:[%s3 + $0x8] sm:$0xff]
        %v586 = vld [vmem:[%s3 + $0x10] sm:$0xff]
        %v587 = vld [vmem:[%s3 + $0x18] sm:$0xff]
        %588 = vmatprep.subr.mxu0 0.0
        %589 = vmatpush1.msra.mxu0 %v584
        %590 = vmatprep.subr.mxu0 0.0
        %591 = vmatpush1.msra.mxu0 %v585
        %592 = vmatprep.subr.mxu0 0.0
        %593 = vmatpush1.msra.mxu0 %v586
        %594 = vmatprep.subr.mxu0 0.0
        %595 = vmatpush1.msra.mxu0 %v587
        %596 = vmatprep.subr.mxu0 0.0
        %597 = vmatpush1.msra.mxu0 0.0
        %598 = vmatprep.subr.mxu0 0.0
        %599 = vmatpush1.msra.mxu0 0.0
        %600 = vmatprep.subr.mxu0 0.0
        %601 = vmatpush1.msra.mxu0 0.0
        %602 = vmatprep.subr.mxu0 0.0
        %603 = vmatpush1.msra.mxu0 0.0
        %604 = vmatprep.subr.mxu0 0.0
        %605 = vmatpush1.msra.mxu0 0.0
        %606 = vmatprep.subr.mxu0 0.0
        %607 = vmatpush1.msra.mxu0 0.0
        %608 = vmatprep.subr.mxu0 0.0
        %609 = vmatpush1.msra.mxu0 0.0
        %610 = vmatprep.subr.mxu0 0.0
        %611 = vmatpush1.msra.mxu0 0.0
        %612 = vmatprep.subr.mxu0 0.0
        %613 = vmatpush1.msra.mxu0 0.0
        %614 = vmatprep.subr.mxu0 0.0
        %615 = vmatpush1.msra.mxu0 0.0
        %616 = vmatprep.subr.mxu0 0.0
        %617 = vmatpush1.msra.mxu0 0.0
        %618 = vmatprep.subr.mxu0 0.0
        %619 = vmatpush1.msra.mxu0 0.0
        %620 = vmatprep.subr.mxu0 0.0
        %621 = vmatpush1.msra.mxu0 0.0
        %622 = vmatprep.subr.mxu0 0.0
        %623 = vmatpush1.msra.mxu0 0.0
        %624 = vmatprep.subr.mxu0 0.0
        %625 = vmatpush1.msra.mxu0 0.0
        %626 = vmatprep.subr.mxu0 0.0
        %627 = vmatpush1.msra.mxu0 0.0
        %628 = vmatprep.subr.mxu0 0.0
        %629 = vmatpush1.msra.mxu0 0.0
        %630 = vmatprep.subr.mxu0 0.0
        %631 = vmatpush1.msra.mxu0 0.0
        %632 = vmatprep.subr.mxu0 0.0
        %633 = vmatpush1.msra.mxu0 0.0
        %634 = vmatprep.subr.mxu0 0.0
        %635 = vmatpush1.msra.mxu0 0.0
        %636 = vmatprep.subr.mxu0 0.0
        %637 = vmatpush1.msra.mxu0 0.0
        %638 = vmatprep.subr.mxu0 0.0
        %639 = vmatpush1.msra.mxu0 0.0
        %640 = vmatprep.subr.mxu0 0.0
        %641 = vmatpush1.msra.mxu0 0.0
        %642 = vmatprep.subr.mxu0 0.0
        %643 = vmatpush1.msra.mxu0 0.0
        %644 = vmatprep.subr.mxu0 0.0
        %645 = vmatpush1.msra.mxu0 0.0
        %646 = vmatprep.subr.mxu0 0.0
        %647 = vmatpush1.msra.mxu0 0.0
        %648 = vmatprep.subr.mxu0 0.0
        %649 = vmatpush1.msra.mxu0 0.0
        %650 = vmatprep.subr.mxu0 0.0
        %651 = vmatpush1.msra.mxu0 0.0
        %652 = vmatprep.mubr.f32.mxu0 0.0
        %653 = vmatmul.mubr.f32.gmra.mrb[0].mxu0 %v512
        %v654 = vpop.f32.mrb[0].mxu0
        %v655 = vadd.f32 0.0, %v654
        %v656 = vpop.f32.mrb[0].mxu0
        %657 = vdwg.mxu0
        %v658 = vld [vmem:[%s4] sm:$0xff]
        %v659 = vld [vmem:[%s4 + $0x8] sm:$0xff]
        %v660 = vld [vmem:[%s4 + $0x10] sm:$0xff]
        %v661 = vld [vmem:[%s4 + $0x18] sm:$0xff]
        %662 = vmatprep.subr.mxu0 0.0
        %663 = vmatpush1.msra.mxu0 %v658
        %664 = vmatprep.subr.mxu0 0.0
        %665 = vmatpush1.msra.mxu0 %v659
        %666 = vmatprep.subr.mxu0 0.0
        %667 = vmatpush1.msra.mxu0 %v660
        %668 = vmatprep.subr.mxu0 0.0
        %669 = vmatpush1.msra.mxu0 %v661
        %670 = vmatprep.subr.mxu0 0.0
        %671 = vmatpush1.msra.mxu0 0.0
        %672 = vmatprep.subr.mxu0 0.0
        %673 = vmatpush1.msra.mxu0 0.0
        %674 = vmatprep.subr.mxu0 0.0
        %675 = vmatpush1.msra.mxu0 0.0
        %676 = vmatprep.subr.mxu0 0.0
        %677 = vmatpush1.msra.mxu0 0.0
        %678 = vmatprep.subr.mxu0 0.0
        %679 = vmatpush1.msra.mxu0 0.0
        %680 = vmatprep.subr.mxu0 0.0
        %681 = vmatpush1.msra.mxu0 0.0
        %682 = vmatprep.subr.mxu0 0.0
        %683 = vmatpush1.msra.mxu0 0.0
        %684 = vmatprep.subr.mxu0 0.0
        %685 = vmatpush1.msra.mxu0 0.0
        %686 = vmatprep.subr.mxu0 0.0
        %687 = vmatpush1.msra.mxu0 0.0
        %688 = vmatprep.subr.mxu0 0.0
        %689 = vmatpush1.msra.mxu0 0.0
        %690 = vmatprep.subr.mxu0 0.0
        %691 = vmatpush1.msra.mxu0 0.0
        %692 = vmatprep.subr.mxu0 0.0
        %693 = vmatpush1.msra.mxu0 0.0
        %694 = vmatprep.subr.mxu0 0.0
        %695 = vmatpush1.msra.mxu0 0.0
        %696 = vmatprep.subr.mxu0 0.0
        %697 = vmatpush1.msra.mxu0 0.0
        %698 = vmatprep.subr.mxu0 0.0
        %699 = vmatpush1.msra.mxu0 0.0
        %700 = vmatprep.subr.mxu0 0.0
        %701 = vmatpush1.msra.mxu0 0.0
        %702 = vmatprep.subr.mxu0 0.0
        %703 = vmatpush1.msra.mxu0 0.0
        %704 = vmatprep.subr.mxu0 0.0
        %705 = vmatpush1.msra.mxu0 0.0
        %706 = vmatprep.subr.mxu0 0.0
        %707 = vmatpush1.msra.mxu0 0.0
        %708 = vmatprep.subr.mxu0 0.0
        %709 = vmatpush1.msra.mxu0 0.0
        %710 = vmatprep.subr.mxu0 0.0
        %711 = vmatpush1.msra.mxu0 0.0
        %712 = vmatprep.subr.mxu0 0.0
        %713 = vmatpush1.msra.mxu0 0.0
        %714 = vmatprep.subr.mxu0 0.0
        %715 = vmatpush1.msra.mxu0 0.0
        %716 = vmatprep.subr.mxu0 0.0
        %717 = vmatpush1.msra.mxu0 0.0
        %718 = vmatprep.subr.mxu0 0.0
        %719 = vmatpush1.msra.mxu0 0.0
        %720 = vmatprep.subr.mxu0 0.0
        %721 = vmatpush1.msra.mxu0 0.0
        %722 = vmatprep.subr.mxu0 0.0
        %723 = vmatpush1.msra.mxu0 0.0
        %724 = vmatprep.subr.mxu0 0.0
        %725 = vmatpush1.msra.mxu0 0.0
        %726 = vmatprep.mubr.f32.mxu0 0.0
        %727 = vmatmul.mubr.f32.gmra.mrb[0].mxu0 %v512
        %v728 = vpop.f32.mrb[0].mxu0
        %v729 = vadd.f32 0.0, %v728
        %v730 = vpop.f32.mrb[0].mxu0
        %731 = vdwg.mxu0
        %vm732 = vcmask 64512
        %v734 = vsel %vm732, %v581, 0
        %v737 = vsel %vm732, %v655, 0
        %739 = vmatprep.subr.mxu0 0.0
        %740 = vmatpush1.xpose.msra.mxu0 %v737
        %741 = vmatprep.subr.mxu0 0.0
        %742 = vmatpush1.xpose.msra.mxu0 0.0
        %743 = vmatprep.subr.mxu0 0.0
        %744 = vmatpush1.xpose.msra.mxu0 0.0
        %745 = vmatprep.subr.mxu0 0.0
        %746 = vmatpush1.xpose.msra.mxu0 0.0
        %747 = vmatprep.subr.mxu0 0.0
        %748 = vmatpush1.xpose.msra.mxu0 0.0
        %749 = vmatprep.subr.mxu0 0.0
        %750 = vmatpush1.xpose.msra.mxu0 0.0
        %751 = vmatprep.subr.mxu0 0.0
        %752 = vmatpush1.xpose.msra.mxu0 0.0
        %753 = vmatprep.subr.mxu0 0.0
        %754 = vmatpush1.xpose.msra.mxu0 0.0
        %755 = vmatprep.subr.mxu0 0.0
        %756 = vmatpush1.xpose.msra.mxu0 0.0
        %757 = vmatprep.subr.mxu0 0.0
        %758 = vmatpush1.xpose.msra.mxu0 0.0
        %759 = vmatprep.subr.mxu0 0.0
        %760 = vmatpush1.xpose.msra.mxu0 0.0
        %761 = vmatprep.subr.mxu0 0.0
        %762 = vmatpush1.xpose.msra.mxu0 0.0
        %763 = vmatprep.subr.mxu0 0.0
        %764 = vmatpush1.xpose.msra.mxu0 0.0
        %765 = vmatprep.subr.mxu0 0.0
        %766 = vmatpush1.xpose.msra.mxu0 0.0
        %767 = vmatprep.subr.mxu0 0.0
        %768 = vmatpush1.xpose.msra.mxu0 0.0
        %769 = vmatprep.subr.mxu0 0.0
        %770 = vmatpush1.xpose.msra.mxu0 0.0
        %771 = vmatprep.subr.mxu0 0.0
        %772 = vmatpush1.xpose.msra.mxu0 0.0
        %773 = vmatprep.subr.mxu0 0.0
        %774 = vmatpush1.xpose.msra.mxu0 0.0
        %775 = vmatprep.subr.mxu0 0.0
        %776 = vmatpush1.xpose.msra.mxu0 0.0
        %777 = vmatprep.subr.mxu0 0.0
        %778 = vmatpush1.xpose.msra.mxu0 0.0
        %779 = vmatprep.subr.mxu0 0.0
        %780 = vmatpush1.xpose.msra.mxu0 0.0
        %781 = vmatprep.subr.mxu0 0.0
        %782 = vmatpush1.xpose.msra.mxu0 0.0
        %783 = vmatprep.subr.mxu0 0.0
        %784 = vmatpush1.xpose.msra.mxu0 0.0
        %785 = vmatprep.subr.mxu0 0.0
        %786 = vmatpush1.xpose.msra.mxu0 0.0
        %787 = vmatprep.subr.mxu0 0.0
        %788 = vmatpush1.xpose.msra.mxu0 0.0
        %789 = vmatprep.subr.mxu0 0.0
        %790 = vmatpush1.xpose.msra.mxu0 0.0
        %791 = vmatprep.subr.mxu0 0.0
        %792 = vmatpush1.xpose.msra.mxu0 0.0
        %793 = vmatprep.subr.mxu0 0.0
        %794 = vmatpush1.xpose.msra.mxu0 0.0
        %795 = vmatprep.subr.mxu0 0.0
        %796 = vmatpush1.xpose.msra.mxu0 0.0
        %797 = vmatprep.subr.mxu0 0.0
        %798 = vmatpush1.xpose.msra.mxu0 0.0
        %799 = vmatprep.subr.mxu0 0.0
        %800 = vmatpush1.xpose.msra.mxu0 0.0
        %801 = vmatprep.subr.mxu0 0.0
        %802 = vmatpush1.xpose.msra.mxu0 0.0
        %803 = vmatprep.mubr.f32.mxu0 0.0
        %804 = vmatmul.mubr.f32.gmra.mrb[0].mxu0 %v734
        %v805 = vpop.f32.mrb[0].mxu0
        %v806 = vadd.f32 0.0, %v805
        %v807 = vpop.f32.mrb[0].mxu0
        %808 = vdwg.mxu0
        %v809 = vmul.f32 %v806, 0.35355338
        %v810 = vsel %vm732, %v809, -inf
        %811 = vmax.xlane.f32.xlu0 %v810
        %v812 = vpop.xlane.xlu0 %811
        %v813 = vsub.f32 %v809, %v812
        %v814 = vmul.f32 %v813, 1.442695
        %v815 = vpow.pop %v814
        %v816 = vsel %vm732, %v815, 0.0
        %817 = vadd.xlane.f32.xlu0 %v816
        %v818 = vpop.xlane.xlu0 %817
        %v819 = vrcp.pop %v818
        %v820 = vmul.f32 %v815, %v819
        %v822 = vsel %vm732, %v820, 0
        %824 = vmatprep.subr.mxu0 0.0
        %825 = vmatpush1.msra.mxu0 %v729
        %826 = vmatprep.subr.mxu0 0.0
        %827 = vmatpush1.msra.mxu0 0.0
        %828 = vmatprep.subr.mxu0 0.0
        %829 = vmatpush1.msra.mxu0 0.0
        %830 = vmatprep.subr.mxu0 0.0
        %831 = vmatpush1.msra.mxu0 0.0
        %832 = vmatprep.subr.mxu0 0.0
        %833 = vmatpush1.msra.mxu0 0.0
        %834 = vmatprep.subr.mxu0 0.0
        %835 = vmatpush1.msra.mxu0 0.0
        %836 = vmatprep.subr.mxu0 0.0
        %837 = vmatpush1.msra.mxu0 0.0
        %838 = vmatprep.subr.mxu0 0.0
        %839 = vmatpush1.msra.mxu0 0.0
        %840 = vmatprep.subr.mxu0 0.0
        %841 = vmatpush1.msra.mxu0 0.0
        %842 = vmatprep.subr.mxu0 0.0
        %843 = vmatpush1.msra.mxu0 0.0
        %844 = vmatprep.subr.mxu0 0.0
        %845 = vmatpush1.msra.mxu0 0.0
        %846 = vmatprep.subr.mxu0 0.0
        %847 = vmatpush1.msra.mxu0 0.0
        %848 = vmatprep.subr.mxu0 0.0
        %849 = vmatpush1.msra.mxu0 0.0
        %850 = vmatprep.subr.mxu0 0.0
        %851 = vmatpush1.msra.mxu0 0.0
        %852 = vmatprep.subr.mxu0 0.0
        %853 = vmatpush1.msra.mxu0 0.0
        %854 = vmatprep.subr.mxu0 0.0
        %855 = vmatpush1.msra.mxu0 0.0
        %856 = vmatprep.subr.mxu0 0.0
        %857 = vmatpush1.msra.mxu0 0.0
        %858 = vmatprep.subr.mxu0 0.0
        %859 = vmatpush1.msra.mxu0 0.0
        %860 = vmatprep.subr.mxu0 0.0
        %861 = vmatpush1.msra.mxu0 0.0
        %862 = vmatprep.subr.mxu0 0.0
        %863 = vmatpush1.msra.mxu0 0.0
        %864 = vmatprep.subr.mxu0 0.0
        %865 = vmatpush1.msra.mxu0 0.0
        %866 = vmatprep.subr.mxu0 0.0
        %867 = vmatpush1.msra.mxu0 0.0
        %868 = vmatprep.subr.mxu0 0.0
        %869 = vmatpush1.msra.mxu0 0.0
        %870 = vmatprep.subr.mxu0 0.0
        %871 = vmatpush1.msra.mxu0 0.0
        %872 = vmatprep.subr.mxu0 0.0
        %873 = vmatpush1.msra.mxu0 0.0
        %874 = vmatprep.subr.mxu0 0.0
        %875 = vmatpush1.msra.mxu0 0.0
        %876 = vmatprep.subr.mxu0 0.0
        %877 = vmatpush1.msra.mxu0 0.0
        %878 = vmatprep.subr.mxu0 0.0
        %879 = vmatpush1.msra.mxu0 0.0
        %880 = vmatprep.subr.mxu0 0.0
        %881 = vmatpush1.msra.mxu0 0.0
        %882 = vmatprep.subr.mxu0 0.0
        %883 = vmatpush1.msra.mxu0 0.0
        %884 = vmatprep.subr.mxu0 0.0
        %885 = vmatpush1.msra.mxu0 0.0
        %886 = vmatprep.subr.mxu0 0.0
        %887 = vmatpush1.msra.mxu0 0.0
        %888 = vmatprep.mubr.f32.mxu0 0.0
        %889 = vmatmul.mubr.f32.gmra.mrb[0].mxu0 %v822
        %v890 = vpop.f32.mrb[0].mxu0
        %v891 = vadd.f32 0.0, %v890
        %v892 = vpop.f32.mrb[0].mxu0
        %893 = vdwg.mxu0
        %v894 = vld [vmem:[%s5] sm:$0xff]
        %s895 = scalar_lea.vmem %s2, 32
        %v896 = vld [vmem:[%s895] sm:$0xff]
        %v897 = vld [vmem:[%s895 + $0x8] sm:$0xff]
        %v898 = vld [vmem:[%s895 + $0x10] sm:$0xff]
        %v899 = vld [vmem:[%s895 + $0x18] sm:$0xff]
        %900 = vmatprep.subr.mxu0 0.0
        %901 = vmatpush1.msra.mxu0 %v896
        %902 = vmatprep.subr.mxu0 0.0
        %903 = vmatpush1.msra.mxu0 %v897
        %904 = vmatprep.subr.mxu0 0.0
        %905 = vmatpush1.msra.mxu0 %v898
        %906 = vmatprep.subr.mxu0 0.0
        %907 = vmatpush1.msra.mxu0 %v899
        %908 = vmatprep.subr.mxu0 0.0
        %909 = vmatpush1.msra.mxu0 0.0
        %910 = vmatprep.subr.mxu0 0.0
        %911 = vmatpush1.msra.mxu0 0.0
        %912 = vmatprep.subr.mxu0 0.0
        %913 = vmatpush1.msra.mxu0 0.0
        %914 = vmatprep.subr.mxu0 0.0
        %915 = vmatpush1.msra.mxu0 0.0
        %916 = vmatprep.subr.mxu0 0.0
        %917 = vmatpush1.msra.mxu0 0.0
        %918 = vmatprep.subr.mxu0 0.0
        %919 = vmatpush1.msra.mxu0 0.0
        %920 = vmatprep.subr.mxu0 0.0
        %921 = vmatpush1.msra.mxu0 0.0
        %922 = vmatprep.subr.mxu0 0.0
        %923 = vmatpush1.msra.mxu0 0.0
        %924 = vmatprep.subr.mxu0 0.0
        %925 = vmatpush1.msra.mxu0 0.0
        %926 = vmatprep.subr.mxu0 0.0
        %927 = vmatpush1.msra.mxu0 0.0
        %928 = vmatprep.subr.mxu0 0.0
        %929 = vmatpush1.msra.mxu0 0.0
        %930 = vmatprep.subr.mxu0 0.0
        %931 = vmatpush1.msra.mxu0 0.0
        %932 = vmatprep.subr.mxu0 0.0
        %933 = vmatpush1.msra.mxu0 0.0
        %934 = vmatprep.subr.mxu0 0.0
        %935 = vmatpush1.msra.mxu0 0.0
        %936 = vmatprep.subr.mxu0 0.0
        %937 = vmatpush1.msra.mxu0 0.0
        %938 = vmatprep.subr.mxu0 0.0
        %939 = vmatpush1.msra.mxu0 0.0
        %940 = vmatprep.subr.mxu0 0.0
        %941 = vmatpush1.msra.mxu0 0.0
        %942 = vmatprep.subr.mxu0 0.0
        %943 = vmatpush1.msra.mxu0 0.0
        %944 = vmatprep.subr.mxu0 0.0
        %945 = vmatpush1.msra.mxu0 0.0
        %946 = vmatprep.subr.mxu0 0.0
        %947 = vmatpush1.msra.mxu0 0.0
        %948 = vmatprep.subr.mxu0 0.0
        %949 = vmatpush1.msra.mxu0 0.0
        %950 = vmatprep.subr.mxu0 0.0
        %951 = vmatpush1.msra.mxu0 0.0
        %952 = vmatprep.subr.mxu0 0.0
        %953 = vmatpush1.msra.mxu0 0.0
        %954 = vmatprep.subr.mxu0 0.0
        %955 = vmatpush1.msra.mxu0 0.0
        %956 = vmatprep.subr.mxu0 0.0
        %957 = vmatpush1.msra.mxu0 0.0
        %958 = vmatprep.subr.mxu0 0.0
        %959 = vmatpush1.msra.mxu0 0.0
        %960 = vmatprep.subr.mxu0 0.0
        %961 = vmatpush1.msra.mxu0 0.0
        %962 = vmatprep.subr.mxu0 0.0
        %963 = vmatpush1.msra.mxu0 0.0
        %964 = vmatprep.mubr.f32.mxu0 0.0
        %965 = vmatmul.mubr.f32.gmra.mrb[0].mxu0 %v512
        %v966 = vpop.f32.mrb[0].mxu0
        %v967 = vadd.f32 0.0, %v966
        %v968 = vpop.f32.mrb[0].mxu0
        %969 = vdwg.mxu0
        %s970 = scalar_lea.vmem %s3, 32
        %v971 = vld [vmem:[%s970] sm:$0xff]
        %v972 = vld [vmem:[%s970 + $0x8] sm:$0xff]
        %v973 = vld [vmem:[%s970 + $0x10] sm:$0xff]
        %v974 = vld [vmem:[%s970 + $0x18] sm:$0xff]
        %975 = vmatprep.subr.mxu0 0.0
        %976 = vmatpush1.msra.mxu0 %v971
        %977 = vmatprep.subr.mxu0 0.0
        %978 = vmatpush1.msra.mxu0 %v972
        %979 = vmatprep.subr.mxu0 0.0
        %980 = vmatpush1.msra.mxu0 %v973
        %981 = vmatprep.subr.mxu0 0.0
        %982 = vmatpush1.msra.mxu0 %v974
        %983 = vmatprep.subr.mxu0 0.0
        %984 = vmatpush1.msra.mxu0 0.0
        %985 = vmatprep.subr.mxu0 0.0
        %986 = vmatpush1.msra.mxu0 0.0
        %987 = vmatprep.subr.mxu0 0.0
        %988 = vmatpush1.msra.mxu0 0.0
        %989 = vmatprep.subr.mxu0 0.0
        %990 = vmatpush1.msra.mxu0 0.0
        %991 = vmatprep.subr.mxu0 0.0
        %992 = vmatpush1.msra.mxu0 0.0
        %993 = vmatprep.subr.mxu0 0.0
        %994 = vmatpush1.msra.mxu0 0.0
        %995 = vmatprep.subr.mxu0 0.0
        %996 = vmatpush1.msra.mxu0 0.0
        %997 = vmatprep.subr.mxu0 0.0
        %998 = vmatpush1.msra.mxu0 0.0
        %999 = vmatprep.subr.mxu0 0.0
        %1000 = vmatpush1.msra.mxu0 0.0
        %1001 = vmatprep.subr.mxu0 0.0
        %1002 = vmatpush1.msra.mxu0 0.0
        %1003 = vmatprep.subr.mxu0 0.0
        %1004 = vmatpush1.msra.mxu0 0.0
        %1005 = vmatprep.subr.mxu0 0.0
        %1006 = vmatpush1.msra.mxu0 0.0
        %1007 = vmatprep.subr.mxu0 0.0
        %1008 = vmatpush1.msra.mxu0 0.0
        %1009 = vmatprep.subr.mxu0 0.0
        %1010 = vmatpush1.msra.mxu0 0.0
        %1011 = vmatprep.subr.mxu0 0.0
        %1012 = vmatpush1.msra.mxu0 0.0
        %1013 = vmatprep.subr.mxu0 0.0
        %1014 = vmatpush1.msra.mxu0 0.0
        %1015 = vmatprep.subr.mxu0 0.0
        %1016 = vmatpush1.msra.mxu0 0.0
        %1017 = vmatprep.subr.mxu0 0.0
        %1018 = vmatpush1.msra.mxu0 0.0
        %1019 = vmatprep.subr.mxu0 0.0
        %1020 = vmatpush1.msra.mxu0 0.0
        %1021 = vmatprep.subr.mxu0 0.0
        %1022 = vmatpush1.msra.mxu0 0.0
        %1023 = vmatprep.subr.mxu0 0.0
        %1024 = vmatpush1.msra.mxu0 0.0
        %1025 = vmatprep.subr.mxu0 0.0
        %1026 = vmatpush1.msra.mxu0 0.0
        %1027 = vmatprep.subr.mxu0 0.0
        %1028 = vmatpush1.msra.mxu0 0.0
        %1029 = vmatprep.subr.mxu0 0.0
        %1030 = vmatpush1.msra.mxu0 0.0
        %1031 = vmatprep.subr.mxu0 0.0
        %1032 = vmatpush1.msra.mxu0 0.0
        %1033 = vmatprep.subr.mxu0 0.0
        %1034 = vmatpush1.msra.mxu0 0.0
        %1035 = vmatprep.subr.mxu0 0.0
        %1036 = vmatpush1.msra.mxu0 0.0
        %1037 = vmatprep.subr.mxu0 0.0
        %1038 = vmatpush1.msra.mxu0 0.0
        %1039 = vmatprep.mubr.f32.mxu0 0.0
        %1040 = vmatmul.mubr.f32.gmra.mrb[0].mxu0 %v512
        %v1041 = vpop.f32.mrb[0].mxu0
        %v1042 = vadd.f32 0.0, %v1041
        %v1043 = vpop.f32.mrb[0].mxu0
        %1044 = vdwg.mxu0
        %s1045 = scalar_lea.vmem %s4, 32
        %v1046 = vld [vmem:[%s1045] sm:$0xff]
        %v1047 = vld [vmem:[%s1045 + $0x8] sm:$0xff]
        %v1048 = vld [vmem:[%s1045 + $0x10] sm:$0xff]
        %v1049 = vld [vmem:[%s1045 + $0x18] sm:$0xff]
        %1050 = vmatprep.subr.mxu0 0.0
        %1051 = vmatpush1.msra.mxu0 %v1046
        %1052 = vmatprep.subr.mxu0 0.0
        %1053 = vmatpush1.msra.mxu0 %v1047
        %1054 = vmatprep.subr.mxu0 0.0
        %1055 = vmatpush1.msra.mxu0 %v1048
        %1056 = vmatprep.subr.mxu0 0.0
        %1057 = vmatpush1.msra.mxu0 %v1049
        %1058 = vmatprep.subr.mxu0 0.0
        %1059 = vmatpush1.msra.mxu0 0.0
        %1060 = vmatprep.subr.mxu0 0.0
        %1061 = vmatpush1.msra.mxu0 0.0
        %1062 = vmatprep.subr.mxu0 0.0
        %1063 = vmatpush1.msra.mxu0 0.0
        %1064 = vmatprep.subr.mxu0 0.0
        %1065 = vmatpush1.msra.mxu0 0.0
        %1066 = vmatprep.subr.mxu0 0.0
        %1067 = vmatpush1.msra.mxu0 0.0
        %1068 = vmatprep.subr.mxu0 0.0
        %1069 = vmatpush1.msra.mxu0 0.0
        %1070 = vmatprep.subr.mxu0 0.0
        %1071 = vmatpush1.msra.mxu0 0.0
        %1072 = vmatprep.subr.mxu0 0.0
        %1073 = vmatpush1.msra.mxu0 0.0
        %1074 = vmatprep.subr.mxu0 0.0
        %1075 = vmatpush1.msra.mxu0 0.0
        %1076 = vmatprep.subr.mxu0 0.0
        %1077 = vmatpush1.msra.mxu0 0.0
        %1078 = vmatprep.subr.mxu0 0.0
        %1079 = vmatpush1.msra.mxu0 0.0
        %1080 = vmatprep.subr.mxu0 0.0
        %1081 = vmatpush1.msra.mxu0 0.0
        %1082 = vmatprep.subr.mxu0 0.0
        %1083 = vmatpush1.msra.mxu0 0.0
        %1084 = vmatprep.subr.mxu0 0.0
        %1085 = vmatpush1.msra.mxu0 0.0
        %1086 = vmatprep.subr.mxu0 0.0
        %1087 = vmatpush1.msra.mxu0 0.0
        %1088 = vmatprep.subr.mxu0 0.0
        %1089 = vmatpush1.msra.mxu0 0.0
        %1090 = vmatprep.subr.mxu0 0.0
        %1091 = vmatpush1.msra.mxu0 0.0
        %1092 = vmatprep.subr.mxu0 0.0
        %1093 = vmatpush1.msra.mxu0 0.0
        %1094 = vmatprep.subr.mxu0 0.0
        %1095 = vmatpush1.msra.mxu0 0.0
        %1096 = vmatprep.subr.mxu0 0.0
        %1097 = vmatpush1.msra.mxu0 0.0
        %1098 = vmatprep.subr.mxu0 0.0
        %1099 = vmatpush1.msra.mxu0 0.0
        %1100 = vmatprep.subr.mxu0 0.0
        %1101 = vmatpush1.msra.mxu0 0.0
        %1102 = vmatprep.subr.mxu0 0.0
        %1103 = vmatpush1.msra.mxu0 0.0
        %1104 = vmatprep.subr.mxu0 0.0
        %1105 = vmatpush1.msra.mxu0 0.0
        %1106 = vmatprep.subr.mxu0 0.0
        %1107 = vmatpush1.msra.mxu0 0.0
        %1108 = vmatprep.subr.mxu0 0.0
        %1109 = vmatpush1.msra.mxu0 0.0
        %1110 = vmatprep.subr.mxu0 0.0
        %1111 = vmatpush1.msra.mxu0 0.0
        %1112 = vmatprep.subr.mxu0 0.0
        %1113 = vmatpush1.msra.mxu0 0.0
        %1114 = vmatprep.mubr.f32.mxu0 0.0
        %1115 = vmatmul.mubr.f32.gmra.mrb[0].mxu0 %v512
        %v1116 = vpop.f32.mrb[0].mxu0
        %v1117 = vadd.f32 0.0, %v1116
        %v1118 = vpop.f32.mrb[0].mxu0
        %1119 = vdwg.mxu0
        %v1121 = vsel %vm732, %v967, 0
        %v1124 = vsel %vm732, %v1042, 0
        %1126 = vmatprep.subr.mxu0 0.0
        %1127 = vmatpush1.xpose.msra.mxu0 %v1124
        %1128 = vmatprep.subr.mxu0 0.0
        %1129 = vmatpush1.xpose.msra.mxu0 0.0
        %1130 = vmatprep.subr.mxu0 0.0
        %1131 = vmatpush1.xpose.msra.mxu0 0.0
        %1132 = vmatprep.subr.mxu0 0.0
        %1133 = vmatpush1.xpose.msra.mxu0 0.0
        %1134 = vmatprep.subr.mxu0 0.0
        %1135 = vmatpush1.xpose.msra.mxu0 0.0
        %1136 = vmatprep.subr.mxu0 0.0
        %1137 = vmatpush1.xpose.msra.mxu0 0.0
        %1138 = vmatprep.subr.mxu0 0.0
        %1139 = vmatpush1.xpose.msra.mxu0 0.0
        %1140 = vmatprep.subr.mxu0 0.0
        %1141 = vmatpush1.xpose.msra.mxu0 0.0
        %1142 = vmatprep.subr.mxu0 0.0
        %1143 = vmatpush1.xpose.msra.mxu0 0.0
        %1144 = vmatprep.subr.mxu0 0.0
        %1145 = vmatpush1.xpose.msra.mxu0 0.0
        %1146 = vmatprep.subr.mxu0 0.0
        %1147 = vmatpush1.xpose.msra.mxu0 0.0
        %1148 = vmatprep.subr.mxu0 0.0
        %1149 = vmatpush1.xpose.msra.mxu0 0.0
        %1150 = vmatprep.subr.mxu0 0.0
        %1151 = vmatpush1.xpose.msra.mxu0 0.0
        %1152 = vmatprep.subr.mxu0 0.0
        %1153 = vmatpush1.xpose.msra.mxu0 0.0
        %1154 = vmatprep.subr.mxu0 0.0
        %1155 = vmatpush1.xpose.msra.mxu0 0.0
        %1156 = vmatprep.subr.mxu0 0.0
        %1157 = vmatpush1.xpose.msra.mxu0 0.0
        %1158 = vmatprep.subr.mxu0 0.0
        %1159 = vmatpush1.xpose.msra.mxu0 0.0
        %1160 = vmatprep.subr.mxu0 0.0
        %1161 = vmatpush1.xpose.msra.mxu0 0.0
        %1162 = vmatprep.subr.mxu0 0.0
        %1163 = vmatpush1.xpose.msra.mxu0 0.0
        %1164 = vmatprep.subr.mxu0 0.0
        %1165 = vmatpush1.xpose.msra.mxu0 0.0
        %1166 = vmatprep.subr.mxu0 0.0
        %1167 = vmatpush1.xpose.msra.mxu0 0.0
        %1168 = vmatprep.subr.mxu0 0.0
        %1169 = vmatpush1.xpose.msra.mxu0 0.0
        %1170 = vmatprep.subr.mxu0 0.0
        %1171 = vmatpush1.xpose.msra.mxu0 0.0
        %1172 = vmatprep.subr.mxu0 0.0
        %1173 = vmatpush1.xpose.msra.mxu0 0.0
        %1174 = vmatprep.subr.mxu0 0.0
        %1175 = vmatpush1.xpose.msra.mxu0 0.0
        %1176 = vmatprep.subr.mxu0 0.0
        %1177 = vmatpush1.xpose.msra.mxu0 0.0
        %1178 = vmatprep.subr.mxu0 0.0
        %1179 = vmatpush1.xpose.msra.mxu0 0.0
        %1180 = vmatprep.subr.mxu0 0.0
        %1181 = vmatpush1.xpose.msra.mxu0 0.0
        %1182 = vmatprep.subr.mxu0 0.0
        %1183 = vmatpush1.xpose.msra.mxu0 0.0
        %1184 = vmatprep.subr.mxu0 0.0
        %1185 = vmatpush1.xpose.msra.mxu0 0.0
        %1186 = vmatprep.subr.mxu0 0.0
        %1187 = vmatpush1.xpose.msra.mxu0 0.0
        %1188 = vmatprep.subr.mxu0 0.0
        %1189 = vmatpush1.xpose.msra.mxu0 0.0
        %1190 = vmatprep.mubr.f32.mxu0 0.0
        %1191 = vmatmul.mubr.f32.gmra.mrb[0].mxu0 %v1121
        %v1192 = vpop.f32.mrb[0].mxu0
        %v1193 = vadd.f32 0.0, %v1192
        %v1194 = vpop.f32.mrb[0].mxu0
        %1195 = vdwg.mxu0
        %v1196 = vmul.f32 %v1193, 0.35355338
        %v1197 = vsel %vm732, %v1196, -inf
        %1198 = vmax.xlane.f32.xlu0 %v1197
        %v1199 = vpop.xlane.xlu0 %1198
        %v1200 = vsub.f32 %v1196, %v1199
        %v1201 = vmul.f32 %v1200, 1.442695
        %v1202 = vpow.pop %v1201
        %v1203 = vsel %vm732, %v1202, 0.0
        %1204 = vadd.xlane.f32.xlu0 %v1203
        %v1205 = vpop.xlane.xlu0 %1204
        %v1206 = vrcp.pop %v1205
        %v1207 = vmul.f32 %v1202, %v1206
        %v1209 = vsel %vm732, %v1207, 0
        %1211 = vmatprep.subr.mxu0 0.0
        %1212 = vmatpush1.msra.mxu0 %v1117
        %1213 = vmatprep.subr.mxu0 0.0
        %1214 = vmatpush1.msra.mxu0 0.0
        %1215 = vmatprep.subr.mxu0 0.0
        %1216 = vmatpush1.msra.mxu0 0.0
        %1217 = vmatprep.subr.mxu0 0.0
        %1218 = vmatpush1.msra.mxu0 0.0
        %1219 = vmatprep.subr.mxu0 0.0
        %1220 = vmatpush1.msra.mxu0 0.0
        %1221 = vmatprep.subr.mxu0 0.0
        %1222 = vmatpush1.msra.mxu0 0.0
        %1223 = vmatprep.subr.mxu0 0.0
        %1224 = vmatpush1.msra.mxu0 0.0
        %1225 = vmatprep.subr.mxu0 0.0
        %1226 = vmatpush1.msra.mxu0 0.0
        %1227 = vmatprep.subr.mxu0 0.0
        %1228 = vmatpush1.msra.mxu0 0.0
        %1229 = vmatprep.subr.mxu0 0.0
        %1230 = vmatpush1.msra.mxu0 0.0
        %1231 = vmatprep.subr.mxu0 0.0
        %1232 = vmatpush1.msra.mxu0 0.0
        %1233 = vmatprep.subr.mxu0 0.0
        %1234 = vmatpush1.msra.mxu0 0.0
        %1235 = vmatprep.subr.mxu0 0.0
        %1236 = vmatpush1.msra.mxu0 0.0
        %1237 = vmatprep.subr.mxu0 0.0
        %1238 = vmatpush1.msra.mxu0 0.0
        %1239 = vmatprep.subr.mxu0 0.0
        %1240 = vmatpush1.msra.mxu0 0.0
        %1241 = vmatprep.subr.mxu0 0.0
        %1242 = vmatpush1.msra.mxu0 0.0
        %1243 = vmatprep.subr.mxu0 0.0
        %1244 = vmatpush1.msra.mxu0 0.0
        %1245 = vmatprep.subr.mxu0 0.0
        %1246 = vmatpush1.msra.mxu0 0.0
        %1247 = vmatprep.subr.mxu0 0.0
        %1248 = vmatpush1.msra.mxu0 0.0
        %1249 = vmatprep.subr.mxu0 0.0
        %1250 = vmatpush1.msra.mxu0 0.0
        %1251 = vmatprep.subr.mxu0 0.0
        %1252 = vmatpush1.msra.mxu0 0.0
        %1253 = vmatprep.subr.mxu0 0.0
        %1254 = vmatpush1.msra.mxu0 0.0
        %1255 = vmatprep.subr.mxu0 0.0
        %1256 = vmatpush1.msra.mxu0 0.0
        %1257 = vmatprep.subr.mxu0 0.0
        %1258 = vmatpush1.msra.mxu0 0.0
        %1259 = vmatprep.subr.mxu0 0.0
        %1260 = vmatpush1.msra.mxu0 0.0
        %1261 = vmatprep.subr.mxu0 0.0
        %1262 = vmatpush1.msra.mxu0 0.0
        %1263 = vmatprep.subr.mxu0 0.0
        %1264 = vmatpush1.msra.mxu0 0.0
        %1265 = vmatprep.subr.mxu0 0.0
        %1266 = vmatpush1.msra.mxu0 0.0
        %1267 = vmatprep.subr.mxu0 0.0
        %1268 = vmatpush1.msra.mxu0 0.0
        %1269 = vmatprep.subr.mxu0 0.0
        %1270 = vmatpush1.msra.mxu0 0.0
        %1271 = vmatprep.subr.mxu0 0.0
        %1272 = vmatpush1.msra.mxu0 0.0
        %1273 = vmatprep.subr.mxu0 0.0
        %1274 = vmatpush1.msra.mxu0 0.0
        %1275 = vmatprep.mubr.f32.mxu0 0.0
        %1276 = vmatmul.mubr.f32.gmra.mrb[0].mxu0 %v1209
        %v1277 = vpop.f32.mrb[0].mxu0
        %v1278 = vadd.f32 0.0, %v1277
        %v1279 = vpop.f32.mrb[0].mxu0
        %1280 = vdwg.mxu0
        %s1281 = scalar_lea.vmem %s5, 8
        %v1282 = vld [vmem:[%s1281] sm:$0xff]
        %v1284 = vsel %vm732, %v1278, 0
        %1286 = vmatprep.subr.mxu0 0.0
        %1287 = vmatpush1.msra.mxu0 %v1282
        %1288 = vmatprep.subr.mxu0 0.0
        %1289 = vmatpush1.msra.mxu0 0.0
        %1290 = vmatprep.subr.mxu0 0.0
        %1291 = vmatpush1.msra.mxu0 0.0
        %1292 = vmatprep.subr.mxu0 0.0
        %1293 = vmatpush1.msra.mxu0 0.0
        %1294 = vmatprep.subr.mxu0 0.0
        %1295 = vmatpush1.msra.mxu0 0.0
        %1296 = vmatprep.subr.mxu0 0.0
        %1297 = vmatpush1.msra.mxu0 0.0
        %1298 = vmatprep.subr.mxu0 0.0
        %1299 = vmatpush1.msra.mxu0 0.0
        %1300 = vmatprep.subr.mxu0 0.0
        %1301 = vmatpush1.msra.mxu0 0.0
        %1302 = vmatprep.subr.mxu0 0.0
        %1303 = vmatpush1.msra.mxu0 0.0
        %1304 = vmatprep.subr.mxu0 0.0
        %1305 = vmatpush1.msra.mxu0 0.0
        %1306 = vmatprep.subr.mxu0 0.0
        %1307 = vmatpush1.msra.mxu0 0.0
        %1308 = vmatprep.subr.mxu0 0.0
        %1309 = vmatpush1.msra.mxu0 0.0
        %1310 = vmatprep.subr.mxu0 0.0
        %1311 = vmatpush1.msra.mxu0 0.0
        %1312 = vmatprep.subr.mxu0 0.0
        %1313 = vmatpush1.msra.mxu0 0.0
        %1314 = vmatprep.subr.mxu0 0.0
        %1315 = vmatpush1.msra.mxu0 0.0
        %1316 = vmatprep.subr.mxu0 0.0
        %1317 = vmatpush1.msra.mxu0 0.0
        %1318 = vmatprep.subr.mxu0 0.0
        %1319 = vmatpush1.msra.mxu0 0.0
        %1320 = vmatprep.subr.mxu0 0.0
        %1321 = vmatpush1.msra.mxu0 0.0
        %1322 = vmatprep.subr.mxu0 0.0
        %1323 = vmatpush1.msra.mxu0 0.0
        %1324 = vmatprep.subr.mxu0 0.0
        %1325 = vmatpush1.msra.mxu0 0.0
        %1326 = vmatprep.subr.mxu0 0.0
        %1327 = vmatpush1.msra.mxu0 0.0
        %1328 = vmatprep.subr.mxu0 0.0
        %1329 = vmatpush1.msra.mxu0 0.0
        %1330 = vmatprep.subr.mxu0 0.0
        %1331 = vmatpush1.msra.mxu0 0.0
        %1332 = vmatprep.subr.mxu0 0.0
        %1333 = vmatpush1.msra.mxu0 0.0
        %1334 = vmatprep.subr.mxu0 0.0
        %1335 = vmatpush1.msra.mxu0 0.0
        %1336 = vmatprep.subr.mxu0 0.0
        %1337 = vmatpush1.msra.mxu0 0.0
        %1338 = vmatprep.subr.mxu0 0.0
        %1339 = vmatpush1.msra.mxu0 0.0
        %1340 = vmatprep.subr.mxu0 0.0
        %1341 = vmatpush1.msra.mxu0 0.0
        %1342 = vmatprep.subr.mxu0 0.0
        %1343 = vmatpush1.msra.mxu0 0.0
        %1344 = vmatprep.subr.mxu0 0.0
        %1345 = vmatpush1.msra.mxu0 0.0
        %1346 = vmatprep.subr.mxu0 0.0
        %1347 = vmatpush1.msra.mxu0 0.0
        %1348 = vmatprep.subr.mxu0 0.0
        %1349 = vmatpush1.msra.mxu0 0.0
        %1350 = vmatprep.mubr.f32.mxu0 0.0
        %1351 = vmatmul.mubr.f32.gmra.mrb[0].mxu0 %v1284
        %v1352 = vpop.f32.mrb[0].mxu0
        %v1353 = vadd.f32 0.0, %v1352
        %v1354 = vpop.f32.mrb[0].mxu0
        %1355 = vdwg.mxu0
        %v1357 = vsel %vm732, %v891, 0
        %1359 = vmatprep.subr.mxu0 0.0
        %1360 = vmatpush1.msra.mxu0 %v894
        %1361 = vmatprep.subr.mxu0 0.0
        %1362 = vmatpush1.msra.mxu0 0.0
        %1363 = vmatprep.subr.mxu0 0.0
        %1364 = vmatpush1.msra.mxu0 0.0
        %1365 = vmatprep.subr.mxu0 0.0
        %1366 = vmatpush1.msra.mxu0 0.0
        %1367 = vmatprep.subr.mxu0 0.0
        %1368 = vmatpush1.msra.mxu0 0.0
        %1369 = vmatprep.subr.mxu0 0.0
        %1370 = vmatpush1.msra.mxu0 0.0
        %1371 = vmatprep.subr.mxu0 0.0
        %1372 = vmatpush1.msra.mxu0 0.0
        %1373 = vmatprep.subr.mxu0 0.0
        %1374 = vmatpush1.msra.mxu0 0.0
        %1375 = vmatprep.subr.mxu0 0.0
        %1376 = vmatpush1.msra.mxu0 0.0
        %1377 = vmatprep.subr.mxu0 0.0
        %1378 = vmatpush1.msra.mxu0 0.0
        %1379 = vmatprep.subr.mxu0 0.0
        %1380 = vmatpush1.msra.mxu0 0.0
        %1381 = vmatprep.subr.mxu0 0.0
        %1382 = vmatpush1.msra.mxu0 0.0
        %1383 = vmatprep.subr.mxu0 0.0
        %1384 = vmatpush1.msra.mxu0 0.0
        %1385 = vmatprep.subr.mxu0 0.0
        %1386 = vmatpush1.msra.mxu0 0.0
        %1387 = vmatprep.subr.mxu0 0.0
        %1388 = vmatpush1.msra.mxu0 0.0
        %1389 = vmatprep.subr.mxu0 0.0
        %1390 = vmatpush1.msra.mxu0 0.0
        %1391 = vmatprep.subr.mxu0 0.0
        %1392 = vmatpush1.msra.mxu0 0.0
        %1393 = vmatprep.subr.mxu0 0.0
        %1394 = vmatpush1.msra.mxu0 0.0
        %1395 = vmatprep.subr.mxu0 0.0
        %1396 = vmatpush1.msra.mxu0 0.0
        %1397 = vmatprep.subr.mxu0 0.0
        %1398 = vmatpush1.msra.mxu0 0.0
        %1399 = vmatprep.subr.mxu0 0.0
        %1400 = vmatpush1.msra.mxu0 0.0
        %1401 = vmatprep.subr.mxu0 0.0
        %1402 = vmatpush1.msra.mxu0 0.0
        %1403 = vmatprep.subr.mxu0 0.0
        %1404 = vmatpush1.msra.mxu0 0.0
        %1405 = vmatprep.subr.mxu0 0.0
        %1406 = vmatpush1.msra.mxu0 0.0
        %1407 = vmatprep.subr.mxu0 0.0
        %1408 = vmatpush1.msra.mxu0 0.0
        %1409 = vmatprep.subr.mxu0 0.0
        %1410 = vmatpush1.msra.mxu0 0.0
        %1411 = vmatprep.subr.mxu0 0.0
        %1412 = vmatpush1.msra.mxu0 0.0
        %1413 = vmatprep.subr.mxu0 0.0
        %1414 = vmatpush1.msra.mxu0 0.0
        %1415 = vmatprep.subr.mxu0 0.0
        %1416 = vmatpush1.msra.mxu0 0.0
        %1417 = vmatprep.subr.mxu0 0.0
        %1418 = vmatpush1.msra.mxu0 0.0
        %1419 = vmatprep.subr.mxu0 0.0
        %1420 = vmatpush1.msra.mxu0 0.0
        %1421 = vmatprep.subr.mxu0 0.0
        %1422 = vmatpush1.msra.mxu0 0.0
        %1423 = vmatprep.mubr.f32.mxu0 0.0
        %1424 = vmatmul.mubr.f32.gmra.mrb[0].mxu0 %v1357
        %v1425 = vpop.f32.mrb[0].mxu0
        %v1426 = vadd.f32 %v1353, %v1425
        %v1427 = vpop.f32.mrb[0].mxu0
        %1428 = vdwg.mxu0
        %s1429 = scalar_lea.vmem %s2, 64
        %v1430 = vld [vmem:[%s1429] sm:$0xff]
        %v1431 = vld [vmem:[%s1429 + $0x8] sm:$0xff]
        %v1432 = vld [vmem:[%s1429 + $0x10] sm:$0xff]
        %v1433 = vld [vmem:[%s1429 + $0x18] sm:$0xff]
        %1434 = vmatprep.subr.mxu0 0.0
        %1435 = vmatpush1.msra.mxu0 %v1430
        %1436 = vmatprep.subr.mxu0 0.0
        %1437 = vmatpush1.msra.mxu0 %v1431
        %1438 = vmatprep.subr.mxu0 0.0
        %1439 = vmatpush1.msra.mxu0 %v1432
        %1440 = vmatprep.subr.mxu0 0.0
        %1441 = vmatpush1.msra.mxu0 %v1433
        %1442 = vmatprep.subr.mxu0 0.0
        %1443 = vmatpush1.msra.mxu0 0.0
        %1444 = vmatprep.subr.mxu0 0.0
        %1445 = vmatpush1.msra.mxu0 0.0
        %1446 = vmatprep.subr.mxu0 0.0
        %1447 = vmatpush1.msra.mxu0 0.0
        %1448 = vmatprep.subr.mxu0 0.0
        %1449 = vmatpush1.msra.mxu0 0.0
        %1450 = vmatprep.subr.mxu0 0.0
        %1451 = vmatpush1.msra.mxu0 0.0
        %1452 = vmatprep.subr.mxu0 0.0
        %1453 = vmatpush1.msra.mxu0 0.0
        %1454 = vmatprep.subr.mxu0 0.0
        %1455 = vmatpush1.msra.mxu0 0.0
        %1456 = vmatprep.subr.mxu0 0.0
        %1457 = vmatpush1.msra.mxu0 0.0
        %1458 = vmatprep.subr.mxu0 0.0
        %1459 = vmatpush1.msra.mxu0 0.0
        %1460 = vmatprep.subr.mxu0 0.0
        %1461 = vmatpush1.msra.mxu0 0.0
        %1462 = vmatprep.subr.mxu0 0.0
        %1463 = vmatpush1.msra.mxu0 0.0
        %1464 = vmatprep.subr.mxu0 0.0
        %1465 = vmatpush1.msra.mxu0 0.0
        %1466 = vmatprep.subr.mxu0 0.0
        %1467 = vmatpush1.msra.mxu0 0.0
        %1468 = vmatprep.subr.mxu0 0.0
        %1469 = vmatpush1.msra.mxu0 0.0
        %1470 = vmatprep.subr.mxu0 0.0
        %1471 = vmatpush1.msra.mxu0 0.0
        %1472 = vmatprep.subr.mxu0 0.0
        %1473 = vmatpush1.msra.mxu0 0.0
        %1474 = vmatprep.subr.mxu0 0.0
        %1475 = vmatpush1.msra.mxu0 0.0
        %1476 = vmatprep.subr.mxu0 0.0
        %1477 = vmatpush1.msra.mxu0 0.0
        %1478 = vmatprep.subr.mxu0 0.0
        %1479 = vmatpush1.msra.mxu0 0.0
        %1480 = vmatprep.subr.mxu0 0.0
        %1481 = vmatpush1.msra.mxu0 0.0
        %1482 = vmatprep.subr.mxu0 0.0
        %1483 = vmatpush1.msra.mxu0 0.0
        %1484 = vmatprep.subr.mxu0 0.0
        %1485 = vmatpush1.msra.mxu0 0.0
        %1486 = vmatprep.subr.mxu0 0.0
        %1487 = vmatpush1.msra.mxu0 0.0
        %1488 = vmatprep.subr.mxu0 0.0
        %1489 = vmatpush1.msra.mxu0 0.0
        %1490 = vmatprep.subr.mxu0 0.0
        %1491 = vmatpush1.msra.mxu0 0.0
        %1492 = vmatprep.subr.mxu0 0.0
        %1493 = vmatpush1.msra.mxu0 0.0
        %1494 = vmatprep.subr.mxu0 0.0
        %1495 = vmatpush1.msra.mxu0 0.0
        %1496 = vmatprep.subr.mxu0 0.0
        %1497 = vmatpush1.msra.mxu0 0.0
        %1498 = vmatprep.mubr.f32.mxu0 0.0
        %1499 = vmatmul.mubr.f32.gmra.mrb[0].mxu0 %v512
        %v1500 = vpop.f32.mrb[0].mxu0
        %v1501 = vadd.f32 0.0, %v1500
        %v1502 = vpop.f32.mrb[0].mxu0
        %1503 = vdwg.mxu0
        %s1504 = scalar_lea.vmem %s3, 64
        %v1505 = vld [vmem:[%s1504] sm:$0xff]
        %v1506 = vld [vmem:[%s1504 + $0x8] sm:$0xff]
        %v1507 = vld [vmem:[%s1504 + $0x10] sm:$0xff]
        %v1508 = vld [vmem:[%s1504 + $0x18] sm:$0xff]
        %1509 = vmatprep.subr.mxu0 0.0
        %1510 = vmatpush1.msra.mxu0 %v1505
        %1511 = vmatprep.subr.mxu0 0.0
        %1512 = vmatpush1.msra.mxu0 %v1506
        %1513 = vmatprep.subr.mxu0 0.0
        %1514 = vmatpush1.msra.mxu0 %v1507
        %1515 = vmatprep.subr.mxu0 0.0
        %1516 = vmatpush1.msra.mxu0 %v1508
        %1517 = vmatprep.subr.mxu0 0.0
        %1518 = vmatpush1.msra.mxu0 0.0
        %1519 = vmatprep.subr.mxu0 0.0
        %1520 = vmatpush1.msra.mxu0 0.0
        %1521 = vmatprep.subr.mxu0 0.0
        %1522 = vmatpush1.msra.mxu0 0.0
        %1523 = vmatprep.subr.mxu0 0.0
        %1524 = vmatpush1.msra.mxu0 0.0
        %1525 = vmatprep.subr.mxu0 0.0
        %1526 = vmatpush1.msra.mxu0 0.0
        %1527 = vmatprep.subr.mxu0 0.0
        %1528 = vmatpush1.msra.mxu0 0.0
        %1529 = vmatprep.subr.mxu0 0.0
        %1530 = vmatpush1.msra.mxu0 0.0
        %1531 = vmatprep.subr.mxu0 0.0
        %1532 = vmatpush1.msra.mxu0 0.0
        %1533 = vmatprep.subr.mxu0 0.0
        %1534 = vmatpush1.msra.mxu0 0.0
        %1535 = vmatprep.subr.mxu0 0.0
        %1536 = vmatpush1.msra.mxu0 0.0
        %1537 = vmatprep.subr.mxu0 0.0
        %1538 = vmatpush1.msra.mxu0 0.0
        %1539 = vmatprep.subr.mxu0 0.0
        %1540 = vmatpush1.msra.mxu0 0.0
        %1541 = vmatprep.subr.mxu0 0.0
        %1542 = vmatpush1.msra.mxu0 0.0
        %1543 = vmatprep.subr.mxu0 0.0
        %1544 = vmatpush1.msra.mxu0 0.0
        %1545 = vmatprep.subr.mxu0 0.0
        %1546 = vmatpush1.msra.mxu0 0.0
        %1547 = vmatprep.subr.mxu0 0.0
        %1548 = vmatpush1.msra.mxu0 0.0
        %1549 = vmatprep.subr.mxu0 0.0
        %1550 = vmatpush1.msra.mxu0 0.0
        %1551 = vmatprep.subr.mxu0 0.0
        %1552 = vmatpush1.msra.mxu0 0.0
        %1553 = vmatprep.subr.mxu0 0.0
        %1554 = vmatpush1.msra.mxu0 0.0
        %1555 = vmatprep.subr.mxu0 0.0
        %1556 = vmatpush1.msra.mxu0 0.0
        %1557 = vmatprep.subr.mxu0 0.0
        %1558 = vmatpush1.msra.mxu0 0.0
        %1559 = vmatprep.subr.mxu0 0.0
        %1560 = vmatpush1.msra.mxu0 0.0
        %1561 = vmatprep.subr.mxu0 0.0
        %1562 = vmatpush1.msra.mxu0 0.0
        %1563 = vmatprep.subr.mxu0 0.0
        %1564 = vmatpush1.msra.mxu0 0.0
        %1565 = vmatprep.subr.mxu0 0.0
        %1566 = vmatpush1.msra.mxu0 0.0
        %1567 = vmatprep.subr.mxu0 0.0
        %1568 = vmatpush1.msra.mxu0 0.0
        %1569 = vmatprep.subr.mxu0 0.0
        %1570 = vmatpush1.msra.mxu0 0.0
        %1571 = vmatprep.subr.mxu0 0.0
        %1572 = vmatpush1.msra.mxu0 0.0
        %1573 = vmatprep.mubr.f32.mxu0 0.0
        %1574 = vmatmul.mubr.f32.gmra.mrb[0].mxu0 %v512
        %v1575 = vpop.f32.mrb[0].mxu0
        %v1576 = vadd.f32 0.0, %v1575
        %v1577 = vpop.f32.mrb[0].mxu0
        %1578 = vdwg.mxu0
        %s1579 = scalar_lea.vmem %s4, 64
        %v1580 = vld [vmem:[%s1579] sm:$0xff]
        %v1581 = vld [vmem:[%s1579 + $0x8] sm:$0xff]
        %v1582 = vld [vmem:[%s1579 + $0x10] sm:$0xff]
        %v1583 = vld [vmem:[%s1579 + $0x18] sm:$0xff]
        %1584 = vmatprep.subr.mxu0 0.0
        %1585 = vmatpush1.msra.mxu0 %v1580
        %1586 = vmatprep.subr.mxu0 0.0
        %1587 = vmatpush1.msra.mxu0 %v1581
        %1588 = vmatprep.subr.mxu0 0.0
        %1589 = vmatpush1.msra.mxu0 %v1582
        %1590 = vmatprep.subr.mxu0 0.0
        %1591 = vmatpush1.msra.mxu0 %v1583
        %1592 = vmatprep.subr.mxu0 0.0
        %1593 = vmatpush1.msra.mxu0 0.0
        %1594 = vmatprep.subr.mxu0 0.0
        %1595 = vmatpush1.msra.mxu0 0.0
        %1596 = vmatprep.subr.mxu0 0.0
        %1597 = vmatpush1.msra.mxu0 0.0
        %1598 = vmatprep.subr.mxu0 0.0
        %1599 = vmatpush1.msra.mxu0 0.0
        %1600 = vmatprep.subr.mxu0 0.0
        %1601 = vmatpush1.msra.mxu0 0.0
        %1602 = vmatprep.subr.mxu0 0.0
        %1603 = vmatpush1.msra.mxu0 0.0
        %1604 = vmatprep.subr.mxu0 0.0
        %1605 = vmatpush1.msra.mxu0 0.0
        %1606 = vmatprep.subr.mxu0 0.0
        %1607 = vmatpush1.msra.mxu0 0.0
        %1608 = vmatprep.subr.mxu0 0.0
        %1609 = vmatpush1.msra.mxu0 0.0
        %1610 = vmatprep.subr.mxu0 0.0
        %1611 = vmatpush1.msra.mxu0 0.0
        %1612 = vmatprep.subr.mxu0 0.0
        %1613 = vmatpush1.msra.mxu0 0.0
        %1614 = vmatprep.subr.mxu0 0.0
        %1615 = vmatpush1.msra.mxu0 0.0
        %1616 = vmatprep.subr.mxu0 0.0
        %1617 = vmatpush1.msra.mxu0 0.0
        %1618 = vmatprep.subr.mxu0 0.0
        %1619 = vmatpush1.msra.mxu0 0.0
        %1620 = vmatprep.subr.mxu0 0.0
        %1621 = vmatpush1.msra.mxu0 0.0
        %1622 = vmatprep.subr.mxu0 0.0
        %1623 = vmatpush1.msra.mxu0 0.0
        %1624 = vmatprep.subr.mxu0 0.0
        %1625 = vmatpush1.msra.mxu0 0.0
        %1626 = vmatprep.subr.mxu0 0.0
        %1627 = vmatpush1.msra.mxu0 0.0
        %1628 = vmatprep.subr.mxu0 0.0
        %1629 = vmatpush1.msra.mxu0 0.0
        %1630 = vmatprep.subr.mxu0 0.0
        %1631 = vmatpush1.msra.mxu0 0.0
        %1632 = vmatprep.subr.mxu0 0.0
        %1633 = vmatpush1.msra.mxu0 0.0
        %1634 = vmatprep.subr.mxu0 0.0
        %1635 = vmatpush1.msra.mxu0 0.0
        %1636 = vmatprep.subr.mxu0 0.0
        %1637 = vmatpush1.msra.mxu0 0.0
        %1638 = vmatprep.subr.mxu0 0.0
        %1639 = vmatpush1.msra.mxu0 0.0
        %1640 = vmatprep.subr.mxu0 0.0
        %1641 = vmatpush1.msra.mxu0 0.0
        %1642 = vmatprep.subr.mxu0 0.0
        %1643 = vmatpush1.msra.mxu0 0.0
        %1644 = vmatprep.subr.mxu0 0.0
        %1645 = vmatpush1.msra.mxu0 0.0
        %1646 = vmatprep.subr.mxu0 0.0
        %1647 = vmatpush1.msra.mxu0 0.0
        %1648 = vmatprep.mubr.f32.mxu0 0.0
        %1649 = vmatmul.mubr.f32.gmra.mrb[0].mxu0 %v512
        %v1650 = vpop.f32.mrb[0].mxu0
        %v1651 = vadd.f32 0.0, %v1650
        %v1652 = vpop.f32.mrb[0].mxu0
        %1653 = vdwg.mxu0
        %v1655 = vsel %vm732, %v1501, 0
        %v1658 = vsel %vm732, %v1576, 0
        %1660 = vmatprep.subr.mxu0 0.0
        %1661 = vmatpush1.xpose.msra.mxu0 %v1658
        %1662 = vmatprep.subr.mxu0 0.0
        %1663 = vmatpush1.xpose.msra.mxu0 0.0
        %1664 = vmatprep.subr.mxu0 0.0
        %1665 = vmatpush1.xpose.msra.mxu0 0.0
        %1666 = vmatprep.subr.mxu0 0.0
        %1667 = vmatpush1.xpose.msra.mxu0 0.0
        %1668 = vmatprep.subr.mxu0 0.0
        %1669 = vmatpush1.xpose.msra.mxu0 0.0
        %1670 = vmatprep.subr.mxu0 0.0
        %1671 = vmatpush1.xpose.msra.mxu0 0.0
        %1672 = vmatprep.subr.mxu0 0.0
        %1673 = vmatpush1.xpose.msra.mxu0 0.0
        %1674 = vmatprep.subr.mxu0 0.0
        %1675 = vmatpush1.xpose.msra.mxu0 0.0
        %1676 = vmatprep.subr.mxu0 0.0
        %1677 = vmatpush1.xpose.msra.mxu0 0.0
        %1678 = vmatprep.subr.mxu0 0.0
        %1679 = vmatpush1.xpose.msra.mxu0 0.0
        %1680 = vmatprep.subr.mxu0 0.0
        %1681 = vmatpush1.xpose.msra.mxu0 0.0
        %1682 = vmatprep.subr.mxu0 0.0
        %1683 = vmatpush1.xpose.msra.mxu0 0.0
        %1684 = vmatprep.subr.mxu0 0.0
        %1685 = vmatpush1.xpose.msra.mxu0 0.0
        %1686 = vmatprep.subr.mxu0 0.0
        %1687 = vmatpush1.xpose.msra.mxu0 0.0
        %1688 = vmatprep.subr.mxu0 0.0
        %1689 = vmatpush1.xpose.msra.mxu0 0.0
        %1690 = vmatprep.subr.mxu0 0.0
        %1691 = vmatpush1.xpose.msra.mxu0 0.0
        %1692 = vmatprep.subr.mxu0 0.0
        %1693 = vmatpush1.xpose.msra.mxu0 0.0
        %1694 = vmatprep.subr.mxu0 0.0
        %1695 = vmatpush1.xpose.msra.mxu0 0.0
        %1696 = vmatprep.subr.mxu0 0.0
        %1697 = vmatpush1.xpose.msra.mxu0 0.0
        %1698 = vmatprep.subr.mxu0 0.0
        %1699 = vmatpush1.xpose.msra.mxu0 0.0
        %1700 = vmatprep.subr.mxu0 0.0
        %1701 = vmatpush1.xpose.msra.mxu0 0.0
        %1702 = vmatprep.subr.mxu0 0.0
        %1703 = vmatpush1.xpose.msra.mxu0 0.0
        %1704 = vmatprep.subr.mxu0 0.0
        %1705 = vmatpush1.xpose.msra.mxu0 0.0
        %1706 = vmatprep.subr.mxu0 0.0
        %1707 = vmatpush1.xpose.msra.mxu0 0.0
        %1708 = vmatprep.subr.mxu0 0.0
        %1709 = vmatpush1.xpose.msra.mxu0 0.0
        %1710 = vmatprep.subr.mxu0 0.0
        %1711 = vmatpush1.xpose.msra.mxu0 0.0
        %1712 = vmatprep.subr.mxu0 0.0
        %1713 = vmatpush1.xpose.msra.mxu0 0.0
        %1714 = vmatprep.subr.mxu0 0.0
        %1715 = vmatpush1.xpose.msra.mxu0 0.0
        %1716 = vmatprep.subr.mxu0 0.0
        %1717 = vmatpush1.xpose.msra.mxu0 0.0
        %1718 = vmatprep.subr.mxu0 0.0
        %1719 = vmatpush1.xpose.msra.mxu0 0.0
        %1720 = vmatprep.subr.mxu0 0.0
        %1721 = vmatpush1.xpose.msra.mxu0 0.0
        %1722 = vmatprep.subr.mxu0 0.0
        %1723 = vmatpush1.xpose.msra.mxu0 0.0
        %1724 = vmatprep.mubr.f32.mxu0 0.0
        %1725 = vmatmul.mubr.f32.gmra.mrb[0].mxu0 %v1655
        %v1726 = vpop.f32.mrb[0].mxu0
        %v1727 = vadd.f32 0.0, %v1726
        %v1728 = vpop.f32.mrb[0].mxu0
        %1729 = vdwg.mxu0
        %v1730 = vmul.f32 %v1727, 0.35355338
        %v1731 = vsel %vm732, %v1730, -inf
        %1732 = vmax.xlane.f32.xlu0 %v1731
        %v1733 = vpop.xlane.xlu0 %1732
        %v1734 = vsub.f32 %v1730, %v1733
        %v1735 = vmul.f32 %v1734, 1.442695
        %v1736 = vpow.pop %v1735
        %v1737 = vsel %vm732, %v1736, 0.0
        %1738 = vadd.xlane.f32.xlu0 %v1737
        %v1739 = vpop.xlane.xlu0 %1738
        %v1740 = vrcp.pop %v1739
        %v1741 = vmul.f32 %v1736, %v1740
        %v1743 = vsel %vm732, %v1741, 0
        %1745 = vmatprep.subr.mxu0 0.0
        %1746 = vmatpush1.msra.mxu0 %v1651
        %1747 = vmatprep.subr.mxu0 0.0
        %1748 = vmatpush1.msra.mxu0 0.0
        %1749 = vmatprep.subr.mxu0 0.0
        %1750 = vmatpush1.msra.mxu0 0.0
        %1751 = vmatprep.subr.mxu0 0.0
        %1752 = vmatpush1.msra.mxu0 0.0
        %1753 = vmatprep.subr.mxu0 0.0
        %1754 = vmatpush1.msra.mxu0 0.0
        %1755 = vmatprep.subr.mxu0 0.0
        %1756 = vmatpush1.msra.mxu0 0.0
        %1757 = vmatprep.subr.mxu0 0.0
        %1758 = vmatpush1.msra.mxu0 0.0
        %1759 = vmatprep.subr.mxu0 0.0
        %1760 = vmatpush1.msra.mxu0 0.0
        %1761 = vmatprep.subr.mxu0 0.0
        %1762 = vmatpush1.msra.mxu0 0.0
        %1763 = vmatprep.subr.mxu0 0.0
        %1764 = vmatpush1.msra.mxu0 0.0
        %1765 = vmatprep.subr.mxu0 0.0
        %1766 = vmatpush1.msra.mxu0 0.0
        %1767 = vmatprep.subr.mxu0 0.0
        %1768 = vmatpush1.msra.mxu0 0.0
        %1769 = vmatprep.subr.mxu0 0.0
        %1770 = vmatpush1.msra.mxu0 0.0
        %1771 = vmatprep.subr.mxu0 0.0
        %1772 = vmatpush1.msra.mxu0 0.0
        %1773 = vmatprep.subr.mxu0 0.0
        %1774 = vmatpush1.msra.mxu0 0.0
        %1775 = vmatprep.subr.mxu0 0.0
        %1776 = vmatpush1.msra.mxu0 0.0
        %1777 = vmatprep.subr.mxu0 0.0
        %1778 = vmatpush1.msra.mxu0 0.0
        %1779 = vmatprep.subr.mxu0 0.0
        %1780 = vmatpush1.msra.mxu0 0.0
        %1781 = vmatprep.subr.mxu0 0.0
        %1782 = vmatpush1.msra.mxu0 0.0
        %1783 = vmatprep.subr.mxu0 0.0
        %1784 = vmatpush1.msra.mxu0 0.0
        %1785 = vmatprep.subr.mxu0 0.0
        %1786 = vmatpush1.msra.mxu0 0.0
        %1787 = vmatprep.subr.mxu0 0.0
        %1788 = vmatpush1.msra.mxu0 0.0
        %1789 = vmatprep.subr.mxu0 0.0
        %1790 = vmatpush1.msra.mxu0 0.0
        %1791 = vmatprep.subr.mxu0 0.0
        %1792 = vmatpush1.msra.mxu0 0.0
        %1793 = vmatprep.subr.mxu0 0.0
        %1794 = vmatpush1.msra.mxu0 0.0
        %1795 = vmatprep.subr.mxu0 0.0
        %1796 = vmatpush1.msra.mxu0 0.0
        %1797 = vmatprep.subr.mxu0 0.0
        %1798 = vmatpush1.msra.mxu0 0.0
        %1799 = vmatprep.subr.mxu0 0.0
        %1800 = vmatpush1.msra.mxu0 0.0
        %1801 = vmatprep.subr.mxu0 0.0
        %1802 = vmatpush1.msra.mxu0 0.0
        %1803 = vmatprep.subr.mxu0 0.0
        %1804 = vmatpush1.msra.mxu0 0.0
        %1805 = vmatprep.subr.mxu0 0.0
        %1806 = vmatpush1.msra.mxu0 0.0
        %1807 = vmatprep.subr.mxu0 0.0
        %1808 = vmatpush1.msra.mxu0 0.0
        %1809 = vmatprep.mubr.f32.mxu0 0.0
        %1810 = vmatmul.mubr.f32.gmra.mrb[0].mxu0 %v1743
        %v1811 = vpop.f32.mrb[0].mxu0
        %v1812 = vadd.f32 0.0, %v1811
        %v1813 = vpop.f32.mrb[0].mxu0
        %1814 = vdwg.mxu0
        %s1815 = scalar_lea.vmem %s5, 16
        %v1816 = vld [vmem:[%s1815] sm:$0xff]
        %v1818 = vsel %vm732, %v1812, 0
        %1820 = vmatprep.subr.mxu0 0.0
        %1821 = vmatpush1.msra.mxu0 %v1816
        %1822 = vmatprep.subr.mxu0 0.0
        %1823 = vmatpush1.msra.mxu0 0.0
        %1824 = vmatprep.subr.mxu0 0.0
        %1825 = vmatpush1.msra.mxu0 0.0
        %1826 = vmatprep.subr.mxu0 0.0
        %1827 = vmatpush1.msra.mxu0 0.0
        %1828 = vmatprep.subr.mxu0 0.0
        %1829 = vmatpush1.msra.mxu0 0.0
        %1830 = vmatprep.subr.mxu0 0.0
        %1831 = vmatpush1.msra.mxu0 0.0
        %1832 = vmatprep.subr.mxu0 0.0
        %1833 = vmatpush1.msra.mxu0 0.0
        %1834 = vmatprep.subr.mxu0 0.0
        %1835 = vmatpush1.msra.mxu0 0.0
        %1836 = vmatprep.subr.mxu0 0.0
        %1837 = vmatpush1.msra.mxu0 0.0
        %1838 = vmatprep.subr.mxu0 0.0
        %1839 = vmatpush1.msra.mxu0 0.0
        %1840 = vmatprep.subr.mxu0 0.0
        %1841 = vmatpush1.msra.mxu0 0.0
        %1842 = vmatprep.subr.mxu0 0.0
        %1843 = vmatpush1.msra.mxu0 0.0
        %1844 = vmatprep.subr.mxu0 0.0
        %1845 = vmatpush1.msra.mxu0 0.0
        %1846 = vmatprep.subr.mxu0 0.0
        %1847 = vmatpush1.msra.mxu0 0.0
        %1848 = vmatprep.subr.mxu0 0.0
        %1849 = vmatpush1.msra.mxu0 0.0
        %1850 = vmatprep.subr.mxu0 0.0
        %1851 = vmatpush1.msra.mxu0 0.0
        %1852 = vmatprep.subr.mxu0 0.0
        %1853 = vmatpush1.msra.mxu0 0.0
        %1854 = vmatprep.subr.mxu0 0.0
        %1855 = vmatpush1.msra.mxu0 0.0
        %1856 = vmatprep.subr.mxu0 0.0
        %1857 = vmatpush1.msra.mxu0 0.0
        %1858 = vmatprep.subr.mxu0 0.0
        %1859 = vmatpush1.msra.mxu0 0.0
        %1860 = vmatprep.subr.mxu0 0.0
        %1861 = vmatpush1.msra.mxu0 0.0
        %1862 = vmatprep.subr.mxu0 0.0
        %1863 = vmatpush1.msra.mxu0 0.0
        %1864 = vmatprep.subr.mxu0 0.0
        %1865 = vmatpush1.msra.mxu0 0.0
        %1866 = vmatprep.subr.mxu0 0.0
        %1867 = vmatpush1.msra.mxu0 0.0
        %1868 = vmatprep.subr.mxu0 0.0
        %1869 = vmatpush1.msra.mxu0 0.0
        %1870 = vmatprep.subr.mxu0 0.0
        %1871 = vmatpush1.msra.mxu0 0.0
        %1872 = vmatprep.subr.mxu0 0.0
        %1873 = vmatpush1.msra.mxu0 0.0
        %1874 = vmatprep.subr.mxu0 0.0
        %1875 = vmatpush1.msra.mxu0 0.0
        %1876 = vmatprep.subr.mxu0 0.0
        %1877 = vmatpush1.msra.mxu0 0.0
        %1878 = vmatprep.subr.mxu0 0.0
        %1879 = vmatpush1.msra.mxu0 0.0
        %1880 = vmatprep.subr.mxu0 0.0
        %1881 = vmatpush1.msra.mxu0 0.0
        %1882 = vmatprep.subr.mxu0 0.0
        %1883 = vmatpush1.msra.mxu0 0.0
        %1884 = vmatprep.mubr.f32.mxu0 0.0
        %1885 = vmatmul.mubr.f32.gmra.mrb[0].mxu0 %v1818
        %v1886 = vpop.f32.mrb[0].mxu0
        %v1887 = vadd.f32 0.0, %v1886
        %v1888 = vpop.f32.mrb[0].mxu0
        %1889 = vdwg.mxu0
        %v1890 = vadd.f32 %v1426, %v1887
        %s1891 = scalar_lea.vmem %s2, 96
        %v1892 = vld [vmem:[%s1891] sm:$0xff]
        %v1893 = vld [vmem:[%s1891 + $0x8] sm:$0xff]
        %v1894 = vld [vmem:[%s1891 + $0x10] sm:$0xff]
        %v1895 = vld [vmem:[%s1891 + $0x18] sm:$0xff]
        %1896 = vmatprep.subr.mxu0 0.0
        %1897 = vmatpush1.msra.mxu0 %v1892
        %1898 = vmatprep.subr.mxu0 0.0
        %1899 = vmatpush1.msra.mxu0 %v1893
        %1900 = vmatprep.subr.mxu0 0.0
        %1901 = vmatpush1.msra.mxu0 %v1894
        %1902 = vmatprep.subr.mxu0 0.0
        %1903 = vmatpush1.msra.mxu0 %v1895
        %1904 = vmatprep.subr.mxu0 0.0
        %1905 = vmatpush1.msra.mxu0 0.0
        %1906 = vmatprep.subr.mxu0 0.0
        %1907 = vmatpush1.msra.mxu0 0.0
        %1908 = vmatprep.subr.mxu0 0.0
        %1909 = vmatpush1.msra.mxu0 0.0
        %1910 = vmatprep.subr.mxu0 0.0
        %1911 = vmatpush1.msra.mxu0 0.0
        %1912 = vmatprep.subr.mxu0 0.0
        %1913 = vmatpush1.msra.mxu0 0.0
        %1914 = vmatprep.subr.mxu0 0.0
        %1915 = vmatpush1.msra.mxu0 0.0
        %1916 = vmatprep.subr.mxu0 0.0
        %1917 = vmatpush1.msra.mxu0 0.0
        %1918 = vmatprep.subr.mxu0 0.0
        %1919 = vmatpush1.msra.mxu0 0.0
        %1920 = vmatprep.subr.mxu0 0.0
        %1921 = vmatpush1.msra.mxu0 0.0
        %1922 = vmatprep.subr.mxu0 0.0
        %1923 = vmatpush1.msra.mxu0 0.0
        %1924 = vmatprep.subr.mxu0 0.0
        %1925 = vmatpush1.msra.mxu0 0.0
        %1926 = vmatprep.subr.mxu0 0.0
        %1927 = vmatpush1.msra.mxu0 0.0
        %1928 = vmatprep.subr.mxu0 0.0
        %1929 = vmatpush1.msra.mxu0 0.0
        %1930 = vmatprep.subr.mxu0 0.0
        %1931 = vmatpush1.msra.mxu0 0.0
        %1932 = vmatprep.subr.mxu0 0.0
        %1933 = vmatpush1.msra.mxu0 0.0
        %1934 = vmatprep.subr.mxu0 0.0
        %1935 = vmatpush1.msra.mxu0 0.0
        %1936 = vmatprep.subr.mxu0 0.0
        %1937 = vmatpush1.msra.mxu0 0.0
        %1938 = vmatprep.subr.mxu0 0.0
        %1939 = vmatpush1.msra.mxu0 0.0
        %1940 = vmatprep.subr.mxu0 0.0
        %1941 = vmatpush1.msra.mxu0 0.0
        %1942 = vmatprep.subr.mxu0 0.0
        %1943 = vmatpush1.msra.mxu0 0.0
        %1944 = vmatprep.subr.mxu0 0.0
        %1945 = vmatpush1.msra.mxu0 0.0
        %1946 = vmatprep.subr.mxu0 0.0
        %1947 = vmatpush1.msra.mxu0 0.0
        %1948 = vmatprep.subr.mxu0 0.0
        %1949 = vmatpush1.msra.mxu0 0.0
        %1950 = vmatprep.subr.mxu0 0.0
        %1951 = vmatpush1.msra.mxu0 0.0
        %1952 = vmatprep.subr.mxu0 0.0
        %1953 = vmatpush1.msra.mxu0 0.0
        %1954 = vmatprep.subr.mxu0 0.0
        %1955 = vmatpush1.msra.mxu0 0.0
        %1956 = vmatprep.subr.mxu0 0.0
        %1957 = vmatpush1.msra.mxu0 0.0
        %1958 = vmatprep.subr.mxu0 0.0
        %1959 = vmatpush1.msra.mxu0 0.0
        %1960 = vmatprep.mubr.f32.mxu0 0.0
        %1961 = vmatmul.mubr.f32.gmra.mrb[0].mxu0 %v512
        %v1962 = vpop.f32.mrb[0].mxu0
        %v1963 = vadd.f32 0.0, %v1962
        %v1964 = vpop.f32.mrb[0].mxu0
        %1965 = vdwg.mxu0
        %s1966 = scalar_lea.vmem %s3, 96
        %v1967 = vld [vmem:[%s1966] sm:$0xff]
        %v1968 = vld [vmem:[%s1966 + $0x8] sm:$0xff]
        %v1969 = vld [vmem:[%s1966 + $0x10] sm:$0xff]
        %v1970 = vld [vmem:[%s1966 + $0x18] sm:$0xff]
        %1971 = vmatprep.subr.mxu0 0.0
        %1972 = vmatpush1.msra.mxu0 %v1967
        %1973 = vmatprep.subr.mxu0 0.0
        %1974 = vmatpush1.msra.mxu0 %v1968
        %1975 = vmatprep.subr.mxu0 0.0
        %1976 = vmatpush1.msra.mxu0 %v1969
        %1977 = vmatprep.subr.mxu0 0.0
        %1978 = vmatpush1.msra.mxu0 %v1970
        %1979 = vmatprep.subr.mxu0 0.0
        %1980 = vmatpush1.msra.mxu0 0.0
        %1981 = vmatprep.subr.mxu0 0.0
        %1982 = vmatpush1.msra.mxu0 0.0
        %1983 = vmatprep.subr.mxu0 0.0
        %1984 = vmatpush1.msra.mxu0 0.0
        %1985 = vmatprep.subr.mxu0 0.0
        %1986 = vmatpush1.msra.mxu0 0.0
        %1987 = vmatprep.subr.mxu0 0.0
        %1988 = vmatpush1.msra.mxu0 0.0
        %1989 = vmatprep.subr.mxu0 0.0
        %1990 = vmatpush1.msra.mxu0 0.0
        %1991 = vmatprep.subr.mxu0 0.0
        %1992 = vmatpush1.msra.mxu0 0.0
        %1993 = vmatprep.subr.mxu0 0.0
        %1994 = vmatpush1.msra.mxu0 0.0
        %1995 = vmatprep.subr.mxu0 0.0
        %1996 = vmatpush1.msra.mxu0 0.0
        %1997 = vmatprep.subr.mxu0 0.0
        %1998 = vmatpush1.msra.mxu0 0.0
        %1999 = vmatprep.subr.mxu0 0.0
        %2000 = vmatpush1.msra.mxu0 0.0
        %2001 = vmatprep.subr.mxu0 0.0
        %2002 = vmatpush1.msra.mxu0 0.0
        %2003 = vmatprep.subr.mxu0 0.0
        %2004 = vmatpush1.msra.mxu0 0.0
        %2005 = vmatprep.subr.mxu0 0.0
        %2006 = vmatpush1.msra.mxu0 0.0
        %2007 = vmatprep.subr.mxu0 0.0
        %2008 = vmatpush1.msra.mxu0 0.0
        %2009 = vmatprep.subr.mxu0 0.0
        %2010 = vmatpush1.msra.mxu0 0.0
        %2011 = vmatprep.subr.mxu0 0.0
        %2012 = vmatpush1.msra.mxu0 0.0
        %2013 = vmatprep.subr.mxu0 0.0
        %2014 = vmatpush1.msra.mxu0 0.0
        %2015 = vmatprep.subr.mxu0 0.0
        %2016 = vmatpush1.msra.mxu0 0.0
        %2017 = vmatprep.subr.mxu0 0.0
        %2018 = vmatpush1.msra.mxu0 0.0
        %2019 = vmatprep.subr.mxu0 0.0
        %2020 = vmatpush1.msra.mxu0 0.0
        %2021 = vmatprep.subr.mxu0 0.0
        %2022 = vmatpush1.msra.mxu0 0.0
        %2023 = vmatprep.subr.mxu0 0.0
        %2024 = vmatpush1.msra.mxu0 0.0
        %2025 = vmatprep.subr.mxu0 0.0
        %2026 = vmatpush1.msra.mxu0 0.0
        %2027 = vmatprep.subr.mxu0 0.0
        %2028 = vmatpush1.msra.mxu0 0.0
        %2029 = vmatprep.subr.mxu0 0.0
        %2030 = vmatpush1.msra.mxu0 0.0
        %2031 = vmatprep.subr.mxu0 0.0
        %2032 = vmatpush1.msra.mxu0 0.0
        %2033 = vmatprep.subr.mxu0 0.0
        %2034 = vmatpush1.msra.mxu0 0.0
        %2035 = vmatprep.mubr.f32.mxu0 0.0
        %2036 = vmatmul.mubr.f32.gmra.mrb[0].mxu0 %v512
        %v2037 = vpop.f32.mrb[0].mxu0
        %v2038 = vadd.f32 0.0, %v2037
        %v2039 = vpop.f32.mrb[0].mxu0
        %2040 = vdwg.mxu0
        %s2041 = scalar_lea.vmem %s4, 96
        %v2042 = vld [vmem:[%s2041] sm:$0xff]
        %v2043 = vld [vmem:[%s2041 + $0x8] sm:$0xff]
        %v2044 = vld [vmem:[%s2041 + $0x10] sm:$0xff]
        %v2045 = vld [vmem:[%s2041 + $0x18] sm:$0xff]
        %2046 = vmatprep.subr.mxu0 0.0
        %2047 = vmatpush1.msra.mxu0 %v2042
        %2048 = vmatprep.subr.mxu0 0.0
        %2049 = vmatpush1.msra.mxu0 %v2043
        %2050 = vmatprep.subr.mxu0 0.0
        %2051 = vmatpush1.msra.mxu0 %v2044
        %2052 = vmatprep.subr.mxu0 0.0
        %2053 = vmatpush1.msra.mxu0 %v2045
        %2054 = vmatprep.subr.mxu0 0.0
        %2055 = vmatpush1.msra.mxu0 0.0
        %2056 = vmatprep.subr.mxu0 0.0
        %2057 = vmatpush1.msra.mxu0 0.0
        %2058 = vmatprep.subr.mxu0 0.0
        %2059 = vmatpush1.msra.mxu0 0.0
        %2060 = vmatprep.subr.mxu0 0.0
        %2061 = vmatpush1.msra.mxu0 0.0
        %2062 = vmatprep.subr.mxu0 0.0
        %2063 = vmatpush1.msra.mxu0 0.0
        %2064 = vmatprep.subr.mxu0 0.0
        %2065 = vmatpush1.msra.mxu0 0.0
        %2066 = vmatprep.subr.mxu0 0.0
        %2067 = vmatpush1.msra.mxu0 0.0
        %2068 = vmatprep.subr.mxu0 0.0
        %2069 = vmatpush1.msra.mxu0 0.0
        %2070 = vmatprep.subr.mxu0 0.0
        %2071 = vmatpush1.msra.mxu0 0.0
        %2072 = vmatprep.subr.mxu0 0.0
        %2073 = vmatpush1.msra.mxu0 0.0
        %2074 = vmatprep.subr.mxu0 0.0
        %2075 = vmatpush1.msra.mxu0 0.0
        %2076 = vmatprep.subr.mxu0 0.0
        %2077 = vmatpush1.msra.mxu0 0.0
        %2078 = vmatprep.subr.mxu0 0.0
        %2079 = vmatpush1.msra.mxu0 0.0
        %2080 = vmatprep.subr.mxu0 0.0
        %2081 = vmatpush1.msra.mxu0 0.0
        %2082 = vmatprep.subr.mxu0 0.0
        %2083 = vmatpush1.msra.mxu0 0.0
        %2084 = vmatprep.subr.mxu0 0.0
        %2085 = vmatpush1.msra.mxu0 0.0
        %2086 = vmatprep.subr.mxu0 0.0
        %2087 = vmatpush1.msra.mxu0 0.0
        %2088 = vmatprep.subr.mxu0 0.0
        %2089 = vmatpush1.msra.mxu0 0.0
        %2090 = vmatprep.subr.mxu0 0.0
        %2091 = vmatpush1.msra.mxu0 0.0
        %2092 = vmatprep.subr.mxu0 0.0
        %2093 = vmatpush1.msra.mxu0 0.0
        %2094 = vmatprep.subr.mxu0 0.0
        %2095 = vmatpush1.msra.mxu0 0.0
        %2096 = vmatprep.subr.mxu0 0.0
        %2097 = vmatpush1.msra.mxu0 0.0
        %2098 = vmatprep.subr.mxu0 0.0
        %2099 = vmatpush1.msra.mxu0 0.0
        %2100 = vmatprep.subr.mxu0 0.0
        %2101 = vmatpush1.msra.mxu0 0.0
        %2102 = vmatprep.subr.mxu0 0.0
        %2103 = vmatpush1.msra.mxu0 0.0
        %2104 = vmatprep.subr.mxu0 0.0
        %2105 = vmatpush1.msra.mxu0 0.0
        %2106 = vmatprep.subr.mxu0 0.0
        %2107 = vmatpush1.msra.mxu0 0.0
        %2108 = vmatprep.subr.mxu0 0.0
        %2109 = vmatpush1.msra.mxu0 0.0
        %2110 = vmatprep.mubr.f32.mxu0 0.0
        %2111 = vmatmul.mubr.f32.gmra.mrb[0].mxu0 %v512
        %v2112 = vpop.f32.mrb[0].mxu0
        %v2113 = vadd.f32 0.0, %v2112
        %v2114 = vpop.f32.mrb[0].mxu0
        %2115 = vdwg.mxu0
        %v2117 = vsel %vm732, %v1963, 0
        %v2120 = vsel %vm732, %v2038, 0
        %2122 = vmatprep.subr.mxu0 0.0
        %2123 = vmatpush1.xpose.msra.mxu0 %v2120
        %2124 = vmatprep.subr.mxu0 0.0
        %2125 = vmatpush1.xpose.msra.mxu0 0.0
        %2126 = vmatprep.subr.mxu0 0.0
        %2127 = vmatpush1.xpose.msra.mxu0 0.0
        %2128 = vmatprep.subr.mxu0 0.0
        %2129 = vmatpush1.xpose.msra.mxu0 0.0
        %2130 = vmatprep.subr.mxu0 0.0
        %2131 = vmatpush1.xpose.msra.mxu0 0.0
        %2132 = vmatprep.subr.mxu0 0.0
        %2133 = vmatpush1.xpose.msra.mxu0 0.0
        %2134 = vmatprep.subr.mxu0 0.0
        %2135 = vmatpush1.xpose.msra.mxu0 0.0
        %2136 = vmatprep.subr.mxu0 0.0
        %2137 = vmatpush1.xpose.msra.mxu0 0.0
        %2138 = vmatprep.subr.mxu0 0.0
        %2139 = vmatpush1.xpose.msra.mxu0 0.0
        %2140 = vmatprep.subr.mxu0 0.0
        %2141 = vmatpush1.xpose.msra.mxu0 0.0
        %2142 = vmatprep.subr.mxu0 0.0
        %2143 = vmatpush1.xpose.msra.mxu0 0.0
        %2144 = vmatprep.subr.mxu0 0.0
        %2145 = vmatpush1.xpose.msra.mxu0 0.0
        %2146 = vmatprep.subr.mxu0 0.0
        %2147 = vmatpush1.xpose.msra.mxu0 0.0
        %2148 = vmatprep.subr.mxu0 0.0
        %2149 = vmatpush1.xpose.msra.mxu0 0.0
        %2150 = vmatprep.subr.mxu0 0.0
        %2151 = vmatpush1.xpose.msra.mxu0 0.0
        %2152 = vmatprep.subr.mxu0 0.0
        %2153 = vmatpush1.xpose.msra.mxu0 0.0
        %2154 = vmatprep.subr.mxu0 0.0
        %2155 = vmatpush1.xpose.msra.mxu0 0.0
        %2156 = vmatprep.subr.mxu0 0.0
        %2157 = vmatpush1.xpose.msra.mxu0 0.0
        %2158 = vmatprep.subr.mxu0 0.0
        %2159 = vmatpush1.xpose.msra.mxu0 0.0
        %2160 = vmatprep.subr.mxu0 0.0
        %2161 = vmatpush1.xpose.msra.mxu0 0.0
        %2162 = vmatprep.subr.mxu0 0.0
        %2163 = vmatpush1.xpose.msra.mxu0 0.0
        %2164 = vmatprep.subr.mxu0 0.0
        %2165 = vmatpush1.xpose.msra.mxu0 0.0
        %2166 = vmatprep.subr.mxu0 0.0
        %2167 = vmatpush1.xpose.msra.mxu0 0.0
        %2168 = vmatprep.subr.mxu0 0.0
        %2169 = vmatpush1.xpose.msra.mxu0 0.0
        %2170 = vmatprep.subr.mxu0 0.0
        %2171 = vmatpush1.xpose.msra.mxu0 0.0
        %2172 = vmatprep.subr.mxu0 0.0
        %2173 = vmatpush1.xpose.msra.mxu0 0.0
        %2174 = vmatprep.subr.mxu0 0.0
        %2175 = vmatpush1.xpose.msra.mxu0 0.0
        %2176 = vmatprep.subr.mxu0 0.0
        %2177 = vmatpush1.xpose.msra.mxu0 0.0
        %2178 = vmatprep.subr.mxu0 0.0
        %2179 = vmatpush1.xpose.msra.mxu0 0.0
        %2180 = vmatprep.subr.mxu0 0.0
        %2181 = vmatpush1.xpose.msra.mxu0 0.0
        %2182 = vmatprep.subr.mxu0 0.0
        %2183 = vmatpush1.xpose.msra.mxu0 0.0
        %2184 = vmatprep.subr.mxu0 0.0
        %2185 = vmatpush1.xpose.msra.mxu0 0.0
        %2186 = vmatprep.mubr.f32.mxu0 0.0
        %2187 = vmatmul.mubr.f32.gmra.mrb[0].mxu0 %v2117
        %v2188 = vpop.f32.mrb[0].mxu0
        %v2189 = vadd.f32 0.0, %v2188
        %v2190 = vpop.f32.mrb[0].mxu0
        %2191 = vdwg.mxu0
        %v2192 = vmul.f32 %v2189, 0.35355338
        %v2193 = vsel %vm732, %v2192, -inf
        %2194 = vmax.xlane.f32.xlu0 %v2193
        %v2195 = vpop.xlane.xlu0 %2194
        %v2196 = vsub.f32 %v2192, %v2195
        %v2197 = vmul.f32 %v2196, 1.442695
        %v2198 = vpow.pop %v2197
        %v2199 = vsel %vm732, %v2198, 0.0
        %2200 = vadd.xlane.f32.xlu0 %v2199
        %v2201 = vpop.xlane.xlu0 %2200
        %v2202 = vrcp.pop %v2201
        %v2203 = vmul.f32 %v2198, %v2202
        %v2205 = vsel %vm732, %v2203, 0
        %2207 = vmatprep.subr.mxu0 0.0
        %2208 = vmatpush1.msra.mxu0 %v2113
        %2209 = vmatprep.subr.mxu0 0.0
        %2210 = vmatpush1.msra.mxu0 0.0
        %2211 = vmatprep.subr.mxu0 0.0
        %2212 = vmatpush1.msra.mxu0 0.0
        %2213 = vmatprep.subr.mxu0 0.0
        %2214 = vmatpush1.msra.mxu0 0.0
        %2215 = vmatprep.subr.mxu0 0.0
        %2216 = vmatpush1.msra.mxu0 0.0
        %2217 = vmatprep.subr.mxu0 0.0
        %2218 = vmatpush1.msra.mxu0 0.0
        %2219 = vmatprep.subr.mxu0 0.0
        %2220 = vmatpush1.msra.mxu0 0.0
        %2221 = vmatprep.subr.mxu0 0.0
        %2222 = vmatpush1.msra.mxu0 0.0
        %2223 = vmatprep.subr.mxu0 0.0
        %2224 = vmatpush1.msra.mxu0 0.0
        %2225 = vmatprep.subr.mxu0 0.0
        %2226 = vmatpush1.msra.mxu0 0.0
        %2227 = vmatprep.subr.mxu0 0.0
        %2228 = vmatpush1.msra.mxu0 0.0
        %2229 = vmatprep.subr.mxu0 0.0
        %2230 = vmatpush1.msra.mxu0 0.0
        %2231 = vmatprep.subr.mxu0 0.0
        %2232 = vmatpush1.msra.mxu0 0.0
        %2233 = vmatprep.subr.mxu0 0.0
        %2234 = vmatpush1.msra.mxu0 0.0
        %2235 = vmatprep.subr.mxu0 0.0
        %2236 = vmatpush1.msra.mxu0 0.0
        %2237 = vmatprep.subr.mxu0 0.0
        %2238 = vmatpush1.msra.mxu0 0.0
        %2239 = vmatprep.subr.mxu0 0.0
        %2240 = vmatpush1.msra.mxu0 0.0
        %2241 = vmatprep.subr.mxu0 0.0
        %2242 = vmatpush1.msra.mxu0 0.0
        %2243 = vmatprep.subr.mxu0 0.0
        %2244 = vmatpush1.msra.mxu0 0.0
        %2245 = vmatprep.subr.mxu0 0.0
        %2246 = vmatpush1.msra.mxu0 0.0
        %2247 = vmatprep.subr.mxu0 0.0
        %2248 = vmatpush1.msra.mxu0 0.0
        %2249 = vmatprep.subr.mxu0 0.0
        %2250 = vmatpush1.msra.mxu0 0.0
        %2251 = vmatprep.subr.mxu0 0.0
        %2252 = vmatpush1.msra.mxu0 0.0
        %2253 = vmatprep.subr.mxu0 0.0
        %2254 = vmatpush1.msra.mxu0 0.0
        %2255 = vmatprep.subr.mxu0 0.0
        %2256 = vmatpush1.msra.mxu0 0.0
        %2257 = vmatprep.subr.mxu0 0.0
        %2258 = vmatpush1.msra.mxu0 0.0
        %2259 = vmatprep.subr.mxu0 0.0
        %2260 = vmatpush1.msra.mxu0 0.0
        %2261 = vmatprep.subr.mxu0 0.0
        %2262 = vmatpush1.msra.mxu0 0.0
        %2263 = vmatprep.subr.mxu0 0.0
        %2264 = vmatpush1.msra.mxu0 0.0
        %2265 = vmatprep.subr.mxu0 0.0
        %2266 = vmatpush1.msra.mxu0 0.0
        %2267 = vmatprep.subr.mxu0 0.0
        %2268 = vmatpush1.msra.mxu0 0.0
        %2269 = vmatprep.subr.mxu0 0.0
        %2270 = vmatpush1.msra.mxu0 0.0
        %2271 = vmatprep.mubr.f32.mxu0 0.0
        %2272 = vmatmul.mubr.f32.gmra.mrb[0].mxu0 %v2205
        %v2273 = vpop.f32.mrb[0].mxu0
        %v2274 = vadd.f32 0.0, %v2273
        %v2275 = vpop.f32.mrb[0].mxu0
        %2276 = vdwg.mxu0
        %s2277 = scalar_lea.vmem %s5, 24
        %v2278 = vld [vmem:[%s2277] sm:$0xff]
        %v2280 = vsel %vm732, %v2274, 0
        %2282 = vmatprep.subr.mxu0 0.0
        %2283 = vmatpush1.msra.mxu0 %v2278
        %2284 = vmatprep.subr.mxu0 0.0
        %2285 = vmatpush1.msra.mxu0 0.0
        %2286 = vmatprep.subr.mxu0 0.0
        %2287 = vmatpush1.msra.mxu0 0.0
        %2288 = vmatprep.subr.mxu0 0.0
        %2289 = vmatpush1.msra.mxu0 0.0
        %2290 = vmatprep.subr.mxu0 0.0
        %2291 = vmatpush1.msra.mxu0 0.0
        %2292 = vmatprep.subr.mxu0 0.0
        %2293 = vmatpush1.msra.mxu0 0.0
        %2294 = vmatprep.subr.mxu0 0.0
        %2295 = vmatpush1.msra.mxu0 0.0
        %2296 = vmatprep.subr.mxu0 0.0
        %2297 = vmatpush1.msra.mxu0 0.0
        %2298 = vmatprep.subr.mxu0 0.0
        %2299 = vmatpush1.msra.mxu0 0.0
        %2300 = vmatprep.subr.mxu0 0.0
        %2301 = vmatpush1.msra.mxu0 0.0
        %2302 = vmatprep.subr.mxu0 0.0
        %2303 = vmatpush1.msra.mxu0 0.0
        %2304 = vmatprep.subr.mxu0 0.0
        %2305 = vmatpush1.msra.mxu0 0.0
        %2306 = vmatprep.subr.mxu0 0.0
        %2307 = vmatpush1.msra.mxu0 0.0
        %2308 = vmatprep.subr.mxu0 0.0
        %2309 = vmatpush1.msra.mxu0 0.0
        %2310 = vmatprep.subr.mxu0 0.0
        %2311 = vmatpush1.msra.mxu0 0.0
        %2312 = vmatprep.subr.mxu0 0.0
        %2313 = vmatpush1.msra.mxu0 0.0
        %2314 = vmatprep.subr.mxu0 0.0
        %2315 = vmatpush1.msra.mxu0 0.0
        %2316 = vmatprep.subr.mxu0 0.0
        %2317 = vmatpush1.msra.mxu0 0.0
        %2318 = vmatprep.subr.mxu0 0.0
        %2319 = vmatpush1.msra.mxu0 0.0
        %2320 = vmatprep.subr.mxu0 0.0
        %2321 = vmatpush1.msra.mxu0 0.0
        %2322 = vmatprep.subr.mxu0 0.0
        %2323 = vmatpush1.msra.mxu0 0.0
        %2324 = vmatprep.subr.mxu0 0.0
        %2325 = vmatpush1.msra.mxu0 0.0
        %2326 = vmatprep.subr.mxu0 0.0
        %2327 = vmatpush1.msra.mxu0 0.0
        %2328 = vmatprep.subr.mxu0 0.0
        %2329 = vmatpush1.msra.mxu0 0.0
        %2330 = vmatprep.subr.mxu0 0.0
        %2331 = vmatpush1.msra.mxu0 0.0
        %2332 = vmatprep.subr.mxu0 0.0
        %2333 = vmatpush1.msra.mxu0 0.0
        %2334 = vmatprep.subr.mxu0 0.0
        %2335 = vmatpush1.msra.mxu0 0.0
        %2336 = vmatprep.subr.mxu0 0.0
        %2337 = vmatpush1.msra.mxu0 0.0
        %2338 = vmatprep.subr.mxu0 0.0
        %2339 = vmatpush1.msra.mxu0 0.0
        %2340 = vmatprep.subr.mxu0 0.0
        %2341 = vmatpush1.msra.mxu0 0.0
        %2342 = vmatprep.subr.mxu0 0.0
        %2343 = vmatpush1.msra.mxu0 0.0
        %2344 = vmatprep.subr.mxu0 0.0
        %2345 = vmatpush1.msra.mxu0 0.0
        %2346 = vmatprep.mubr.f32.mxu0 0.0
        %2347 = vmatmul.mubr.f32.gmra.mrb[0].mxu0 %v2280
        %v2348 = vpop.f32.mrb[0].mxu0
        %v2349 = vadd.f32 0.0, %v2348
        %v2350 = vpop.f32.mrb[0].mxu0
        %2351 = vdwg.mxu0
        %v2352 = vadd.f32 %v1890, %v2349
        %v2353 = vadd.f32 %v494, %v2352
        %v2354 = vlaneseq
        %v2355 = vshrl.u32 %v2354, 7
        %v2356 = vsub.s32 0, %v2355
        %v2357 = vrot.slane %v2353, %v2356
        %v2358 = vlaneseq
        %v2359 = vshrl.u32 %v2358, 7
        %v2360 = vsub.s32 7, %v2359
        %v2361 = vrot.slane %v2353, %v2360
        %v2363 = vrot.slane %v2353, 4
        %vm2365 = vcmask 1043456
        %v2366 = vsel %vm2365, %v2357, %v2363
        %v2367 = vsel %vm2365, %v2363, %v2361
        %v2369 = vsel %vm510, %v505, 0
        %2371 = vmatprep.subr.mxu0 0.0
        %2372 = vmatpush1.msra.mxu0 %v2357
        %2373 = vmatprep.subr.mxu0 0.0
        %2374 = vmatpush1.msra.mxu0 %v2366
        %2375 = vmatprep.subr.mxu0 0.0
        %2376 = vmatpush1.msra.mxu0 %v2367
        %2377 = vmatprep.subr.mxu0 0.0
        %2378 = vmatpush1.msra.mxu0 %v2361
        %2379 = vmatprep.subr.mxu0 0.0
        %2380 = vmatpush1.msra.mxu0 0.0
        %2381 = vmatprep.subr.mxu0 0.0
        %2382 = vmatpush1.msra.mxu0 0.0
        %2383 = vmatprep.subr.mxu0 0.0
        %2384 = vmatpush1.msra.mxu0 0.0
        %2385 = vmatprep.subr.mxu0 0.0
        %2386 = vmatpush1.msra.mxu0 0.0
        %2387 = vmatprep.subr.mxu0 0.0
        %2388 = vmatpush1.msra.mxu0 0.0
        %2389 = vmatprep.subr.mxu0 0.0
        %2390 = vmatpush1.msra.mxu0 0.0
        %2391 = vmatprep.subr.mxu0 0.0
        %2392 = vmatpush1.msra.mxu0 0.0
        %2393 = vmatprep.subr.mxu0 0.0
        %2394 = vmatpush1.msra.mxu0 0.0
        %2395 = vmatprep.subr.mxu0 0.0
        %2396 = vmatpush1.msra.mxu0 0.0
        %2397 = vmatprep.subr.mxu0 0.0
        %2398 = vmatpush1.msra.mxu0 0.0
        %2399 = vmatprep.subr.mxu0 0.0
        %2400 = vmatpush1.msra.mxu0 0.0
        %2401 = vmatprep.subr.mxu0 0.0
        %2402 = vmatpush1.msra.mxu0 0.0
        %2403 = vmatprep.subr.mxu0 0.0
        %2404 = vmatpush1.msra.mxu0 0.0
        %2405 = vmatprep.subr.mxu0 0.0
        %2406 = vmatpush1.msra.mxu0 0.0
        %2407 = vmatprep.subr.mxu0 0.0
        %2408 = vmatpush1.msra.mxu0 0.0
        %2409 = vmatprep.subr.mxu0 0.0
        %2410 = vmatpush1.msra.mxu0 0.0
        %2411 = vmatprep.subr.mxu0 0.0
        %2412 = vmatpush1.msra.mxu0 0.0
        %2413 = vmatprep.subr.mxu0 0.0
        %2414 = vmatpush1.msra.mxu0 0.0
        %2415 = vmatprep.subr.mxu0 0.0
        %2416 = vmatpush1.msra.mxu0 0.0
        %2417 = vmatprep.subr.mxu0 0.0
        %2418 = vmatpush1.msra.mxu0 0.0
        %2419 = vmatprep.subr.mxu0 0.0
        %2420 = vmatpush1.msra.mxu0 0.0
        %2421 = vmatprep.subr.mxu0 0.0
        %2422 = vmatpush1.msra.mxu0 0.0
        %2423 = vmatprep.subr.mxu0 0.0
        %2424 = vmatpush1.msra.mxu0 0.0
        %2425 = vmatprep.subr.mxu0 0.0
        %2426 = vmatpush1.msra.mxu0 0.0
        %2427 = vmatprep.subr.mxu0 0.0
        %2428 = vmatpush1.msra.mxu0 0.0
        %2429 = vmatprep.subr.mxu0 0.0
        %2430 = vmatpush1.msra.mxu0 0.0
        %2431 = vmatprep.subr.mxu0 0.0
        %2432 = vmatpush1.msra.mxu0 0.0
        %2433 = vmatprep.subr.mxu0 0.0
        %2434 = vmatpush1.msra.mxu0 0.0
        %2435 = vmatprep.mubr.f32.mxu0 0.0
        %2436 = vmatmul.mubr.f32.gmra.mrb[0].mxu0 %v2369
        %v2437 = vpop.f32.mrb[0].mxu0
        %v2438 = vadd.f32 0.0, %v2437
        %v2439 = vpop.f32.mrb[0].mxu0
        %2440 = vdwg.mxu0
        %v2441 = vsub.f32 %v2353, %v2438
        %v2442 = vld [vmem:[%s6] sm:$0xff]
        %v2443 = vld [vmem:[%s6 + $0x8] sm:$0xff]
        %v2444 = vld [vmem:[%s6 + $0x10] sm:$0xff]
        %v2445 = vld [vmem:[%s6 + $0x18] sm:$0xff]
        %v2447 = vsel %vm510, %v2441, 0
        %2449 = vmatprep.subr.mxu0 0.0
        %2450 = vmatpush1.msra.mxu0 %v2442
        %2451 = vmatprep.subr.mxu0 0.0
        %2452 = vmatpush1.msra.mxu0 %v2443
        %2453 = vmatprep.subr.mxu0 0.0
        %2454 = vmatpush1.msra.mxu0 %v2444
        %2455 = vmatprep.subr.mxu0 0.0
        %2456 = vmatpush1.msra.mxu0 %v2445
        %2457 = vmatprep.subr.mxu0 0.0
        %2458 = vmatpush1.msra.mxu0 0.0
        %2459 = vmatprep.subr.mxu0 0.0
        %2460 = vmatpush1.msra.mxu0 0.0
        %2461 = vmatprep.subr.mxu0 0.0
        %2462 = vmatpush1.msra.mxu0 0.0
        %2463 = vmatprep.subr.mxu0 0.0
        %2464 = vmatpush1.msra.mxu0 0.0
        %2465 = vmatprep.subr.mxu0 0.0
        %2466 = vmatpush1.msra.mxu0 0.0
        %2467 = vmatprep.subr.mxu0 0.0
        %2468 = vmatpush1.msra.mxu0 0.0
        %2469 = vmatprep.subr.mxu0 0.0
        %2470 = vmatpush1.msra.mxu0 0.0
        %2471 = vmatprep.subr.mxu0 0.0
        %2472 = vmatpush1.msra.mxu0 0.0
        %2473 = vmatprep.subr.mxu0 0.0
        %2474 = vmatpush1.msra.mxu0 0.0
        %2475 = vmatprep.subr.mxu0 0.0
        %2476 = vmatpush1.msra.mxu0 0.0
        %2477 = vmatprep.subr.mxu0 0.0
        %2478 = vmatpush1.msra.mxu0 0.0
        %2479 = vmatprep.subr.mxu0 0.0
        %2480 = vmatpush1.msra.mxu0 0.0
        %2481 = vmatprep.subr.mxu0 0.0
        %2482 = vmatpush1.msra.mxu0 0.0
        %2483 = vmatprep.subr.mxu0 0.0
        %2484 = vmatpush1.msra.mxu0 0.0
        %2485 = vmatprep.subr.mxu0 0.0
        %2486 = vmatpush1.msra.mxu0 0.0
        %2487 = vmatprep.subr.mxu0 0.0
        %2488 = vmatpush1.msra.mxu0 0.0
        %2489 = vmatprep.subr.mxu0 0.0
        %2490 = vmatpush1.msra.mxu0 0.0
        %2491 = vmatprep.subr.mxu0 0.0
        %2492 = vmatpush1.msra.mxu0 0.0
        %2493 = vmatprep.subr.mxu0 0.0
        %2494 = vmatpush1.msra.mxu0 0.0
        %2495 = vmatprep.subr.mxu0 0.0
        %2496 = vmatpush1.msra.mxu0 0.0
        %2497 = vmatprep.subr.mxu0 0.0
        %2498 = vmatpush1.msra.mxu0 0.0
        %2499 = vmatprep.subr.mxu0 0.0
        %2500 = vmatpush1.msra.mxu0 0.0
        %2501 = vmatprep.subr.mxu0 0.0
        %2502 = vmatpush1.msra.mxu0 0.0
        %2503 = vmatprep.subr.mxu0 0.0
        %2504 = vmatpush1.msra.mxu0 0.0
        %2505 = vmatprep.subr.mxu0 0.0
        %2506 = vmatpush1.msra.mxu0 0.0
        %2507 = vmatprep.subr.mxu0 0.0
        %2508 = vmatpush1.msra.mxu0 0.0
        %2509 = vmatprep.subr.mxu0 0.0
        %2510 = vmatpush1.msra.mxu0 0.0
        %2511 = vmatprep.subr.mxu0 0.0
        %2512 = vmatpush1.msra.mxu0 0.0
        %2513 = vmatprep.mubr.f32.mxu0 0.0
        %2514 = vmatmul.mubr.f32.gmra.mrb[0].mxu0 %v2447
        %v2515 = vpop.f32.mrb[0].mxu0
        %v2516 = vadd.f32 0.0, %v2515
        %v2517 = vpop.f32.mrb[0].mxu0
        %2518 = vdwg.mxu0
        %v2519 = vld [vmem:[%s7] sm:$0xff]
        %v2520 = vld [vmem:[%s7 + $0x8] sm:$0xff]
        %v2521 = vld [vmem:[%s7 + $0x10] sm:$0xff]
        %v2522 = vld [vmem:[%s7 + $0x18] sm:$0xff]
        %v2524 = vsel %vm510, %v495, 0
        %v2527 = vsel %vm510, %v496, 0
        %2529 = vmatprep.subr.mxu0 0.0
        %2530 = vmatpush1.msra.mxu0 %v2519
        %2531 = vmatprep.subr.mxu0 0.0
        %2532 = vmatpush1.msra.mxu0 %v2520
        %2533 = vmatprep.subr.mxu0 0.0
        %2534 = vmatpush1.msra.mxu0 %v2521
        %2535 = vmatprep.subr.mxu0 0.0
        %2536 = vmatpush1.msra.mxu0 %v2522
        %2537 = vmatprep.subr.mxu0 0.0
        %2538 = vmatpush1.msra.mxu0 0.0
        %2539 = vmatprep.subr.mxu0 0.0
        %2540 = vmatpush1.msra.mxu0 0.0
        %2541 = vmatprep.subr.mxu0 0.0
        %2542 = vmatpush1.msra.mxu0 0.0
        %2543 = vmatprep.subr.mxu0 0.0
        %2544 = vmatpush1.msra.mxu0 0.0
        %2545 = vmatprep.subr.mxu0 0.0
        %2546 = vmatpush1.msra.mxu0 0.0
        %2547 = vmatprep.subr.mxu0 0.0
        %2548 = vmatpush1.msra.mxu0 0.0
        %2549 = vmatprep.subr.mxu0 0.0
        %2550 = vmatpush1.msra.mxu0 0.0
        %2551 = vmatprep.subr.mxu0 0.0
        %2552 = vmatpush1.msra.mxu0 0.0
        %2553 = vmatprep.subr.mxu0 0.0
        %2554 = vmatpush1.msra.mxu0 0.0
        %2555 = vmatprep.subr.mxu0 0.0
        %2556 = vmatpush1.msra.mxu0 0.0
        %2557 = vmatprep.subr.mxu0 0.0
        %2558 = vmatpush1.msra.mxu0 0.0
        %2559 = vmatprep.subr.mxu0 0.0
        %2560 = vmatpush1.msra.mxu0 0.0
        %2561 = vmatprep.subr.mxu0 0.0
        %2562 = vmatpush1.msra.mxu0 0.0
        %2563 = vmatprep.subr.mxu0 0.0
        %2564 = vmatpush1.msra.mxu0 0.0
        %2565 = vmatprep.subr.mxu0 0.0
        %2566 = vmatpush1.msra.mxu0 0.0
        %2567 = vmatprep.subr.mxu0 0.0
        %2568 = vmatpush1.msra.mxu0 0.0
        %2569 = vmatprep.subr.mxu0 0.0
        %2570 = vmatpush1.msra.mxu0 0.0
        %2571 = vmatprep.subr.mxu0 0.0
        %2572 = vmatpush1.msra.mxu0 0.0
        %2573 = vmatprep.subr.mxu0 0.0
        %2574 = vmatpush1.msra.mxu0 0.0
        %2575 = vmatprep.subr.mxu0 0.0
        %2576 = vmatpush1.msra.mxu0 0.0
        %2577 = vmatprep.subr.mxu0 0.0
        %2578 = vmatpush1.msra.mxu0 0.0
        %2579 = vmatprep.subr.mxu0 0.0
        %2580 = vmatpush1.msra.mxu0 0.0
        %2581 = vmatprep.subr.mxu0 0.0
        %2582 = vmatpush1.msra.mxu0 0.0
        %2583 = vmatprep.subr.mxu0 0.0
        %2584 = vmatpush1.msra.mxu0 0.0
        %2585 = vmatprep.subr.mxu0 0.0
        %2586 = vmatpush1.msra.mxu0 0.0
        %2587 = vmatprep.subr.mxu0 0.0
        %2588 = vmatpush1.msra.mxu0 0.0
        %2589 = vmatprep.subr.mxu0 0.0
        %2590 = vmatpush1.msra.mxu0 0.0
        %2591 = vmatprep.subr.mxu0 0.0
        %2592 = vmatpush1.msra.mxu0 0.0
        %2593 = vmatprep.mubr.f32.mxu0 0.0
        %2594 = vmatmul.mubr.f32.gmra.mrb[0].mxu0 %v2524
        %v2595 = vpop.f32.mrb[0].mxu0
        %v2596 = vadd.f32 0.0, %v2595
        %v2597 = vpop.f32.mrb[0].mxu0
        %2598 = vmatprep.mubr.f32.mxu0 0.0
        %2599 = vmatmul.mubr.f32.gmra.mrb[0].mxu0 %v2527
        %v2600 = vpop.f32.mrb[0].mxu0
        %v2601 = vadd.f32 0.0, %v2600
        %v2602 = vpop.f32.mrb[0].mxu0
        %2603 = vdwg.mxu0
        %v2604 = vld [vmem:[%s8] sm:$0xff]
        %v2605 = vld [vmem:[%s8 + $0x8] sm:$0xff]
        %v2606 = vld [vmem:[%s8 + $0x10] sm:$0xff]
        %v2607 = vld [vmem:[%s8 + $0x18] sm:$0xff]
        %2608 = vmatprep.subr.mxu0 0.0
        %2609 = vmatpush1.msra.mxu0 %v2604
        %2610 = vmatprep.subr.mxu0 0.0
        %2611 = vmatpush1.msra.mxu0 %v2605
        %2612 = vmatprep.subr.mxu0 0.0
        %2613 = vmatpush1.msra.mxu0 %v2606
        %2614 = vmatprep.subr.mxu0 0.0
        %2615 = vmatpush1.msra.mxu0 %v2607
        %2616 = vmatprep.subr.mxu0 0.0
        %2617 = vmatpush1.msra.mxu0 0.0
        %2618 = vmatprep.subr.mxu0 0.0
        %2619 = vmatpush1.msra.mxu0 0.0
        %2620 = vmatprep.subr.mxu0 0.0
        %2621 = vmatpush1.msra.mxu0 0.0
        %2622 = vmatprep.subr.mxu0 0.0
        %2623 = vmatpush1.msra.mxu0 0.0
        %2624 = vmatprep.subr.mxu0 0.0
        %2625 = vmatpush1.msra.mxu0 0.0
        %2626 = vmatprep.subr.mxu0 0.0
        %2627 = vmatpush1.msra.mxu0 0.0
        %2628 = vmatprep.subr.mxu0 0.0
        %2629 = vmatpush1.msra.mxu0 0.0
        %2630 = vmatprep.subr.mxu0 0.0
        %2631 = vmatpush1.msra.mxu0 0.0
        %2632 = vmatprep.subr.mxu0 0.0
        %2633 = vmatpush1.msra.mxu0 0.0
        %2634 = vmatprep.subr.mxu0 0.0
        %2635 = vmatpush1.msra.mxu0 0.0
        %2636 = vmatprep.subr.mxu0 0.0
        %2637 = vmatpush1.msra.mxu0 0.0
        %2638 = vmatprep.subr.mxu0 0.0
        %2639 = vmatpush1.msra.mxu0 0.0
        %2640 = vmatprep.subr.mxu0 0.0
        %2641 = vmatpush1.msra.mxu0 0.0
        %2642 = vmatprep.subr.mxu0 0.0
        %2643 = vmatpush1.msra.mxu0 0.0
        %2644 = vmatprep.subr.mxu0 0.0
        %2645 = vmatpush1.msra.mxu0 0.0
        %2646 = vmatprep.subr.mxu0 0.0
        %2647 = vmatpush1.msra.mxu0 0.0
        %2648 = vmatprep.subr.mxu0 0.0
        %2649 = vmatpush1.msra.mxu0 0.0
        %2650 = vmatprep.subr.mxu0 0.0
        %2651 = vmatpush1.msra.mxu0 0.0
        %2652 = vmatprep.subr.mxu0 0.0
        %2653 = vmatpush1.msra.mxu0 0.0
        %2654 = vmatprep.subr.mxu0 0.0
        %2655 = vmatpush1.msra.mxu0 0.0
        %2656 = vmatprep.subr.mxu0 0.0
        %2657 = vmatpush1.msra.mxu0 0.0
        %2658 = vmatprep.subr.mxu0 0.0
        %2659 = vmatpush1.msra.mxu0 0.0
        %2660 = vmatprep.subr.mxu0 0.0
        %2661 = vmatpush1.msra.mxu0 0.0
        %2662 = vmatprep.subr.mxu0 0.0
        %2663 = vmatpush1.msra.mxu0 0.0
        %2664 = vmatprep.subr.mxu0 0.0
        %2665 = vmatpush1.msra.mxu0 0.0
        %2666 = vmatprep.subr.mxu0 0.0
        %2667 = vmatpush1.msra.mxu0 0.0
        %2668 = vmatprep.subr.mxu0 0.0
        %2669 = vmatpush1.msra.mxu0 0.0
        %2670 = vmatprep.subr.mxu0 0.0
        %2671 = vmatpush1.msra.mxu0 0.0
        %2672 = vmatprep.mubr.f32.mxu0 0.0
        %2673 = vmatmul.mubr.f32.gmra.mrb[0].mxu0 %v2524
        %v2674 = vpop.f32.mrb[0].mxu0
        %v2675 = vadd.f32 0.0, %v2674
        %v2676 = vpop.f32.mrb[0].mxu0
        %2677 = vmatprep.mubr.f32.mxu0 0.0
        %2678 = vmatmul.mubr.f32.gmra.mrb[0].mxu0 %v2527
        %v2679 = vpop.f32.mrb[0].mxu0
        %v2680 = vadd.f32 0.0, %v2679
        %v2681 = vpop.f32.mrb[0].mxu0
        %2682 = vdwg.mxu0
        %v2684 = vsel %vm732, %v2516, 0
        %v2687 = vsel %vm732, %v2596, 0
        %v2690 = vsel %vm732, %v2601, 0
        %2692 = vmatprep.subr.mxu0 0.0
        %2693 = vmatpush1.xpose.msra.mxu0 %v2687
        %2694 = vmatprep.subr.mxu0 0.0
        %2695 = vmatpush1.xpose.msra.mxu0 %v2690
        %2696 = vmatprep.subr.mxu0 0.0
        %2697 = vmatpush1.xpose.msra.mxu0 0.0
        %2698 = vmatprep.subr.mxu0 0.0
        %2699 = vmatpush1.xpose.msra.mxu0 0.0
        %2700 = vmatprep.subr.mxu0 0.0
        %2701 = vmatpush1.xpose.msra.mxu0 0.0
        %2702 = vmatprep.subr.mxu0 0.0
        %2703 = vmatpush1.xpose.msra.mxu0 0.0
        %2704 = vmatprep.subr.mxu0 0.0
        %2705 = vmatpush1.xpose.msra.mxu0 0.0
        %2706 = vmatprep.subr.mxu0 0.0
        %2707 = vmatpush1.xpose.msra.mxu0 0.0
        %2708 = vmatprep.subr.mxu0 0.0
        %2709 = vmatpush1.xpose.msra.mxu0 0.0
        %2710 = vmatprep.subr.mxu0 0.0
        %2711 = vmatpush1.xpose.msra.mxu0 0.0
        %2712 = vmatprep.subr.mxu0 0.0
        %2713 = vmatpush1.xpose.msra.mxu0 0.0
        %2714 = vmatprep.subr.mxu0 0.0
        %2715 = vmatpush1.xpose.msra.mxu0 0.0
        %2716 = vmatprep.subr.mxu0 0.0
        %2717 = vmatpush1.xpose.msra.mxu0 0.0
        %2718 = vmatprep.subr.mxu0 0.0
        %2719 = vmatpush1.xpose.msra.mxu0 0.0
        %2720 = vmatprep.subr.mxu0 0.0
        %2721 = vmatpush1.xpose.msra.mxu0 0.0
        %2722 = vmatprep.subr.mxu0 0.0
        %2723 = vmatpush1.xpose.msra.mxu0 0.0
        %2724 = vmatprep.subr.mxu0 0.0
        %2725 = vmatpush1.xpose.msra.mxu0 0.0
        %2726 = vmatprep.subr.mxu0 0.0
        %2727 = vmatpush1.xpose.msra.mxu0 0.0
        %2728 = vmatprep.subr.mxu0 0.0
        %2729 = vmatpush1.xpose.msra.mxu0 0.0
        %2730 = vmatprep.subr.mxu0 0.0
        %2731 = vmatpush1.xpose.msra.mxu0 0.0
        %2732 = vmatprep.subr.mxu0 0.0
        %2733 = vmatpush1.xpose.msra.mxu0 0.0
        %2734 = vmatprep.subr.mxu0 0.0
        %2735 = vmatpush1.xpose.msra.mxu0 0.0
        %2736 = vmatprep.subr.mxu0 0.0
        %2737 = vmatpush1.xpose.msra.mxu0 0.0
        %2738 = vmatprep.subr.mxu0 0.0
        %2739 = vmatpush1.xpose.msra.mxu0 0.0
        %2740 = vmatprep.subr.mxu0 0.0
        %2741 = vmatpush1.xpose.msra.mxu0 0.0
        %2742 = vmatprep.subr.mxu0 0.0
        %2743 = vmatpush1.xpose.msra.mxu0 0.0
        %2744 = vmatprep.subr.mxu0 0.0
        %2745 = vmatpush1.xpose.msra.mxu0 0.0
        %2746 = vmatprep.subr.mxu0 0.0
        %2747 = vmatpush1.xpose.msra.mxu0 0.0
        %2748 = vmatprep.subr.mxu0 0.0
        %2749 = vmatpush1.xpose.msra.mxu0 0.0
        %2750 = vmatprep.subr.mxu0 0.0
        %2751 = vmatpush1.xpose.msra.mxu0 0.0
        %2752 = vmatprep.subr.mxu0 0.0
        %2753 = vmatpush1.xpose.msra.mxu0 0.0
        %2754 = vmatprep.subr.mxu0 0.0
        %2755 = vmatpush1.xpose.msra.mxu0 0.0
        %2756 = vmatprep.mubr.f32.mxu0 0.0
        %2757 = vmatmul.mubr.f32.gmra.mrb[0].mxu0 %v2684
        %v2758 = vpop.f32.mrb[0].mxu0
        %v2759 = vadd.f32 0.0, %v2758
        %v2760 = vpop.f32.mrb[0].mxu0
        %2761 = vdwg.mxu0
        %v2762 = vmul.f32 %v2759, 0.35355338
        %vm2763 = vcmask 130048
        %v2764 = vsel %vm2763, %v2762, -inf
        %2765 = vmax.xlane.f32.xlu0 %v2764
        %v2766 = vpop.xlane.xlu0 %2765
        %v2767 = vsub.f32 %v2762, %v2766
        %v2768 = vmul.f32 %v2767, 1.442695
        %v2769 = vpow.pop %v2768
        %v2770 = vsel %vm2763, %v2769, 0.0
        %2771 = vadd.xlane.f32.xlu0 %v2770
        %v2772 = vpop.xlane.xlu0 %2771
        %v2773 = vrcp.pop %v2772
        %v2774 = vmul.f32 %v2769, %v2773
        %v2776 = vsel %vm2763, %v2774, 0
        %2778 = vmatprep.subr.mxu0 0.0
        %2779 = vmatpush1.msra.mxu0 %v2675
        %2780 = vmatprep.subr.mxu0 0.0
        %2781 = vmatpush1.msra.mxu0 %v2680
        %2782 = vmatprep.subr.mxu0 0.0
        %2783 = vmatpush1.msra.mxu0 0.0
        %2784 = vmatprep.subr.mxu0 0.0
        %2785 = vmatpush1.msra.mxu0 0.0
        %2786 = vmatprep.subr.mxu0 0.0
        %2787 = vmatpush1.msra.mxu0 0.0
        %2788 = vmatprep.subr.mxu0 0.0
        %2789 = vmatpush1.msra.mxu0 0.0
        %2790 = vmatprep.subr.mxu0 0.0
        %2791 = vmatpush1.msra.mxu0 0.0
        %2792 = vmatprep.subr.mxu0 0.0
        %2793 = vmatpush1.msra.mxu0 0.0
        %2794 = vmatprep.subr.mxu0 0.0
        %2795 = vmatpush1.msra.mxu0 0.0
        %2796 = vmatprep.subr.mxu0 0.0
        %2797 = vmatpush1.msra.mxu0 0.0
        %2798 = vmatprep.subr.mxu0 0.0
        %2799 = vmatpush1.msra.mxu0 0.0
        %2800 = vmatprep.subr.mxu0 0.0
        %2801 = vmatpush1.msra.mxu0 0.0
        %2802 = vmatprep.subr.mxu0 0.0
        %2803 = vmatpush1.msra.mxu0 0.0
        %2804 = vmatprep.subr.mxu0 0.0
        %2805 = vmatpush1.msra.mxu0 0.0
        %2806 = vmatprep.subr.mxu0 0.0
        %2807 = vmatpush1.msra.mxu0 0.0
        %2808 = vmatprep.subr.mxu0 0.0
        %2809 = vmatpush1.msra.mxu0 0.0
        %2810 = vmatprep.subr.mxu0 0.0
        %2811 = vmatpush1.msra.mxu0 0.0
        %2812 = vmatprep.subr.mxu0 0.0
        %2813 = vmatpush1.msra.mxu0 0.0
        %2814 = vmatprep.subr.mxu0 0.0
        %2815 = vmatpush1.msra.mxu0 0.0
        %2816 = vmatprep.subr.mxu0 0.0
        %2817 = vmatpush1.msra.mxu0 0.0
        %2818 = vmatprep.subr.mxu0 0.0
        %2819 = vmatpush1.msra.mxu0 0.0
        %2820 = vmatprep.subr.mxu0 0.0
        %2821 = vmatpush1.msra.mxu0 0.0
        %2822 = vmatprep.subr.mxu0 0.0
        %2823 = vmatpush1.msra.mxu0 0.0
        %2824 = vmatprep.subr.mxu0 0.0
        %2825 = vmatpush1.msra.mxu0 0.0
        %2826 = vmatprep.subr.mxu0 0.0
        %2827 = vmatpush1.msra.mxu0 0.0
        %2828 = vmatprep.subr.mxu0 0.0
        %2829 = vmatpush1.msra.mxu0 0.0
        %2830 = vmatprep.subr.mxu0 0.0
        %2831 = vmatpush1.msra.mxu0 0.0
        %2832 = vmatprep.subr.mxu0 0.0
        %2833 = vmatpush1.msra.mxu0 0.0
        %2834 = vmatprep.subr.mxu0 0.0
        %2835 = vmatpush1.msra.mxu0 0.0
        %2836 = vmatprep.subr.mxu0 0.0
        %2837 = vmatpush1.msra.mxu0 0.0
        %2838 = vmatprep.subr.mxu0 0.0
        %2839 = vmatpush1.msra.mxu0 0.0
        %2840 = vmatprep.subr.mxu0 0.0
        %2841 = vmatpush1.msra.mxu0 0.0
        %2842 = vmatprep.mubr.f32.mxu0 0.0
        %2843 = vmatmul.mubr.f32.gmra.mrb[0].mxu0 %v2776
        %v2844 = vpop.f32.mrb[0].mxu0
        %v2845 = vadd.f32 0.0, %v2844
        %v2846 = vpop.f32.mrb[0].mxu0
        %2847 = vdwg.mxu0
        %v2848 = vld [vmem:[%s9] sm:$0xff]
        %s2849 = scalar_lea.vmem %s6, 32
        %v2850 = vld [vmem:[%s2849] sm:$0xff]
        %v2851 = vld [vmem:[%s2849 + $0x8] sm:$0xff]
        %v2852 = vld [vmem:[%s2849 + $0x10] sm:$0xff]
        %v2853 = vld [vmem:[%s2849 + $0x18] sm:$0xff]
        %2854 = vmatprep.subr.mxu0 0.0
        %2855 = vmatpush1.msra.mxu0 %v2850
        %2856 = vmatprep.subr.mxu0 0.0
        %2857 = vmatpush1.msra.mxu0 %v2851
        %2858 = vmatprep.subr.mxu0 0.0
        %2859 = vmatpush1.msra.mxu0 %v2852
        %2860 = vmatprep.subr.mxu0 0.0
        %2861 = vmatpush1.msra.mxu0 %v2853
        %2862 = vmatprep.subr.mxu0 0.0
        %2863 = vmatpush1.msra.mxu0 0.0
        %2864 = vmatprep.subr.mxu0 0.0
        %2865 = vmatpush1.msra.mxu0 0.0
        %2866 = vmatprep.subr.mxu0 0.0
        %2867 = vmatpush1.msra.mxu0 0.0
        %2868 = vmatprep.subr.mxu0 0.0
        %2869 = vmatpush1.msra.mxu0 0.0
        %2870 = vmatprep.subr.mxu0 0.0
        %2871 = vmatpush1.msra.mxu0 0.0
        %2872 = vmatprep.subr.mxu0 0.0
        %2873 = vmatpush1.msra.mxu0 0.0
        %2874 = vmatprep.subr.mxu0 0.0
        %2875 = vmatpush1.msra.mxu0 0.0
        %2876 = vmatprep.subr.mxu0 0.0
        %2877 = vmatpush1.msra.mxu0 0.0
        %2878 = vmatprep.subr.mxu0 0.0
        %2879 = vmatpush1.msra.mxu0 0.0
        %2880 = vmatprep.subr.mxu0 0.0
        %2881 = vmatpush1.msra.mxu0 0.0
        %2882 = vmatprep.subr.mxu0 0.0
        %2883 = vmatpush1.msra.mxu0 0.0
        %2884 = vmatprep.subr.mxu0 0.0
        %2885 = vmatpush1.msra.mxu0 0.0
        %2886 = vmatprep.subr.mxu0 0.0
        %2887 = vmatpush1.msra.mxu0 0.0
        %2888 = vmatprep.subr.mxu0 0.0
        %2889 = vmatpush1.msra.mxu0 0.0
        %2890 = vmatprep.subr.mxu0 0.0
        %2891 = vmatpush1.msra.mxu0 0.0
        %2892 = vmatprep.subr.mxu0 0.0
        %2893 = vmatpush1.msra.mxu0 0.0
        %2894 = vmatprep.subr.mxu0 0.0
        %2895 = vmatpush1.msra.mxu0 0.0
        %2896 = vmatprep.subr.mxu0 0.0
        %2897 = vmatpush1.msra.mxu0 0.0
        %2898 = vmatprep.subr.mxu0 0.0
        %2899 = vmatpush1.msra.mxu0 0.0
        %2900 = vmatprep.subr.mxu0 0.0
        %2901 = vmatpush1.msra.mxu0 0.0
        %2902 = vmatprep.subr.mxu0 0.0
        %2903 = vmatpush1.msra.mxu0 0.0
        %2904 = vmatprep.subr.mxu0 0.0
        %2905 = vmatpush1.msra.mxu0 0.0
        %2906 = vmatprep.subr.mxu0 0.0
        %2907 = vmatpush1.msra.mxu0 0.0
        %2908 = vmatprep.subr.mxu0 0.0
        %2909 = vmatpush1.msra.mxu0 0.0
        %2910 = vmatprep.subr.mxu0 0.0
        %2911 = vmatpush1.msra.mxu0 0.0
        %2912 = vmatprep.subr.mxu0 0.0
        %2913 = vmatpush1.msra.mxu0 0.0
        %2914 = vmatprep.subr.mxu0 0.0
        %2915 = vmatpush1.msra.mxu0 0.0
        %2916 = vmatprep.subr.mxu0 0.0
        %2917 = vmatpush1.msra.mxu0 0.0
        %2918 = vmatprep.mubr.f32.mxu0 0.0
        %2919 = vmatmul.mubr.f32.gmra.mrb[0].mxu0 %v2447
        %v2920 = vpop.f32.mrb[0].mxu0
        %v2921 = vadd.f32 0.0, %v2920
        %v2922 = vpop.f32.mrb[0].mxu0
        %2923 = vdwg.mxu0
        %s2924 = scalar_lea.vmem %s7, 32
        %v2925 = vld [vmem:[%s2924] sm:$0xff]
        %v2926 = vld [vmem:[%s2924 + $0x8] sm:$0xff]
        %v2927 = vld [vmem:[%s2924 + $0x10] sm:$0xff]
        %v2928 = vld [vmem:[%s2924 + $0x18] sm:$0xff]
        %2929 = vmatprep.subr.mxu0 0.0
        %2930 = vmatpush1.msra.mxu0 %v2925
        %2931 = vmatprep.subr.mxu0 0.0
        %2932 = vmatpush1.msra.mxu0 %v2926
        %2933 = vmatprep.subr.mxu0 0.0
        %2934 = vmatpush1.msra.mxu0 %v2927
        %2935 = vmatprep.subr.mxu0 0.0
        %2936 = vmatpush1.msra.mxu0 %v2928
        %2937 = vmatprep.subr.mxu0 0.0
        %2938 = vmatpush1.msra.mxu0 0.0
        %2939 = vmatprep.subr.mxu0 0.0
        %2940 = vmatpush1.msra.mxu0 0.0
        %2941 = vmatprep.subr.mxu0 0.0
        %2942 = vmatpush1.msra.mxu0 0.0
        %2943 = vmatprep.subr.mxu0 0.0
        %2944 = vmatpush1.msra.mxu0 0.0
        %2945 = vmatprep.subr.mxu0 0.0
        %2946 = vmatpush1.msra.mxu0 0.0
        %2947 = vmatprep.subr.mxu0 0.0
        %2948 = vmatpush1.msra.mxu0 0.0
        %2949 = vmatprep.subr.mxu0 0.0
        %2950 = vmatpush1.msra.mxu0 0.0
        %2951 = vmatprep.subr.mxu0 0.0
        %2952 = vmatpush1.msra.mxu0 0.0
        %2953 = vmatprep.subr.mxu0 0.0
        %2954 = vmatpush1.msra.mxu0 0.0
        %2955 = vmatprep.subr.mxu0 0.0
        %2956 = vmatpush1.msra.mxu0 0.0
        %2957 = vmatprep.subr.mxu0 0.0
        %2958 = vmatpush1.msra.mxu0 0.0
        %2959 = vmatprep.subr.mxu0 0.0
        %2960 = vmatpush1.msra.mxu0 0.0
        %2961 = vmatprep.subr.mxu0 0.0
        %2962 = vmatpush1.msra.mxu0 0.0
        %2963 = vmatprep.subr.mxu0 0.0
        %2964 = vmatpush1.msra.mxu0 0.0
        %2965 = vmatprep.subr.mxu0 0.0
        %2966 = vmatpush1.msra.mxu0 0.0
        %2967 = vmatprep.subr.mxu0 0.0
        %2968 = vmatpush1.msra.mxu0 0.0
        %2969 = vmatprep.subr.mxu0 0.0
        %2970 = vmatpush1.msra.mxu0 0.0
        %2971 = vmatprep.subr.mxu0 0.0
        %2972 = vmatpush1.msra.mxu0 0.0
        %2973 = vmatprep.subr.mxu0 0.0
        %2974 = vmatpush1.msra.mxu0 0.0
        %2975 = vmatprep.subr.mxu0 0.0
        %2976 = vmatpush1.msra.mxu0 0.0
        %2977 = vmatprep.subr.mxu0 0.0
        %2978 = vmatpush1.msra.mxu0 0.0
        %2979 = vmatprep.subr.mxu0 0.0
        %2980 = vmatpush1.msra.mxu0 0.0
        %2981 = vmatprep.subr.mxu0 0.0
        %2982 = vmatpush1.msra.mxu0 0.0
        %2983 = vmatprep.subr.mxu0 0.0
        %2984 = vmatpush1.msra.mxu0 0.0
        %2985 = vmatprep.subr.mxu0 0.0
        %2986 = vmatpush1.msra.mxu0 0.0
        %2987 = vmatprep.subr.mxu0 0.0
        %2988 = vmatpush1.msra.mxu0 0.0
        %2989 = vmatprep.subr.mxu0 0.0
        %2990 = vmatpush1.msra.mxu0 0.0
        %2991 = vmatprep.subr.mxu0 0.0
        %2992 = vmatpush1.msra.mxu0 0.0
        %2993 = vmatprep.mubr.f32.mxu0 0.0
        %2994 = vmatmul.mubr.f32.gmra.mrb[0].mxu0 %v2524
        %v2995 = vpop.f32.mrb[0].mxu0
        %v2996 = vadd.f32 0.0, %v2995
        %v2997 = vpop.f32.mrb[0].mxu0
        %2998 = vmatprep.mubr.f32.mxu0 0.0
        %2999 = vmatmul.mubr.f32.gmra.mrb[0].mxu0 %v2527
        %v3000 = vpop.f32.mrb[0].mxu0
        %v3001 = vadd.f32 0.0, %v3000
        %v3002 = vpop.f32.mrb[0].mxu0
        %3003 = vdwg.mxu0
        %s3004 = scalar_lea.vmem %s8, 32
        %v3005 = vld [vmem:[%s3004] sm:$0xff]
        %v3006 = vld [vmem:[%s3004 + $0x8] sm:$0xff]
        %v3007 = vld [vmem:[%s3004 + $0x10] sm:$0xff]
        %v3008 = vld [vmem:[%s3004 + $0x18] sm:$0xff]
        %3009 = vmatprep.subr.mxu0 0.0
        %3010 = vmatpush1.msra.mxu0 %v3005
        %3011 = vmatprep.subr.mxu0 0.0
        %3012 = vmatpush1.msra.mxu0 %v3006
        %3013 = vmatprep.subr.mxu0 0.0
        %3014 = vmatpush1.msra.mxu0 %v3007
        %3015 = vmatprep.subr.mxu0 0.0
        %3016 = vmatpush1.msra.mxu0 %v3008
        %3017 = vmatprep.subr.mxu0 0.0
        %3018 = vmatpush1.msra.mxu0 0.0
        %3019 = vmatprep.subr.mxu0 0.0
        %3020 = vmatpush1.msra.mxu0 0.0
        %3021 = vmatprep.subr.mxu0 0.0
        %3022 = vmatpush1.msra.mxu0 0.0
        %3023 = vmatprep.subr.mxu0 0.0
        %3024 = vmatpush1.msra.mxu0 0.0
        %3025 = vmatprep.subr.mxu0 0.0
        %3026 = vmatpush1.msra.mxu0 0.0
        %3027 = vmatprep.subr.mxu0 0.0
        %3028 = vmatpush1.msra.mxu0 0.0
        %3029 = vmatprep.subr.mxu0 0.0
        %3030 = vmatpush1.msra.mxu0 0.0
        %3031 = vmatprep.subr.mxu0 0.0
        %3032 = vmatpush1.msra.mxu0 0.0
        %3033 = vmatprep.subr.mxu0 0.0
        %3034 = vmatpush1.msra.mxu0 0.0
        %3035 = vmatprep.subr.mxu0 0.0
        %3036 = vmatpush1.msra.mxu0 0.0
        %3037 = vmatprep.subr.mxu0 0.0
        %3038 = vmatpush1.msra.mxu0 0.0
        %3039 = vmatprep.subr.mxu0 0.0
        %3040 = vmatpush1.msra.mxu0 0.0
        %3041 = vmatprep.subr.mxu0 0.0
        %3042 = vmatpush1.msra.mxu0 0.0
        %3043 = vmatprep.subr.mxu0 0.0
        %3044 = vmatpush1.msra.mxu0 0.0
        %3045 = vmatprep.subr.mxu0 0.0
        %3046 = vmatpush1.msra.mxu0 0.0
        %3047 = vmatprep.subr.mxu0 0.0
        %3048 = vmatpush1.msra.mxu0 0.0
        %3049 = vmatprep.subr.mxu0 0.0
        %3050 = vmatpush1.msra.mxu0 0.0
        %3051 = vmatprep.subr.mxu0 0.0
        %3052 = vmatpush1.msra.mxu0 0.0
        %3053 = vmatprep.subr.mxu0 0.0
        %3054 = vmatpush1.msra.mxu0 0.0
        %3055 = vmatprep.subr.mxu0 0.0
        %3056 = vmatpush1.msra.mxu0 0.0
        %3057 = vmatprep.subr.mxu0 0.0
        %3058 = vmatpush1.msra.mxu0 0.0
        %3059 = vmatprep.subr.mxu0 0.0
        %3060 = vmatpush1.msra.mxu0 0.0
        %3061 = vmatprep.subr.mxu0 0.0
        %3062 = vmatpush1.msra.mxu0 0.0
        %3063 = vmatprep.subr.mxu0 0.0
        %3064 = vmatpush1.msra.mxu0 0.0
        %3065 = vmatprep.subr.mxu0 0.0
        %3066 = vmatpush1.msra.mxu0 0.0
        %3067 = vmatprep.subr.mxu0 0.0
        %3068 = vmatpush1.msra.mxu0 0.0
        %3069 = vmatprep.subr.mxu0 0.0
        %3070 = vmatpush1.msra.mxu0 0.0
        %3071 = vmatprep.subr.mxu0 0.0
        %3072 = vmatpush1.msra.mxu0 0.0
        %3073 = vmatprep.mubr.f32.mxu0 0.0
        %3074 = vmatmul.mubr.f32.gmra.mrb[0].mxu0 %v2524
        %v3075 = vpop.f32.mrb[0].mxu0
        %v3076 = vadd.f32 0.0, %v3075
        %v3077 = vpop.f32.mrb[0].mxu0
        %3078 = vmatprep.mubr.f32.mxu0 0.0
        %3079 = vmatmul.mubr.f32.gmra.mrb[0].mxu0 %v2527
        %v3080 = vpop.f32.mrb[0].mxu0
        %v3081 = vadd.f32 0.0, %v3080
        %v3082 = vpop.f32.mrb[0].mxu0
        %3083 = vdwg.mxu0
        %v3085 = vsel %vm732, %v2921, 0
        %v3088 = vsel %vm732, %v2996, 0
        %v3091 = vsel %vm732, %v3001, 0
        %3093 = vmatprep.subr.mxu0 0.0
        %3094 = vmatpush1.xpose.msra.mxu0 %v3088
        %3095 = vmatprep.subr.mxu0 0.0
        %3096 = vmatpush1.xpose.msra.mxu0 %v3091
        %3097 = vmatprep.subr.mxu0 0.0
        %3098 = vmatpush1.xpose.msra.mxu0 0.0
        %3099 = vmatprep.subr.mxu0 0.0
        %3100 = vmatpush1.xpose.msra.mxu0 0.0
        %3101 = vmatprep.subr.mxu0 0.0
        %3102 = vmatpush1.xpose.msra.mxu0 0.0
        %3103 = vmatprep.subr.mxu0 0.0
        %3104 = vmatpush1.xpose.msra.mxu0 0.0
        %3105 = vmatprep.subr.mxu0 0.0
        %3106 = vmatpush1.xpose.msra.mxu0 0.0
        %3107 = vmatprep.subr.mxu0 0.0
        %3108 = vmatpush1.xpose.msra.mxu0 0.0
        %3109 = vmatprep.subr.mxu0 0.0
        %3110 = vmatpush1.xpose.msra.mxu0 0.0
        %3111 = vmatprep.subr.mxu0 0.0
        %3112 = vmatpush1.xpose.msra.mxu0 0.0
        %3113 = vmatprep.subr.mxu0 0.0
        %3114 = vmatpush1.xpose.msra.mxu0 0.0
        %3115 = vmatprep.subr.mxu0 0.0
        %3116 = vmatpush1.xpose.msra.mxu0 0.0
        %3117 = vmatprep.subr.mxu0 0.0
        %3118 = vmatpush1.xpose.msra.mxu0 0.0
        %3119 = vmatprep.subr.mxu0 0.0
        %3120 = vmatpush1.xpose.msra.mxu0 0.0
        %3121 = vmatprep.subr.mxu0 0.0
        %3122 = vmatpush1.xpose.msra.mxu0 0.0
        %3123 = vmatprep.subr.mxu0 0.0
        %3124 = vmatpush1.xpose.msra.mxu0 0.0
        %3125 = vmatprep.subr.mxu0 0.0
        %3126 = vmatpush1.xpose.msra.mxu0 0.0
        %3127 = vmatprep.subr.mxu0 0.0
        %3128 = vmatpush1.xpose.msra.mxu0 0.0
        %3129 = vmatprep.subr.mxu0 0.0
        %3130 = vmatpush1.xpose.msra.mxu0 0.0
        %3131 = vmatprep.subr.mxu0 0.0
        %3132 = vmatpush1.xpose.msra.mxu0 0.0
        %3133 = vmatprep.subr.mxu0 0.0
        %3134 = vmatpush1.xpose.msra.mxu0 0.0
        %3135 = vmatprep.subr.mxu0 0.0
        %3136 = vmatpush1.xpose.msra.mxu0 0.0
        %3137 = vmatprep.subr.mxu0 0.0
        %3138 = vmatpush1.xpose.msra.mxu0 0.0
        %3139 = vmatprep.subr.mxu0 0.0
        %3140 = vmatpush1.xpose.msra.mxu0 0.0
        %3141 = vmatprep.subr.mxu0 0.0
        %3142 = vmatpush1.xpose.msra.mxu0 0.0
        %3143 = vmatprep.subr.mxu0 0.0
        %3144 = vmatpush1.xpose.msra.mxu0 0.0
        %3145 = vmatprep.subr.mxu0 0.0
        %3146 = vmatpush1.xpose.msra.mxu0 0.0
        %3147 = vmatprep.subr.mxu0 0.0
        %3148 = vmatpush1.xpose.msra.mxu0 0.0
        %3149 = vmatprep.subr.mxu0 0.0
        %3150 = vmatpush1.xpose.msra.mxu0 0.0
        %3151 = vmatprep.subr.mxu0 0.0
        %3152 = vmatpush1.xpose.msra.mxu0 0.0
        %3153 = vmatprep.subr.mxu0 0.0
        %3154 = vmatpush1.xpose.msra.mxu0 0.0
        %3155 = vmatprep.subr.mxu0 0.0
        %3156 = vmatpush1.xpose.msra.mxu0 0.0
        %3157 = vmatprep.mubr.f32.mxu0 0.0
        %3158 = vmatmul.mubr.f32.gmra.mrb[0].mxu0 %v3085
        %v3159 = vpop.f32.mrb[0].mxu0
        %v3160 = vadd.f32 0.0, %v3159
        %v3161 = vpop.f32.mrb[0].mxu0
        %3162 = vdwg.mxu0
        %v3163 = vmul.f32 %v3160, 0.35355338
        %v3164 = vsel %vm2763, %v3163, -inf
        %3165 = vmax.xlane.f32.xlu0 %v3164
        %v3166 = vpop.xlane.xlu0 %3165
        %v3167 = vsub.f32 %v3163, %v3166
        %v3168 = vmul.f32 %v3167, 1.442695
        %v3169 = vpow.pop %v3168
        %v3170 = vsel %vm2763, %v3169, 0.0
        %3171 = vadd.xlane.f32.xlu0 %v3170
        %v3172 = vpop.xlane.xlu0 %3171
        %v3173 = vrcp.pop %v3172
        %v3174 = vmul.f32 %v3169, %v3173
        %v3176 = vsel %vm2763, %v3174, 0
        %3178 = vmatprep.subr.mxu0 0.0
        %3179 = vmatpush1.msra.mxu0 %v3076
        %3180 = vmatprep.subr.mxu0 0.0
        %3181 = vmatpush1.msra.mxu0 %v3081
        %3182 = vmatprep.subr.mxu0 0.0
        %3183 = vmatpush1.msra.mxu0 0.0
        %3184 = vmatprep.subr.mxu0 0.0
        %3185 = vmatpush1.msra.mxu0 0.0
        %3186 = vmatprep.subr.mxu0 0.0
        %3187 = vmatpush1.msra.mxu0 0.0
        %3188 = vmatprep.subr.mxu0 0.0
        %3189 = vmatpush1.msra.mxu0 0.0
        %3190 = vmatprep.subr.mxu0 0.0
        %3191 = vmatpush1.msra.mxu0 0.0
        %3192 = vmatprep.subr.mxu0 0.0
        %3193 = vmatpush1.msra.mxu0 0.0
        %3194 = vmatprep.subr.mxu0 0.0
        %3195 = vmatpush1.msra.mxu0 0.0
        %3196 = vmatprep.subr.mxu0 0.0
        %3197 = vmatpush1.msra.mxu0 0.0
        %3198 = vmatprep.subr.mxu0 0.0
        %3199 = vmatpush1.msra.mxu0 0.0
        %3200 = vmatprep.subr.mxu0 0.0
        %3201 = vmatpush1.msra.mxu0 0.0
        %3202 = vmatprep.subr.mxu0 0.0
        %3203 = vmatpush1.msra.mxu0 0.0
        %3204 = vmatprep.subr.mxu0 0.0
        %3205 = vmatpush1.msra.mxu0 0.0
        %3206 = vmatprep.subr.mxu0 0.0
        %3207 = vmatpush1.msra.mxu0 0.0
        %3208 = vmatprep.subr.mxu0 0.0
        %3209 = vmatpush1.msra.mxu0 0.0
        %3210 = vmatprep.subr.mxu0 0.0
        %3211 = vmatpush1.msra.mxu0 0.0
        %3212 = vmatprep.subr.mxu0 0.0
        %3213 = vmatpush1.msra.mxu0 0.0
        %3214 = vmatprep.subr.mxu0 0.0
        %3215 = vmatpush1.msra.mxu0 0.0
        %3216 = vmatprep.subr.mxu0 0.0
        %3217 = vmatpush1.msra.mxu0 0.0
        %3218 = vmatprep.subr.mxu0 0.0
        %3219 = vmatpush1.msra.mxu0 0.0
        %3220 = vmatprep.subr.mxu0 0.0
        %3221 = vmatpush1.msra.mxu0 0.0
        %3222 = vmatprep.subr.mxu0 0.0
        %3223 = vmatpush1.msra.mxu0 0.0
        %3224 = vmatprep.subr.mxu0 0.0
        %3225 = vmatpush1.msra.mxu0 0.0
        %3226 = vmatprep.subr.mxu0 0.0
        %3227 = vmatpush1.msra.mxu0 0.0
        %3228 = vmatprep.subr.mxu0 0.0
        %3229 = vmatpush1.msra.mxu0 0.0
        %3230 = vmatprep.subr.mxu0 0.0
        %3231 = vmatpush1.msra.mxu0 0.0
        %3232 = vmatprep.subr.mxu0 0.0
        %3233 = vmatpush1.msra.mxu0 0.0
        %3234 = vmatprep.subr.mxu0 0.0
        %3235 = vmatpush1.msra.mxu0 0.0
        %3236 = vmatprep.subr.mxu0 0.0
        %3237 = vmatpush1.msra.mxu0 0.0
        %3238 = vmatprep.subr.mxu0 0.0
        %3239 = vmatpush1.msra.mxu0 0.0
        %3240 = vmatprep.subr.mxu0 0.0
        %3241 = vmatpush1.msra.mxu0 0.0
        %3242 = vmatprep.mubr.f32.mxu0 0.0
        %3243 = vmatmul.mubr.f32.gmra.mrb[0].mxu0 %v3176
        %v3244 = vpop.f32.mrb[0].mxu0
        %v3245 = vadd.f32 0.0, %v3244
        %v3246 = vpop.f32.mrb[0].mxu0
        %3247 = vdwg.mxu0
        %s3248 = scalar_lea.vmem %s9, 8
        %v3249 = vld [vmem:[%s3248] sm:$0xff]
        %v3251 = vsel %vm732, %v3245, 0
        %3253 = vmatprep.subr.mxu0 0.0
        %3254 = vmatpush1.msra.mxu0 %v3249
        %3255 = vmatprep.subr.mxu0 0.0
        %3256 = vmatpush1.msra.mxu0 0.0
        %3257 = vmatprep.subr.mxu0 0.0
        %3258 = vmatpush1.msra.mxu0 0.0
        %3259 = vmatprep.subr.mxu0 0.0
        %3260 = vmatpush1.msra.mxu0 0.0
        %3261 = vmatprep.subr.mxu0 0.0
        %3262 = vmatpush1.msra.mxu0 0.0
        %3263 = vmatprep.subr.mxu0 0.0
        %3264 = vmatpush1.msra.mxu0 0.0
        %3265 = vmatprep.subr.mxu0 0.0
        %3266 = vmatpush1.msra.mxu0 0.0
        %3267 = vmatprep.subr.mxu0 0.0
        %3268 = vmatpush1.msra.mxu0 0.0
        %3269 = vmatprep.subr.mxu0 0.0
        %3270 = vmatpush1.msra.mxu0 0.0
        %3271 = vmatprep.subr.mxu0 0.0
        %3272 = vmatpush1.msra.mxu0 0.0
        %3273 = vmatprep.subr.mxu0 0.0
        %3274 = vmatpush1.msra.mxu0 0.0
        %3275 = vmatprep.subr.mxu0 0.0
        %3276 = vmatpush1.msra.mxu0 0.0
        %3277 = vmatprep.subr.mxu0 0.0
        %3278 = vmatpush1.msra.mxu0 0.0
        %3279 = vmatprep.subr.mxu0 0.0
        %3280 = vmatpush1.msra.mxu0 0.0
        %3281 = vmatprep.subr.mxu0 0.0
        %3282 = vmatpush1.msra.mxu0 0.0
        %3283 = vmatprep.subr.mxu0 0.0
        %3284 = vmatpush1.msra.mxu0 0.0
        %3285 = vmatprep.subr.mxu0 0.0
        %3286 = vmatpush1.msra.mxu0 0.0
        %3287 = vmatprep.subr.mxu0 0.0
        %3288 = vmatpush1.msra.mxu0 0.0
        %3289 = vmatprep.subr.mxu0 0.0
        %3290 = vmatpush1.msra.mxu0 0.0
        %3291 = vmatprep.subr.mxu0 0.0
        %3292 = vmatpush1.msra.mxu0 0.0
        %3293 = vmatprep.subr.mxu0 0.0
        %3294 = vmatpush1.msra.mxu0 0.0
        %3295 = vmatprep.subr.mxu0 0.0
        %3296 = vmatpush1.msra.mxu0 0.0
        %3297 = vmatprep.subr.mxu0 0.0
        %3298 = vmatpush1.msra.mxu0 0.0
        %3299 = vmatprep.subr.mxu0 0.0
        %3300 = vmatpush1.msra.mxu0 0.0
        %3301 = vmatprep.subr.mxu0 0.0
        %3302 = vmatpush1.msra.mxu0 0.0
        %3303 = vmatprep.subr.mxu0 0.0
        %3304 = vmatpush1.msra.mxu0 0.0
        %3305 = vmatprep.subr.mxu0 0.0
        %3306 = vmatpush1.msra.mxu0 0.0
        %3307 = vmatprep.subr.mxu0 0.0
        %3308 = vmatpush1.msra.mxu0 0.0
        %3309 = vmatprep.subr.mxu0 0.0
        %3310 = vmatpush1.msra.mxu0 0.0
        %3311 = vmatprep.subr.mxu0 0.0
        %3312 = vmatpush1.msra.mxu0 0.0
        %3313 = vmatprep.subr.mxu0 0.0
        %3314 = vmatpush1.msra.mxu0 0.0
        %3315 = vmatprep.subr.mxu0 0.0
        %3316 = vmatpush1.msra.mxu0 0.0
        %3317 = vmatprep.mubr.f32.mxu0 0.0
        %3318 = vmatmul.mubr.f32.gmra.mrb[0].mxu0 %v3251
        %v3319 = vpop.f32.mrb[0].mxu0
        %v3320 = vadd.f32 0.0, %v3319
        %v3321 = vpop.f32.mrb[0].mxu0
        %3322 = vdwg.mxu0
        %v3324 = vsel %vm732, %v2845, 0
        %3326 = vmatprep.subr.mxu0 0.0
        %3327 = vmatpush1.msra.mxu0 %v2848
        %3328 = vmatprep.subr.mxu0 0.0
        %3329 = vmatpush1.msra.mxu0 0.0
        %3330 = vmatprep.subr.mxu0 0.0
        %3331 = vmatpush1.msra.mxu0 0.0
        %3332 = vmatprep.subr.mxu0 0.0
        %3333 = vmatpush1.msra.mxu0 0.0
        %3334 = vmatprep.subr.mxu0 0.0
        %3335 = vmatpush1.msra.mxu0 0.0
        %3336 = vmatprep.subr.mxu0 0.0
        %3337 = vmatpush1.msra.mxu0 0.0
        %3338 = vmatprep.subr.mxu0 0.0
        %3339 = vmatpush1.msra.mxu0 0.0
        %3340 = vmatprep.subr.mxu0 0.0
        %3341 = vmatpush1.msra.mxu0 0.0
        %3342 = vmatprep.subr.mxu0 0.0
        %3343 = vmatpush1.msra.mxu0 0.0
        %3344 = vmatprep.subr.mxu0 0.0
        %3345 = vmatpush1.msra.mxu0 0.0
        %3346 = vmatprep.subr.mxu0 0.0
        %3347 = vmatpush1.msra.mxu0 0.0
        %3348 = vmatprep.subr.mxu0 0.0
        %3349 = vmatpush1.msra.mxu0 0.0
        %3350 = vmatprep.subr.mxu0 0.0
        %3351 = vmatpush1.msra.mxu0 0.0
        %3352 = vmatprep.subr.mxu0 0.0
        %3353 = vmatpush1.msra.mxu0 0.0
        %3354 = vmatprep.subr.mxu0 0.0
        %3355 = vmatpush1.msra.mxu0 0.0
        %3356 = vmatprep.subr.mxu0 0.0
        %3357 = vmatpush1.msra.mxu0 0.0
        %3358 = vmatprep.subr.mxu0 0.0
        %3359 = vmatpush1.msra.mxu0 0.0
        %3360 = vmatprep.subr.mxu0 0.0
        %3361 = vmatpush1.msra.mxu0 0.0
        %3362 = vmatprep.subr.mxu0 0.0
        %3363 = vmatpush1.msra.mxu0 0.0
        %3364 = vmatprep.subr.mxu0 0.0
        %3365 = vmatpush1.msra.mxu0 0.0
        %3366 = vmatprep.subr.mxu0 0.0
        %3367 = vmatpush1.msra.mxu0 0.0
        %3368 = vmatprep.subr.mxu0 0.0
        %3369 = vmatpush1.msra.mxu0 0.0
        %3370 = vmatprep.subr.mxu0 0.0
        %3371 = vmatpush1.msra.mxu0 0.0
        %3372 = vmatprep.subr.mxu0 0.0
        %3373 = vmatpush1.msra.mxu0 0.0
        %3374 = vmatprep.subr.mxu0 0.0
        %3375 = vmatpush1.msra.mxu0 0.0
        %3376 = vmatprep.subr.mxu0 0.0
        %3377 = vmatpush1.msra.mxu0 0.0
        %3378 = vmatprep.subr.mxu0 0.0
        %3379 = vmatpush1.msra.mxu0 0.0
        %3380 = vmatprep.subr.mxu0 0.0
        %3381 = vmatpush1.msra.mxu0 0.0
        %3382 = vmatprep.subr.mxu0 0.0
        %3383 = vmatpush1.msra.mxu0 0.0
        %3384 = vmatprep.subr.mxu0 0.0
        %3385 = vmatpush1.msra.mxu0 0.0
        %3386 = vmatprep.subr.mxu0 0.0
        %3387 = vmatpush1.msra.mxu0 0.0
        %3388 = vmatprep.subr.mxu0 0.0
        %3389 = vmatpush1.msra.mxu0 0.0
        %3390 = vmatprep.mubr.f32.mxu0 0.0
        %3391 = vmatmul.mubr.f32.gmra.mrb[0].mxu0 %v3324
        %v3392 = vpop.f32.mrb[0].mxu0
        %v3393 = vadd.f32 %v3320, %v3392
        %v3394 = vpop.f32.mrb[0].mxu0
        %3395 = vdwg.mxu0
        %s3396 = scalar_lea.vmem %s6, 64
        %v3397 = vld [vmem:[%s3396] sm:$0xff]
        %v3398 = vld [vmem:[%s3396 + $0x8] sm:$0xff]
        %v3399 = vld [vmem:[%s3396 + $0x10] sm:$0xff]
        %v3400 = vld [vmem:[%s3396 + $0x18] sm:$0xff]
        %3401 = vmatprep.subr.mxu0 0.0
        %3402 = vmatpush1.msra.mxu0 %v3397
        %3403 = vmatprep.subr.mxu0 0.0
        %3404 = vmatpush1.msra.mxu0 %v3398
        %3405 = vmatprep.subr.mxu0 0.0
        %3406 = vmatpush1.msra.mxu0 %v3399
        %3407 = vmatprep.subr.mxu0 0.0
        %3408 = vmatpush1.msra.mxu0 %v3400
        %3409 = vmatprep.subr.mxu0 0.0
        %3410 = vmatpush1.msra.mxu0 0.0
        %3411 = vmatprep.subr.mxu0 0.0
        %3412 = vmatpush1.msra.mxu0 0.0
        %3413 = vmatprep.subr.mxu0 0.0
        %3414 = vmatpush1.msra.mxu0 0.0
        %3415 = vmatprep.subr.mxu0 0.0
        %3416 = vmatpush1.msra.mxu0 0.0
        %3417 = vmatprep.subr.mxu0 0.0
        %3418 = vmatpush1.msra.mxu0 0.0
        %3419 = vmatprep.subr.mxu0 0.0
        %3420 = vmatpush1.msra.mxu0 0.0
        %3421 = vmatprep.subr.mxu0 0.0
        %3422 = vmatpush1.msra.mxu0 0.0
        %3423 = vmatprep.subr.mxu0 0.0
        %3424 = vmatpush1.msra.mxu0 0.0
        %3425 = vmatprep.subr.mxu0 0.0
        %3426 = vmatpush1.msra.mxu0 0.0
        %3427 = vmatprep.subr.mxu0 0.0
        %3428 = vmatpush1.msra.mxu0 0.0
        %3429 = vmatprep.subr.mxu0 0.0
        %3430 = vmatpush1.msra.mxu0 0.0
        %3431 = vmatprep.subr.mxu0 0.0
        %3432 = vmatpush1.msra.mxu0 0.0
        %3433 = vmatprep.subr.mxu0 0.0
        %3434 = vmatpush1.msra.mxu0 0.0
        %3435 = vmatprep.subr.mxu0 0.0
        %3436 = vmatpush1.msra.mxu0 0.0
        %3437 = vmatprep.subr.mxu0 0.0
        %3438 = vmatpush1.msra.mxu0 0.0
        %3439 = vmatprep.subr.mxu0 0.0
        %3440 = vmatpush1.msra.mxu0 0.0
        %3441 = vmatprep.subr.mxu0 0.0
        %3442 = vmatpush1.msra.mxu0 0.0
        %3443 = vmatprep.subr.mxu0 0.0
        %3444 = vmatpush1.msra.mxu0 0.0
        %3445 = vmatprep.subr.mxu0 0.0
        %3446 = vmatpush1.msra.mxu0 0.0
        %3447 = vmatprep.subr.mxu0 0.0
        %3448 = vmatpush1.msra.mxu0 0.0
        %3449 = vmatprep.subr.mxu0 0.0
        %3450 = vmatpush1.msra.mxu0 0.0
        %3451 = vmatprep.subr.mxu0 0.0
        %3452 = vmatpush1.msra.mxu0 0.0
        %3453 = vmatprep.subr.mxu0 0.0
        %3454 = vmatpush1.msra.mxu0 0.0
        %3455 = vmatprep.subr.mxu0 0.0
        %3456 = vmatpush1.msra.mxu0 0.0
        %3457 = vmatprep.subr.mxu0 0.0
        %3458 = vmatpush1.msra.mxu0 0.0
        %3459 = vmatprep.subr.mxu0 0.0
        %3460 = vmatpush1.msra.mxu0 0.0
        %3461 = vmatprep.subr.mxu0 0.0
        %3462 = vmatpush1.msra.mxu0 0.0
        %3463 = vmatprep.subr.mxu0 0.0
        %3464 = vmatpush1.msra.mxu0 0.0
        %3465 = vmatprep.mubr.f32.mxu0 0.0
        %3466 = vmatmul.mubr.f32.gmra.mrb[0].mxu0 %v2447
        %v3467 = vpop.f32.mrb[0].mxu0
        %v3468 = vadd.f32 0.0, %v3467
        %v3469 = vpop.f32.mrb[0].mxu0
        %3470 = vdwg.mxu0
        %s3471 = scalar_lea.vmem %s7, 64
        %v3472 = vld [vmem:[%s3471] sm:$0xff]
        %v3473 = vld [vmem:[%s3471 + $0x8] sm:$0xff]
        %v3474 = vld [vmem:[%s3471 + $0x10] sm:$0xff]
        %v3475 = vld [vmem:[%s3471 + $0x18] sm:$0xff]
        %3476 = vmatprep.subr.mxu0 0.0
        %3477 = vmatpush1.msra.mxu0 %v3472
        %3478 = vmatprep.subr.mxu0 0.0
        %3479 = vmatpush1.msra.mxu0 %v3473
        %3480 = vmatprep.subr.mxu0 0.0
        %3481 = vmatpush1.msra.mxu0 %v3474
        %3482 = vmatprep.subr.mxu0 0.0
        %3483 = vmatpush1.msra.mxu0 %v3475
        %3484 = vmatprep.subr.mxu0 0.0
        %3485 = vmatpush1.msra.mxu0 0.0
        %3486 = vmatprep.subr.mxu0 0.0
        %3487 = vmatpush1.msra.mxu0 0.0
        %3488 = vmatprep.subr.mxu0 0.0
        %3489 = vmatpush1.msra.mxu0 0.0
        %3490 = vmatprep.subr.mxu0 0.0
        %3491 = vmatpush1.msra.mxu0 0.0
        %3492 = vmatprep.subr.mxu0 0.0
        %3493 = vmatpush1.msra.mxu0 0.0
        %3494 = vmatprep.subr.mxu0 0.0
        %3495 = vmatpush1.msra.mxu0 0.0
        %3496 = vmatprep.subr.mxu0 0.0
        %3497 = vmatpush1.msra.mxu0 0.0
        %3498 = vmatprep.subr.mxu0 0.0
        %3499 = vmatpush1.msra.mxu0 0.0
        %3500 = vmatprep.subr.mxu0 0.0
        %3501 = vmatpush1.msra.mxu0 0.0
        %3502 = vmatprep.subr.mxu0 0.0
        %3503 = vmatpush1.msra.mxu0 0.0
        %3504 = vmatprep.subr.mxu0 0.0
        %3505 = vmatpush1.msra.mxu0 0.0
        %3506 = vmatprep.subr.mxu0 0.0
        %3507 = vmatpush1.msra.mxu0 0.0
        %3508 = vmatprep.subr.mxu0 0.0
        %3509 = vmatpush1.msra.mxu0 0.0
        %3510 = vmatprep.subr.mxu0 0.0
        %3511 = vmatpush1.msra.mxu0 0.0
        %3512 = vmatprep.subr.mxu0 0.0
        %3513 = vmatpush1.msra.mxu0 0.0
        %3514 = vmatprep.subr.mxu0 0.0
        %3515 = vmatpush1.msra.mxu0 0.0
        %3516 = vmatprep.subr.mxu0 0.0
        %3517 = vmatpush1.msra.mxu0 0.0
        %3518 = vmatprep.subr.mxu0 0.0
        %3519 = vmatpush1.msra.mxu0 0.0
        %3520 = vmatprep.subr.mxu0 0.0
        %3521 = vmatpush1.msra.mxu0 0.0
        %3522 = vmatprep.subr.mxu0 0.0
        %3523 = vmatpush1.msra.mxu0 0.0
        %3524 = vmatprep.subr.mxu0 0.0
        %3525 = vmatpush1.msra.mxu0 0.0
        %3526 = vmatprep.subr.mxu0 0.0
        %3527 = vmatpush1.msra.mxu0 0.0
        %3528 = vmatprep.subr.mxu0 0.0
        %3529 = vmatpush1.msra.mxu0 0.0
        %3530 = vmatprep.subr.mxu0 0.0
        %3531 = vmatpush1.msra.mxu0 0.0
        %3532 = vmatprep.subr.mxu0 0.0
        %3533 = vmatpush1.msra.mxu0 0.0
        %3534 = vmatprep.subr.mxu0 0.0
        %3535 = vmatpush1.msra.mxu0 0.0
        %3536 = vmatprep.subr.mxu0 0.0
        %3537 = vmatpush1.msra.mxu0 0.0
        %3538 = vmatprep.subr.mxu0 0.0
        %3539 = vmatpush1.msra.mxu0 0.0
        %3540 = vmatprep.mubr.f32.mxu0 0.0
        %3541 = vmatmul.mubr.f32.gmra.mrb[0].mxu0 %v2524
        %v3542 = vpop.f32.mrb[0].mxu0
        %v3543 = vadd.f32 0.0, %v3542
        %v3544 = vpop.f32.mrb[0].mxu0
        %3545 = vmatprep.mubr.f32.mxu0 0.0
        %3546 = vmatmul.mubr.f32.gmra.mrb[0].mxu0 %v2527
        %v3547 = vpop.f32.mrb[0].mxu0
        %v3548 = vadd.f32 0.0, %v3547
        %v3549 = vpop.f32.mrb[0].mxu0
        %3550 = vdwg.mxu0
        %s3551 = scalar_lea.vmem %s8, 64
        %v3552 = vld [vmem:[%s3551] sm:$0xff]
        %v3553 = vld [vmem:[%s3551 + $0x8] sm:$0xff]
        %v3554 = vld [vmem:[%s3551 + $0x10] sm:$0xff]
        %v3555 = vld [vmem:[%s3551 + $0x18] sm:$0xff]
        %3556 = vmatprep.subr.mxu0 0.0
        %3557 = vmatpush1.msra.mxu0 %v3552
        %3558 = vmatprep.subr.mxu0 0.0
        %3559 = vmatpush1.msra.mxu0 %v3553
        %3560 = vmatprep.subr.mxu0 0.0
        %3561 = vmatpush1.msra.mxu0 %v3554
        %3562 = vmatprep.subr.mxu0 0.0
        %3563 = vmatpush1.msra.mxu0 %v3555
        %3564 = vmatprep.subr.mxu0 0.0
        %3565 = vmatpush1.msra.mxu0 0.0
        %3566 = vmatprep.subr.mxu0 0.0
        %3567 = vmatpush1.msra.mxu0 0.0
        %3568 = vmatprep.subr.mxu0 0.0
        %3569 = vmatpush1.msra.mxu0 0.0
        %3570 = vmatprep.subr.mxu0 0.0
        %3571 = vmatpush1.msra.mxu0 0.0
        %3572 = vmatprep.subr.mxu0 0.0
        %3573 = vmatpush1.msra.mxu0 0.0
        %3574 = vmatprep.subr.mxu0 0.0
        %3575 = vmatpush1.msra.mxu0 0.0
        %3576 = vmatprep.subr.mxu0 0.0
        %3577 = vmatpush1.msra.mxu0 0.0
        %3578 = vmatprep.subr.mxu0 0.0
        %3579 = vmatpush1.msra.mxu0 0.0
        %3580 = vmatprep.subr.mxu0 0.0
        %3581 = vmatpush1.msra.mxu0 0.0
        %3582 = vmatprep.subr.mxu0 0.0
        %3583 = vmatpush1.msra.mxu0 0.0
        %3584 = vmatprep.subr.mxu0 0.0
        %3585 = vmatpush1.msra.mxu0 0.0
        %3586 = vmatprep.subr.mxu0 0.0
        %3587 = vmatpush1.msra.mxu0 0.0
        %3588 = vmatprep.subr.mxu0 0.0
        %3589 = vmatpush1.msra.mxu0 0.0
        %3590 = vmatprep.subr.mxu0 0.0
        %3591 = vmatpush1.msra.mxu0 0.0
        %3592 = vmatprep.subr.mxu0 0.0
        %3593 = vmatpush1.msra.mxu0 0.0
        %3594 = vmatprep.subr.mxu0 0.0
        %3595 = vmatpush1.msra.mxu0 0.0
        %3596 = vmatprep.subr.mxu0 0.0
        %3597 = vmatpush1.msra.mxu0 0.0
        %3598 = vmatprep.subr.mxu0 0.0
        %3599 = vmatpush1.msra.mxu0 0.0
        %3600 = vmatprep.subr.mxu0 0.0
        %3601 = vmatpush1.msra.mxu0 0.0
        %3602 = vmatprep.subr.mxu0 0.0
        %3603 = vmatpush1.msra.mxu0 0.0
        %3604 = vmatprep.subr.mxu0 0.0
        %3605 = vmatpush1.msra.mxu0 0.0
        %3606 = vmatprep.subr.mxu0 0.0
        %3607 = vmatpush1.msra.mxu0 0.0
        %3608 = vmatprep.subr.mxu0 0.0
        %3609 = vmatpush1.msra.mxu0 0.0
        %3610 = vmatprep.subr.mxu0 0.0
        %3611 = vmatpush1.msra.mxu0 0.0
        %3612 = vmatprep.subr.mxu0 0.0
        %3613 = vmatpush1.msra.mxu0 0.0
        %3614 = vmatprep.subr.mxu0 0.0
        %3615 = vmatpush1.msra.mxu0 0.0
        %3616 = vmatprep.subr.mxu0 0.0
        %3617 = vmatpush1.msra.mxu0 0.0
        %3618 = vmatprep.subr.mxu0 0.0
        %3619 = vmatpush1.msra.mxu0 0.0
        %3620 = vmatprep.mubr.f32.mxu0 0.0
        %3621 = vmatmul.mubr.f32.gmra.mrb[0].mxu0 %v2524
        %v3622 = vpop.f32.mrb[0].mxu0
        %v3623 = vadd.f32 0.0, %v3622
        %v3624 = vpop.f32.mrb[0].mxu0
        %3625 = vmatprep.mubr.f32.mxu0 0.0
        %3626 = vmatmul.mubr.f32.gmra.mrb[0].mxu0 %v2527
        %v3627 = vpop.f32.mrb[0].mxu0
        %v3628 = vadd.f32 0.0, %v3627
        %v3629 = vpop.f32.mrb[0].mxu0
        %3630 = vdwg.mxu0
        %v3632 = vsel %vm732, %v3468, 0
        %v3635 = vsel %vm732, %v3543, 0
        %v3638 = vsel %vm732, %v3548, 0
        %3640 = vmatprep.subr.mxu0 0.0
        %3641 = vmatpush1.xpose.msra.mxu0 %v3635
        %3642 = vmatprep.subr.mxu0 0.0
        %3643 = vmatpush1.xpose.msra.mxu0 %v3638
        %3644 = vmatprep.subr.mxu0 0.0
        %3645 = vmatpush1.xpose.msra.mxu0 0.0
        %3646 = vmatprep.subr.mxu0 0.0
        %3647 = vmatpush1.xpose.msra.mxu0 0.0
        %3648 = vmatprep.subr.mxu0 0.0
        %3649 = vmatpush1.xpose.msra.mxu0 0.0
        %3650 = vmatprep.subr.mxu0 0.0
        %3651 = vmatpush1.xpose.msra.mxu0 0.0
        %3652 = vmatprep.subr.mxu0 0.0
        %3653 = vmatpush1.xpose.msra.mxu0 0.0
        %3654 = vmatprep.subr.mxu0 0.0
        %3655 = vmatpush1.xpose.msra.mxu0 0.0
        %3656 = vmatprep.subr.mxu0 0.0
        %3657 = vmatpush1.xpose.msra.mxu0 0.0
        %3658 = vmatprep.subr.mxu0 0.0
        %3659 = vmatpush1.xpose.msra.mxu0 0.0
        %3660 = vmatprep.subr.mxu0 0.0
        %3661 = vmatpush1.xpose.msra.mxu0 0.0
        %3662 = vmatprep.subr.mxu0 0.0
        %3663 = vmatpush1.xpose.msra.mxu0 0.0
        %3664 = vmatprep.subr.mxu0 0.0
        %3665 = vmatpush1.xpose.msra.mxu0 0.0
        %3666 = vmatprep.subr.mxu0 0.0
        %3667 = vmatpush1.xpose.msra.mxu0 0.0
        %3668 = vmatprep.subr.mxu0 0.0
        %3669 = vmatpush1.xpose.msra.mxu0 0.0
        %3670 = vmatprep.subr.mxu0 0.0
        %3671 = vmatpush1.xpose.msra.mxu0 0.0
        %3672 = vmatprep.subr.mxu0 0.0
        %3673 = vmatpush1.xpose.msra.mxu0 0.0
        %3674 = vmatprep.subr.mxu0 0.0
        %3675 = vmatpush1.xpose.msra.mxu0 0.0
        %3676 = vmatprep.subr.mxu0 0.0
        %3677 = vmatpush1.xpose.msra.mxu0 0.0
        %3678 = vmatprep.subr.mxu0 0.0
        %3679 = vmatpush1.xpose.msra.mxu0 0.0
        %3680 = vmatprep.subr.mxu0 0.0
        %3681 = vmatpush1.xpose.msra.mxu0 0.0
        %3682 = vmatprep.subr.mxu0 0.0
        %3683 = vmatpush1.xpose.msra.mxu0 0.0
        %3684 = vmatprep.subr.mxu0 0.0
        %3685 = vmatpush1.xpose.msra.mxu0 0.0
        %3686 = vmatprep.subr.mxu0 0.0
        %3687 = vmatpush1.xpose.msra.mxu0 0.0
        %3688 = vmatprep.subr.mxu0 0.0
        %3689 = vmatpush1.xpose.msra.mxu0 0.0
        %3690 = vmatprep.subr.mxu0 0.0
        %3691 = vmatpush1.xpose.msra.mxu0 0.0
        %3692 = vmatprep.subr.mxu0 0.0
        %3693 = vmatpush1.xpose.msra.mxu0 0.0
        %3694 = vmatprep.subr.mxu0 0.0
        %3695 = vmatpush1.xpose.msra.mxu0 0.0
        %3696 = vmatprep.subr.mxu0 0.0
        %3697 = vmatpush1.xpose.msra.mxu0 0.0
        %3698 = vmatprep.subr.mxu0 0.0
        %3699 = vmatpush1.xpose.msra.mxu0 0.0
        %3700 = vmatprep.subr.mxu0 0.0
        %3701 = vmatpush1.xpose.msra.mxu0 0.0
        %3702 = vmatprep.subr.mxu0 0.0
        %3703 = vmatpush1.xpose.msra.mxu0 0.0
        %3704 = vmatprep.mubr.f32.mxu0 0.0
        %3705 = vmatmul.mubr.f32.gmra.mrb[0].mxu0 %v3632
        %v3706 = vpop.f32.mrb[0].mxu0
        %v3707 = vadd.f32 0.0, %v3706
        %v3708 = vpop.f32.mrb[0].mxu0
        %3709 = vdwg.mxu0
        %v3710 = vmul.f32 %v3707, 0.35355338
        %v3711 = vsel %vm2763, %v3710, -inf
        %3712 = vmax.xlane.f32.xlu0 %v3711
        %v3713 = vpop.xlane.xlu0 %3712
        %v3714 = vsub.f32 %v3710, %v3713
        %v3715 = vmul.f32 %v3714, 1.442695
        %v3716 = vpow.pop %v3715
        %v3717 = vsel %vm2763, %v3716, 0.0
        %3718 = vadd.xlane.f32.xlu0 %v3717
        %v3719 = vpop.xlane.xlu0 %3718
        %v3720 = vrcp.pop %v3719
        %v3721 = vmul.f32 %v3716, %v3720
        %v3723 = vsel %vm2763, %v3721, 0
        %3725 = vmatprep.subr.mxu0 0.0
        %3726 = vmatpush1.msra.mxu0 %v3623
        %3727 = vmatprep.subr.mxu0 0.0
        %3728 = vmatpush1.msra.mxu0 %v3628
        %3729 = vmatprep.subr.mxu0 0.0
        %3730 = vmatpush1.msra.mxu0 0.0
        %3731 = vmatprep.subr.mxu0 0.0
        %3732 = vmatpush1.msra.mxu0 0.0
        %3733 = vmatprep.subr.mxu0 0.0
        %3734 = vmatpush1.msra.mxu0 0.0
        %3735 = vmatprep.subr.mxu0 0.0
        %3736 = vmatpush1.msra.mxu0 0.0
        %3737 = vmatprep.subr.mxu0 0.0
        %3738 = vmatpush1.msra.mxu0 0.0
        %3739 = vmatprep.subr.mxu0 0.0
        %3740 = vmatpush1.msra.mxu0 0.0
        %3741 = vmatprep.subr.mxu0 0.0
        %3742 = vmatpush1.msra.mxu0 0.0
        %3743 = vmatprep.subr.mxu0 0.0
        %3744 = vmatpush1.msra.mxu0 0.0
        %3745 = vmatprep.subr.mxu0 0.0
        %3746 = vmatpush1.msra.mxu0 0.0
        %3747 = vmatprep.subr.mxu0 0.0
        %3748 = vmatpush1.msra.mxu0 0.0
        %3749 = vmatprep.subr.mxu0 0.0
        %3750 = vmatpush1.msra.mxu0 0.0
        %3751 = vmatprep.subr.mxu0 0.0
        %3752 = vmatpush1.msra.mxu0 0.0
        %3753 = vmatprep.subr.mxu0 0.0
        %3754 = vmatpush1.msra.mxu0 0.0
        %3755 = vmatprep.subr.mxu0 0.0
        %3756 = vmatpush1.msra.mxu0 0.0
        %3757 = vmatprep.subr.mxu0 0.0
        %3758 = vmatpush1.msra.mxu0 0.0
        %3759 = vmatprep.subr.mxu0 0.0
        %3760 = vmatpush1.msra.mxu0 0.0
        %3761 = vmatprep.subr.mxu0 0.0
        %3762 = vmatpush1.msra.mxu0 0.0
        %3763 = vmatprep.subr.mxu0 0.0
        %3764 = vmatpush1.msra.mxu0 0.0
        %3765 = vmatprep.subr.mxu0 0.0
        %3766 = vmatpush1.msra.mxu0 0.0
        %3767 = vmatprep.subr.mxu0 0.0
        %3768 = vmatpush1.msra.mxu0 0.0
        %3769 = vmatprep.subr.mxu0 0.0
        %3770 = vmatpush1.msra.mxu0 0.0
        %3771 = vmatprep.subr.mxu0 0.0
        %3772 = vmatpush1.msra.mxu0 0.0
        %3773 = vmatprep.subr.mxu0 0.0
        %3774 = vmatpush1.msra.mxu0 0.0
        %3775 = vmatprep.subr.mxu0 0.0
        %3776 = vmatpush1.msra.mxu0 0.0
        %3777 = vmatprep.subr.mxu0 0.0
        %3778 = vmatpush1.msra.mxu0 0.0
        %3779 = vmatprep.subr.mxu0 0.0
        %3780 = vmatpush1.msra.mxu0 0.0
        %3781 = vmatprep.subr.mxu0 0.0
        %3782 = vmatpush1.msra.mxu0 0.0
        %3783 = vmatprep.subr.mxu0 0.0
        %3784 = vmatpush1.msra.mxu0 0.0
        %3785 = vmatprep.subr.mxu0 0.0
        %3786 = vmatpush1.msra.mxu0 0.0
        %3787 = vmatprep.subr.mxu0 0.0
        %3788 = vmatpush1.msra.mxu0 0.0
        %3789 = vmatprep.mubr.f32.mxu0 0.0
        %3790 = vmatmul.mubr.f32.gmra.mrb[0].mxu0 %v3723
        %v3791 = vpop.f32.mrb[0].mxu0
        %v3792 = vadd.f32 0.0, %v3791
        %v3793 = vpop.f32.mrb[0].mxu0
        %3794 = vdwg.mxu0
        %s3795 = scalar_lea.vmem %s9, 16
        %v3796 = vld [vmem:[%s3795] sm:$0xff]
        %v3798 = vsel %vm732, %v3792, 0
        %3800 = vmatprep.subr.mxu0 0.0
        %3801 = vmatpush1.msra.mxu0 %v3796
        %3802 = vmatprep.subr.mxu0 0.0
        %3803 = vmatpush1.msra.mxu0 0.0
        %3804 = vmatprep.subr.mxu0 0.0
        %3805 = vmatpush1.msra.mxu0 0.0
        %3806 = vmatprep.subr.mxu0 0.0
        %3807 = vmatpush1.msra.mxu0 0.0
        %3808 = vmatprep.subr.mxu0 0.0
        %3809 = vmatpush1.msra.mxu0 0.0
        %3810 = vmatprep.subr.mxu0 0.0
        %3811 = vmatpush1.msra.mxu0 0.0
        %3812 = vmatprep.subr.mxu0 0.0
        %3813 = vmatpush1.msra.mxu0 0.0
        %3814 = vmatprep.subr.mxu0 0.0
        %3815 = vmatpush1.msra.mxu0 0.0
        %3816 = vmatprep.subr.mxu0 0.0
        %3817 = vmatpush1.msra.mxu0 0.0
        %3818 = vmatprep.subr.mxu0 0.0
        %3819 = vmatpush1.msra.mxu0 0.0
        %3820 = vmatprep.subr.mxu0 0.0
        %3821 = vmatpush1.msra.mxu0 0.0
        %3822 = vmatprep.subr.mxu0 0.0
        %3823 = vmatpush1.msra.mxu0 0.0
        %3824 = vmatprep.subr.mxu0 0.0
        %3825 = vmatpush1.msra.mxu0 0.0
        %3826 = vmatprep.subr.mxu0 0.0
        %3827 = vmatpush1.msra.mxu0 0.0
        %3828 = vmatprep.subr.mxu0 0.0
        %3829 = vmatpush1.msra.mxu0 0.0
        %3830 = vmatprep.subr.mxu0 0.0
        %3831 = vmatpush1.msra.mxu0 0.0
        %3832 = vmatprep.subr.mxu0 0.0
        %3833 = vmatpush1.msra.mxu0 0.0
        %3834 = vmatprep.subr.mxu0 0.0
        %3835 = vmatpush1.msra.mxu0 0.0
        %3836 = vmatprep.subr.mxu0 0.0
        %3837 = vmatpush1.msra.mxu0 0.0
        %3838 = vmatprep.subr.mxu0 0.0
        %3839 = vmatpush1.msra.mxu0 0.0
        %3840 = vmatprep.subr.mxu0 0.0
        %3841 = vmatpush1.msra.mxu0 0.0
        %3842 = vmatprep.subr.mxu0 0.0
        %3843 = vmatpush1.msra.mxu0 0.0
        %3844 = vmatprep.subr.mxu0 0.0
        %3845 = vmatpush1.msra.mxu0 0.0
        %3846 = vmatprep.subr.mxu0 0.0
        %3847 = vmatpush1.msra.mxu0 0.0
        %3848 = vmatprep.subr.mxu0 0.0
        %3849 = vmatpush1.msra.mxu0 0.0
        %3850 = vmatprep.subr.mxu0 0.0
        %3851 = vmatpush1.msra.mxu0 0.0
        %3852 = vmatprep.subr.mxu0 0.0
        %3853 = vmatpush1.msra.mxu0 0.0
        %3854 = vmatprep.subr.mxu0 0.0
        %3855 = vmatpush1.msra.mxu0 0.0
        %3856 = vmatprep.subr.mxu0 0.0
        %3857 = vmatpush1.msra.mxu0 0.0
        %3858 = vmatprep.subr.mxu0 0.0
        %3859 = vmatpush1.msra.mxu0 0.0
        %3860 = vmatprep.subr.mxu0 0.0
        %3861 = vmatpush1.msra.mxu0 0.0
        %3862 = vmatprep.subr.mxu0 0.0
        %3863 = vmatpush1.msra.mxu0 0.0
        %3864 = vmatprep.mubr.f32.mxu0 0.0
        %3865 = vmatmul.mubr.f32.gmra.mrb[0].mxu0 %v3798
        %v3866 = vpop.f32.mrb[0].mxu0
        %v3867 = vadd.f32 0.0, %v3866
        %v3868 = vpop.f32.mrb[0].mxu0
        %3869 = vdwg.mxu0
        %v3870 = vadd.f32 %v3393, %v3867
        %s3871 = scalar_lea.vmem %s6, 96
        %v3872 = vld [vmem:[%s3871] sm:$0xff]
        %v3873 = vld [vmem:[%s3871 + $0x8] sm:$0xff]
        %v3874 = vld [vmem:[%s3871 + $0x10] sm:$0xff]
        %v3875 = vld [vmem:[%s3871 + $0x18] sm:$0xff]
        %3876 = vmatprep.subr.mxu0 0.0
        %3877 = vmatpush1.msra.mxu0 %v3872
        %3878 = vmatprep.subr.mxu0 0.0
        %3879 = vmatpush1.msra.mxu0 %v3873
        %3880 = vmatprep.subr.mxu0 0.0
        %3881 = vmatpush1.msra.mxu0 %v3874
        %3882 = vmatprep.subr.mxu0 0.0
        %3883 = vmatpush1.msra.mxu0 %v3875
        %3884 = vmatprep.subr.mxu0 0.0
        %3885 = vmatpush1.msra.mxu0 0.0
        %3886 = vmatprep.subr.mxu0 0.0
        %3887 = vmatpush1.msra.mxu0 0.0
        %3888 = vmatprep.subr.mxu0 0.0
        %3889 = vmatpush1.msra.mxu0 0.0
        %3890 = vmatprep.subr.mxu0 0.0
        %3891 = vmatpush1.msra.mxu0 0.0
        %3892 = vmatprep.subr.mxu0 0.0
        %3893 = vmatpush1.msra.mxu0 0.0
        %3894 = vmatprep.subr.mxu0 0.0
        %3895 = vmatpush1.msra.mxu0 0.0
        %3896 = vmatprep.subr.mxu0 0.0
        %3897 = vmatpush1.msra.mxu0 0.0
        %3898 = vmatprep.subr.mxu0 0.0
        %3899 = vmatpush1.msra.mxu0 0.0
        %3900 = vmatprep.subr.mxu0 0.0
        %3901 = vmatpush1.msra.mxu0 0.0
        %3902 = vmatprep.subr.mxu0 0.0
        %3903 = vmatpush1.msra.mxu0 0.0
        %3904 = vmatprep.subr.mxu0 0.0
        %3905 = vmatpush1.msra.mxu0 0.0
        %3906 = vmatprep.subr.mxu0 0.0
        %3907 = vmatpush1.msra.mxu0 0.0
        %3908 = vmatprep.subr.mxu0 0.0
        %3909 = vmatpush1.msra.mxu0 0.0
        %3910 = vmatprep.subr.mxu0 0.0
        %3911 = vmatpush1.msra.mxu0 0.0
        %3912 = vmatprep.subr.mxu0 0.0
        %3913 = vmatpush1.msra.mxu0 0.0
        %3914 = vmatprep.subr.mxu0 0.0
        %3915 = vmatpush1.msra.mxu0 0.0
        %3916 = vmatprep.subr.mxu0 0.0
        %3917 = vmatpush1.msra.mxu0 0.0
        %3918 = vmatprep.subr.mxu0 0.0
        %3919 = vmatpush1.msra.mxu0 0.0
        %3920 = vmatprep.subr.mxu0 0.0
        %3921 = vmatpush1.msra.mxu0 0.0
        %3922 = vmatprep.subr.mxu0 0.0
        %3923 = vmatpush1.msra.mxu0 0.0
        %3924 = vmatprep.subr.mxu0 0.0
        %3925 = vmatpush1.msra.mxu0 0.0
        %3926 = vmatprep.subr.mxu0 0.0
        %3927 = vmatpush1.msra.mxu0 0.0
        %3928 = vmatprep.subr.mxu0 0.0
        %3929 = vmatpush1.msra.mxu0 0.0
        %3930 = vmatprep.subr.mxu0 0.0
        %3931 = vmatpush1.msra.mxu0 0.0
        %3932 = vmatprep.subr.mxu0 0.0
        %3933 = vmatpush1.msra.mxu0 0.0
        %3934 = vmatprep.subr.mxu0 0.0
        %3935 = vmatpush1.msra.mxu0 0.0
        %3936 = vmatprep.subr.mxu0 0.0
        %3937 = vmatpush1.msra.mxu0 0.0
        %3938 = vmatprep.subr.mxu0 0.0
        %3939 = vmatpush1.msra.mxu0 0.0
        %3940 = vmatprep.mubr.f32.mxu0 0.0
        %3941 = vmatmul.mubr.f32.gmra.mrb[0].mxu0 %v2447
        %v3942 = vpop.f32.mrb[0].mxu0
        %v3943 = vadd.f32 0.0, %v3942
        %v3944 = vpop.f32.mrb[0].mxu0
        %3945 = vdwg.mxu0
        %s3946 = scalar_lea.vmem %s7, 96
        %v3947 = vld [vmem:[%s3946] sm:$0xff]
        %v3948 = vld [vmem:[%s3946 + $0x8] sm:$0xff]
        %v3949 = vld [vmem:[%s3946 + $0x10] sm:$0xff]
        %v3950 = vld [vmem:[%s3946 + $0x18] sm:$0xff]
        %3951 = vmatprep.subr.mxu0 0.0
        %3952 = vmatpush1.msra.mxu0 %v3947
        %3953 = vmatprep.subr.mxu0 0.0
        %3954 = vmatpush1.msra.mxu0 %v3948
        %3955 = vmatprep.subr.mxu0 0.0
        %3956 = vmatpush1.msra.mxu0 %v3949
        %3957 = vmatprep.subr.mxu0 0.0
        %3958 = vmatpush1.msra.mxu0 %v3950
        %3959 = vmatprep.subr.mxu0 0.0
        %3960 = vmatpush1.msra.mxu0 0.0
        %3961 = vmatprep.subr.mxu0 0.0
        %3962 = vmatpush1.msra.mxu0 0.0
        %3963 = vmatprep.subr.mxu0 0.0
        %3964 = vmatpush1.msra.mxu0 0.0
        %3965 = vmatprep.subr.mxu0 0.0
        %3966 = vmatpush1.msra.mxu0 0.0
        %3967 = vmatprep.subr.mxu0 0.0
        %3968 = vmatpush1.msra.mxu0 0.0
        %3969 = vmatprep.subr.mxu0 0.0
        %3970 = vmatpush1.msra.mxu0 0.0
        %3971 = vmatprep.subr.mxu0 0.0
        %3972 = vmatpush1.msra.mxu0 0.0
        %3973 = vmatprep.subr.mxu0 0.0
        %3974 = vmatpush1.msra.mxu0 0.0
        %3975 = vmatprep.subr.mxu0 0.0
        %3976 = vmatpush1.msra.mxu0 0.0
        %3977 = vmatprep.subr.mxu0 0.0
        %3978 = vmatpush1.msra.mxu0 0.0
        %3979 = vmatprep.subr.mxu0 0.0
        %3980 = vmatpush1.msra.mxu0 0.0
        %3981 = vmatprep.subr.mxu0 0.0
        %3982 = vmatpush1.msra.mxu0 0.0
        %3983 = vmatprep.subr.mxu0 0.0
        %3984 = vmatpush1.msra.mxu0 0.0
        %3985 = vmatprep.subr.mxu0 0.0
        %3986 = vmatpush1.msra.mxu0 0.0
        %3987 = vmatprep.subr.mxu0 0.0
        %3988 = vmatpush1.msra.mxu0 0.0
        %3989 = vmatprep.subr.mxu0 0.0
        %3990 = vmatpush1.msra.mxu0 0.0
        %3991 = vmatprep.subr.mxu0 0.0
        %3992 = vmatpush1.msra.mxu0 0.0
        %3993 = vmatprep.subr.mxu0 0.0
        %3994 = vmatpush1.msra.mxu0 0.0
        %3995 = vmatprep.subr.mxu0 0.0
        %3996 = vmatpush1.msra.mxu0 0.0
        %3997 = vmatprep.subr.mxu0 0.0
        %3998 = vmatpush1.msra.mxu0 0.0
        %3999 = vmatprep.subr.mxu0 0.0
        %4000 = vmatpush1.msra.mxu0 0.0
        %4001 = vmatprep.subr.mxu0 0.0
        %4002 = vmatpush1.msra.mxu0 0.0
        %4003 = vmatprep.subr.mxu0 0.0
        %4004 = vmatpush1.msra.mxu0 0.0
        %4005 = vmatprep.subr.mxu0 0.0
        %4006 = vmatpush1.msra.mxu0 0.0
        %4007 = vmatprep.subr.mxu0 0.0
        %4008 = vmatpush1.msra.mxu0 0.0
        %4009 = vmatprep.subr.mxu0 0.0
        %4010 = vmatpush1.msra.mxu0 0.0
        %4011 = vmatprep.subr.mxu0 0.0
        %4012 = vmatpush1.msra.mxu0 0.0
        %4013 = vmatprep.subr.mxu0 0.0
        %4014 = vmatpush1.msra.mxu0 0.0
        %4015 = vmatprep.mubr.f32.mxu0 0.0
        %4016 = vmatmul.mubr.f32.gmra.mrb[0].mxu0 %v2524
        %v4017 = vpop.f32.mrb[0].mxu0
        %v4018 = vadd.f32 0.0, %v4017
        %v4019 = vpop.f32.mrb[0].mxu0
        %4020 = vmatprep.mubr.f32.mxu0 0.0
        %4021 = vmatmul.mubr.f32.gmra.mrb[0].mxu0 %v2527
        %v4022 = vpop.f32.mrb[0].mxu0
        %v4023 = vadd.f32 0.0, %v4022
        %v4024 = vpop.f32.mrb[0].mxu0
        %4025 = vdwg.mxu0
        %s4026 = scalar_lea.vmem %s8, 96
        %v4027 = vld [vmem:[%s4026] sm:$0xff]
        %v4028 = vld [vmem:[%s4026 + $0x8] sm:$0xff]
        %v4029 = vld [vmem:[%s4026 + $0x10] sm:$0xff]
        %v4030 = vld [vmem:[%s4026 + $0x18] sm:$0xff]
        %4031 = vmatprep.subr.mxu0 0.0
        %4032 = vmatpush1.msra.mxu0 %v4027
        %4033 = vmatprep.subr.mxu0 0.0
        %4034 = vmatpush1.msra.mxu0 %v4028
        %4035 = vmatprep.subr.mxu0 0.0
        %4036 = vmatpush1.msra.mxu0 %v4029
        %4037 = vmatprep.subr.mxu0 0.0
        %4038 = vmatpush1.msra.mxu0 %v4030
        %4039 = vmatprep.subr.mxu0 0.0
        %4040 = vmatpush1.msra.mxu0 0.0
        %4041 = vmatprep.subr.mxu0 0.0
        %4042 = vmatpush1.msra.mxu0 0.0
        %4043 = vmatprep.subr.mxu0 0.0
        %4044 = vmatpush1.msra.mxu0 0.0
        %4045 = vmatprep.subr.mxu0 0.0
        %4046 = vmatpush1.msra.mxu0 0.0
        %4047 = vmatprep.subr.mxu0 0.0
        %4048 = vmatpush1.msra.mxu0 0.0
        %4049 = vmatprep.subr.mxu0 0.0
        %4050 = vmatpush1.msra.mxu0 0.0
        %4051 = vmatprep.subr.mxu0 0.0
        %4052 = vmatpush1.msra.mxu0 0.0
        %4053 = vmatprep.subr.mxu0 0.0
        %4054 = vmatpush1.msra.mxu0 0.0
        %4055 = vmatprep.subr.mxu0 0.0
        %4056 = vmatpush1.msra.mxu0 0.0
        %4057 = vmatprep.subr.mxu0 0.0
        %4058 = vmatpush1.msra.mxu0 0.0
        %4059 = vmatprep.subr.mxu0 0.0
        %4060 = vmatpush1.msra.mxu0 0.0
        %4061 = vmatprep.subr.mxu0 0.0
        %4062 = vmatpush1.msra.mxu0 0.0
        %4063 = vmatprep.subr.mxu0 0.0
        %4064 = vmatpush1.msra.mxu0 0.0
        %4065 = vmatprep.subr.mxu0 0.0
        %4066 = vmatpush1.msra.mxu0 0.0
        %4067 = vmatprep.subr.mxu0 0.0
        %4068 = vmatpush1.msra.mxu0 0.0
        %4069 = vmatprep.subr.mxu0 0.0
        %4070 = vmatpush1.msra.mxu0 0.0
        %4071 = vmatprep.subr.mxu0 0.0
        %4072 = vmatpush1.msra.mxu0 0.0
        %4073 = vmatprep.subr.mxu0 0.0
        %4074 = vmatpush1.msra.mxu0 0.0
        %4075 = vmatprep.subr.mxu0 0.0
        %4076 = vmatpush1.msra.mxu0 0.0
        %4077 = vmatprep.subr.mxu0 0.0
        %4078 = vmatpush1.msra.mxu0 0.0
        %4079 = vmatprep.subr.mxu0 0.0
        %4080 = vmatpush1.msra.mxu0 0.0
        %4081 = vmatprep.subr.mxu0 0.0
        %4082 = vmatpush1.msra.mxu0 0.0
        %4083 = vmatprep.subr.mxu0 0.0
        %4084 = vmatpush1.msra.mxu0 0.0
        %4085 = vmatprep.subr.mxu0 0.0
        %4086 = vmatpush1.msra.mxu0 0.0
        %4087 = vmatprep.subr.mxu0 0.0
        %4088 = vmatpush1.msra.mxu0 0.0
        %4089 = vmatprep.subr.mxu0 0.0
        %4090 = vmatpush1.msra.mxu0 0.0
        %4091 = vmatprep.subr.mxu0 0.0
        %4092 = vmatpush1.msra.mxu0 0.0
        %4093 = vmatprep.subr.mxu0 0.0
        %4094 = vmatpush1.msra.mxu0 0.0
        %4095 = vmatprep.mubr.f32.mxu0 0.0
        %4096 = vmatmul.mubr.f32.gmra.mrb[0].mxu0 %v2524
        %v4097 = vpop.f32.mrb[0].mxu0
        %v4098 = vadd.f32 0.0, %v4097
        %v4099 = vpop.f32.mrb[0].mxu0
        %4100 = vmatprep.mubr.f32.mxu0 0.0
        %4101 = vmatmul.mubr.f32.gmra.mrb[0].mxu0 %v2527
        %v4102 = vpop.f32.mrb[0].mxu0
        %v4103 = vadd.f32 0.0, %v4102
        %v4104 = vpop.f32.mrb[0].mxu0
        %4105 = vdwg.mxu0
        %v4107 = vsel %vm732, %v3943, 0
        %v4110 = vsel %vm732, %v4018, 0
        %v4113 = vsel %vm732, %v4023, 0
        %4115 = vmatprep.subr.mxu0 0.0
        %4116 = vmatpush1.xpose.msra.mxu0 %v4110
        %4117 = vmatprep.subr.mxu0 0.0
        %4118 = vmatpush1.xpose.msra.mxu0 %v4113
        %4119 = vmatprep.subr.mxu0 0.0
        %4120 = vmatpush1.xpose.msra.mxu0 0.0
        %4121 = vmatprep.subr.mxu0 0.0
        %4122 = vmatpush1.xpose.msra.mxu0 0.0
        %4123 = vmatprep.subr.mxu0 0.0
        %4124 = vmatpush1.xpose.msra.mxu0 0.0
        %4125 = vmatprep.subr.mxu0 0.0
        %4126 = vmatpush1.xpose.msra.mxu0 0.0
        %4127 = vmatprep.subr.mxu0 0.0
        %4128 = vmatpush1.xpose.msra.mxu0 0.0
        %4129 = vmatprep.subr.mxu0 0.0
        %4130 = vmatpush1.xpose.msra.mxu0 0.0
        %4131 = vmatprep.subr.mxu0 0.0
        %4132 = vmatpush1.xpose.msra.mxu0 0.0
        %4133 = vmatprep.subr.mxu0 0.0
        %4134 = vmatpush1.xpose.msra.mxu0 0.0
        %4135 = vmatprep.subr.mxu0 0.0
        %4136 = vmatpush1.xpose.msra.mxu0 0.0
        %4137 = vmatprep.subr.mxu0 0.0
        %4138 = vmatpush1.xpose.msra.mxu0 0.0
        %4139 = vmatprep.subr.mxu0 0.0
        %4140 = vmatpush1.xpose.msra.mxu0 0.0
        %4141 = vmatprep.subr.mxu0 0.0
        %4142 = vmatpush1.xpose.msra.mxu0 0.0
        %4143 = vmatprep.subr.mxu0 0.0
        %4144 = vmatpush1.xpose.msra.mxu0 0.0
        %4145 = vmatprep.subr.mxu0 0.0
        %4146 = vmatpush1.xpose.msra.mxu0 0.0
        %4147 = vmatprep.subr.mxu0 0.0
        %4148 = vmatpush1.xpose.msra.mxu0 0.0
        %4149 = vmatprep.subr.mxu0 0.0
        %4150 = vmatpush1.xpose.msra.mxu0 0.0
        %4151 = vmatprep.subr.mxu0 0.0
        %4152 = vmatpush1.xpose.msra.mxu0 0.0
        %4153 = vmatprep.subr.mxu0 0.0
        %4154 = vmatpush1.xpose.msra.mxu0 0.0
        %4155 = vmatprep.subr.mxu0 0.0
        %4156 = vmatpush1.xpose.msra.mxu0 0.0
        %4157 = vmatprep.subr.mxu0 0.0
        %4158 = vmatpush1.xpose.msra.mxu0 0.0
        %4159 = vmatprep.subr.mxu0 0.0
        %4160 = vmatpush1.xpose.msra.mxu0 0.0
        %4161 = vmatprep.subr.mxu0 0.0
        %4162 = vmatpush1.xpose.msra.mxu0 0.0
        %4163 = vmatprep.subr.mxu0 0.0
        %4164 = vmatpush1.xpose.msra.mxu0 0.0
        %4165 = vmatprep.subr.mxu0 0.0
        %4166 = vmatpush1.xpose.msra.mxu0 0.0
        %4167 = vmatprep.subr.mxu0 0.0
        %4168 = vmatpush1.xpose.msra.mxu0 0.0
        %4169 = vmatprep.subr.mxu0 0.0
        %4170 = vmatpush1.xpose.msra.mxu0 0.0
        %4171 = vmatprep.subr.mxu0 0.0
        %4172 = vmatpush1.xpose.msra.mxu0 0.0
        %4173 = vmatprep.subr.mxu0 0.0
        %4174 = vmatpush1.xpose.msra.mxu0 0.0
        %4175 = vmatprep.subr.mxu0 0.0
        %4176 = vmatpush1.xpose.msra.mxu0 0.0
        %4177 = vmatprep.subr.mxu0 0.0
        %4178 = vmatpush1.xpose.msra.mxu0 0.0
        %4179 = vmatprep.mubr.f32.mxu0 0.0
        %4180 = vmatmul.mubr.f32.gmra.mrb[0].mxu0 %v4107
        %v4181 = vpop.f32.mrb[0].mxu0
        %v4182 = vadd.f32 0.0, %v4181
        %v4183 = vpop.f32.mrb[0].mxu0
        %4184 = vdwg.mxu0
        %v4185 = vmul.f32 %v4182, 0.35355338
        %v4186 = vsel %vm2763, %v4185, -inf
        %4187 = vmax.xlane.f32.xlu0 %v4186
        %v4188 = vpop.xlane.xlu0 %4187
        %v4189 = vsub.f32 %v4185, %v4188
        %v4190 = vmul.f32 %v4189, 1.442695
        %v4191 = vpow.pop %v4190
        %v4192 = vsel %vm2763, %v4191, 0.0
        %4193 = vadd.xlane.f32.xlu0 %v4192
        %v4194 = vpop.xlane.xlu0 %4193
        %v4195 = vrcp.pop %v4194
        %v4196 = vmul.f32 %v4191, %v4195
        %v4198 = vsel %vm2763, %v4196, 0
        %4200 = vmatprep.subr.mxu0 0.0
        %4201 = vmatpush1.msra.mxu0 %v4098
        %4202 = vmatprep.subr.mxu0 0.0
        %4203 = vmatpush1.msra.mxu0 %v4103
        %4204 = vmatprep.subr.mxu0 0.0
        %4205 = vmatpush1.msra.mxu0 0.0
        %4206 = vmatprep.subr.mxu0 0.0
        %4207 = vmatpush1.msra.mxu0 0.0
        %4208 = vmatprep.subr.mxu0 0.0
        %4209 = vmatpush1.msra.mxu0 0.0
        %4210 = vmatprep.subr.mxu0 0.0
        %4211 = vmatpush1.msra.mxu0 0.0
        %4212 = vmatprep.subr.mxu0 0.0
        %4213 = vmatpush1.msra.mxu0 0.0
        %4214 = vmatprep.subr.mxu0 0.0
        %4215 = vmatpush1.msra.mxu0 0.0
        %4216 = vmatprep.subr.mxu0 0.0
        %4217 = vmatpush1.msra.mxu0 0.0
        %4218 = vmatprep.subr.mxu0 0.0
        %4219 = vmatpush1.msra.mxu0 0.0
        %4220 = vmatprep.subr.mxu0 0.0
        %4221 = vmatpush1.msra.mxu0 0.0
        %4222 = vmatprep.subr.mxu0 0.0
        %4223 = vmatpush1.msra.mxu0 0.0
        %4224 = vmatprep.subr.mxu0 0.0
        %4225 = vmatpush1.msra.mxu0 0.0
        %4226 = vmatprep.subr.mxu0 0.0
        %4227 = vmatpush1.msra.mxu0 0.0
        %4228 = vmatprep.subr.mxu0 0.0
        %4229 = vmatpush1.msra.mxu0 0.0
        %4230 = vmatprep.subr.mxu0 0.0
        %4231 = vmatpush1.msra.mxu0 0.0
        %4232 = vmatprep.subr.mxu0 0.0
        %4233 = vmatpush1.msra.mxu0 0.0
        %4234 = vmatprep.subr.mxu0 0.0
        %4235 = vmatpush1.msra.mxu0 0.0
        %4236 = vmatprep.subr.mxu0 0.0
        %4237 = vmatpush1.msra.mxu0 0.0
        %4238 = vmatprep.subr.mxu0 0.0
        %4239 = vmatpush1.msra.mxu0 0.0
        %4240 = vmatprep.subr.mxu0 0.0
        %4241 = vmatpush1.msra.mxu0 0.0
        %4242 = vmatprep.subr.mxu0 0.0
        %4243 = vmatpush1.msra.mxu0 0.0
        %4244 = vmatprep.subr.mxu0 0.0
        %4245 = vmatpush1.msra.mxu0 0.0
        %4246 = vmatprep.subr.mxu0 0.0
        %4247 = vmatpush1.msra.mxu0 0.0
        %4248 = vmatprep.subr.mxu0 0.0
        %4249 = vmatpush1.msra.mxu0 0.0
        %4250 = vmatprep.subr.mxu0 0.0
        %4251 = vmatpush1.msra.mxu0 0.0
        %4252 = vmatprep.subr.mxu0 0.0
        %4253 = vmatpush1.msra.mxu0 0.0
        %4254 = vmatprep.subr.mxu0 0.0
        %4255 = vmatpush1.msra.mxu0 0.0
        %4256 = vmatprep.subr.mxu0 0.0
        %4257 = vmatpush1.msra.mxu0 0.0
        %4258 = vmatprep.subr.mxu0 0.0
        %4259 = vmatpush1.msra.mxu0 0.0
        %4260 = vmatprep.subr.mxu0 0.0
        %4261 = vmatpush1.msra.mxu0 0.0
        %4262 = vmatprep.subr.mxu0 0.0
        %4263 = vmatpush1.msra.mxu0 0.0
        %4264 = vmatprep.mubr.f32.mxu0 0.0
        %4265 = vmatmul.mubr.f32.gmra.mrb[0].mxu0 %v4198
        %v4266 = vpop.f32.mrb[0].mxu0
        %v4267 = vadd.f32 0.0, %v4266
        %v4268 = vpop.f32.mrb[0].mxu0
        %4269 = vdwg.mxu0
        %s4270 = scalar_lea.vmem %s9, 24
        %v4271 = vld [vmem:[%s4270] sm:$0xff]
        %v4273 = vsel %vm732, %v4267, 0
        %4275 = vmatprep.subr.mxu0 0.0
        %4276 = vmatpush1.msra.mxu0 %v4271
        %4277 = vmatprep.subr.mxu0 0.0
        %4278 = vmatpush1.msra.mxu0 0.0
        %4279 = vmatprep.subr.mxu0 0.0
        %4280 = vmatpush1.msra.mxu0 0.0
        %4281 = vmatprep.subr.mxu0 0.0
        %4282 = vmatpush1.msra.mxu0 0.0
        %4283 = vmatprep.subr.mxu0 0.0
        %4284 = vmatpush1.msra.mxu0 0.0
        %4285 = vmatprep.subr.mxu0 0.0
        %4286 = vmatpush1.msra.mxu0 0.0
        %4287 = vmatprep.subr.mxu0 0.0
        %4288 = vmatpush1.msra.mxu0 0.0
        %4289 = vmatprep.subr.mxu0 0.0
        %4290 = vmatpush1.msra.mxu0 0.0
        %4291 = vmatprep.subr.mxu0 0.0
        %4292 = vmatpush1.msra.mxu0 0.0
        %4293 = vmatprep.subr.mxu0 0.0
        %4294 = vmatpush1.msra.mxu0 0.0
        %4295 = vmatprep.subr.mxu0 0.0
        %4296 = vmatpush1.msra.mxu0 0.0
        %4297 = vmatprep.subr.mxu0 0.0
        %4298 = vmatpush1.msra.mxu0 0.0
        %4299 = vmatprep.subr.mxu0 0.0
        %4300 = vmatpush1.msra.mxu0 0.0
        %4301 = vmatprep.subr.mxu0 0.0
        %4302 = vmatpush1.msra.mxu0 0.0
        %4303 = vmatprep.subr.mxu0 0.0
        %4304 = vmatpush1.msra.mxu0 0.0
        %4305 = vmatprep.subr.mxu0 0.0
        %4306 = vmatpush1.msra.mxu0 0.0
        %4307 = vmatprep.subr.mxu0 0.0
        %4308 = vmatpush1.msra.mxu0 0.0
        %4309 = vmatprep.subr.mxu0 0.0
        %4310 = vmatpush1.msra.mxu0 0.0
        %4311 = vmatprep.subr.mxu0 0.0
        %4312 = vmatpush1.msra.mxu0 0.0
        %4313 = vmatprep.subr.mxu0 0.0
        %4314 = vmatpush1.msra.mxu0 0.0
        %4315 = vmatprep.subr.mxu0 0.0
        %4316 = vmatpush1.msra.mxu0 0.0
        %4317 = vmatprep.subr.mxu0 0.0
        %4318 = vmatpush1.msra.mxu0 0.0
        %4319 = vmatprep.subr.mxu0 0.0
        %4320 = vmatpush1.msra.mxu0 0.0
        %4321 = vmatprep.subr.mxu0 0.0
        %4322 = vmatpush1.msra.mxu0 0.0
        %4323 = vmatprep.subr.mxu0 0.0
        %4324 = vmatpush1.msra.mxu0 0.0
        %4325 = vmatprep.subr.mxu0 0.0
        %4326 = vmatpush1.msra.mxu0 0.0
        %4327 = vmatprep.subr.mxu0 0.0
        %4328 = vmatpush1.msra.mxu0 0.0
        %4329 = vmatprep.subr.mxu0 0.0
        %4330 = vmatpush1.msra.mxu0 0.0
        %4331 = vmatprep.subr.mxu0 0.0
        %4332 = vmatpush1.msra.mxu0 0.0
        %4333 = vmatprep.subr.mxu0 0.0
        %4334 = vmatpush1.msra.mxu0 0.0
        %4335 = vmatprep.subr.mxu0 0.0
        %4336 = vmatpush1.msra.mxu0 0.0
        %4337 = vmatprep.subr.mxu0 0.0
        %4338 = vmatpush1.msra.mxu0 0.0
        %4339 = vmatprep.mubr.f32.mxu0 0.0
        %4340 = vmatmul.mubr.f32.gmra.mrb[0].mxu0 %v4273
        %v4341 = vpop.f32.mrb[0].mxu0
        %v4342 = vadd.f32 0.0, %v4341
        %v4343 = vpop.f32.mrb[0].mxu0
        %4344 = vdwg.mxu0
        %v4345 = vadd.f32 %v3870, %v4342
        %v4346 = vadd.f32 %v2441, %v4345
        %v4347 = vlaneseq
        %v4348 = vshrl.u32 %v4347, 7
        %v4349 = vsub.s32 0, %v4348
        %v4350 = vrot.slane %v4346, %v4349
        %v4351 = vlaneseq
        %v4352 = vshrl.u32 %v4351, 7
        %v4353 = vsub.s32 7, %v4352
        %v4354 = vrot.slane %v4346, %v4353
        %v4356 = vrot.slane %v4346, 4
        %v4358 = vsel %vm2365, %v4350, %v4356
        %v4359 = vsel %vm2365, %v4356, %v4354
        %4360 = vmatprep.subr.mxu0 0.0
        %4361 = vmatpush1.msra.mxu0 %v4350
        %4362 = vmatprep.subr.mxu0 0.0
        %4363 = vmatpush1.msra.mxu0 %v4358
        %4364 = vmatprep.subr.mxu0 0.0
        %4365 = vmatpush1.msra.mxu0 %v4359
        %4366 = vmatprep.subr.mxu0 0.0
        %4367 = vmatpush1.msra.mxu0 %v4354
        %4368 = vmatprep.subr.mxu0 0.0
        %4369 = vmatpush1.msra.mxu0 0.0
        %4370 = vmatprep.subr.mxu0 0.0
        %4371 = vmatpush1.msra.mxu0 0.0
        %4372 = vmatprep.subr.mxu0 0.0
        %4373 = vmatpush1.msra.mxu0 0.0
        %4374 = vmatprep.subr.mxu0 0.0
        %4375 = vmatpush1.msra.mxu0 0.0
        %4376 = vmatprep.subr.mxu0 0.0
        %4377 = vmatpush1.msra.mxu0 0.0
        %4378 = vmatprep.subr.mxu0 0.0
        %4379 = vmatpush1.msra.mxu0 0.0
        %4380 = vmatprep.subr.mxu0 0.0
        %4381 = vmatpush1.msra.mxu0 0.0
        %4382 = vmatprep.subr.mxu0 0.0
        %4383 = vmatpush1.msra.mxu0 0.0
        %4384 = vmatprep.subr.mxu0 0.0
        %4385 = vmatpush1.msra.mxu0 0.0
        %4386 = vmatprep.subr.mxu0 0.0
        %4387 = vmatpush1.msra.mxu0 0.0
        %4388 = vmatprep.subr.mxu0 0.0
        %4389 = vmatpush1.msra.mxu0 0.0
        %4390 = vmatprep.subr.mxu0 0.0
        %4391 = vmatpush1.msra.mxu0 0.0
        %4392 = vmatprep.subr.mxu0 0.0
        %4393 = vmatpush1.msra.mxu0 0.0
        %4394 = vmatprep.subr.mxu0 0.0
        %4395 = vmatpush1.msra.mxu0 0.0
        %4396 = vmatprep.subr.mxu0 0.0
        %4397 = vmatpush1.msra.mxu0 0.0
        %4398 = vmatprep.subr.mxu0 0.0
        %4399 = vmatpush1.msra.mxu0 0.0
        %4400 = vmatprep.subr.mxu0 0.0
        %4401 = vmatpush1.msra.mxu0 0.0
        %4402 = vmatprep.subr.mxu0 0.0
        %4403 = vmatpush1.msra.mxu0 0.0
        %4404 = vmatprep.subr.mxu0 0.0
        %4405 = vmatpush1.msra.mxu0 0.0
        %4406 = vmatprep.subr.mxu0 0.0
        %4407 = vmatpush1.msra.mxu0 0.0
        %4408 = vmatprep.subr.mxu0 0.0
        %4409 = vmatpush1.msra.mxu0 0.0
        %4410 = vmatprep.subr.mxu0 0.0
        %4411 = vmatpush1.msra.mxu0 0.0
        %4412 = vmatprep.subr.mxu0 0.0
        %4413 = vmatpush1.msra.mxu0 0.0
        %4414 = vmatprep.subr.mxu0 0.0
        %4415 = vmatpush1.msra.mxu0 0.0
        %4416 = vmatprep.subr.mxu0 0.0
        %4417 = vmatpush1.msra.mxu0 0.0
        %4418 = vmatprep.subr.mxu0 0.0
        %4419 = vmatpush1.msra.mxu0 0.0
        %4420 = vmatprep.subr.mxu0 0.0
        %4421 = vmatpush1.msra.mxu0 0.0
        %4422 = vmatprep.subr.mxu0 0.0
        %4423 = vmatpush1.msra.mxu0 0.0
        %4424 = vmatprep.mubr.f32.mxu0 0.0
        %4425 = vmatmul.mubr.f32.gmra.mrb[0].mxu0 %v2369
        %v4426 = vpop.f32.mrb[0].mxu0
        %v4427 = vadd.f32 0.0, %v4426
        %v4428 = vpop.f32.mrb[0].mxu0
        %4429 = vdwg.mxu0
        %v4430 = vsub.f32 %v4346, %v4427
        %v4431 = vld [vmem:[%s10] sm:$0xff]
        %v4432 = vld [vmem:[%s10 + $0x8] sm:$0xff]
        %v4433 = vld [vmem:[%s10 + $0x10] sm:$0xff]
        %v4434 = vld [vmem:[%s10 + $0x18] sm:$0xff]
        %v4436 = vsel %vm510, %v4430, 0
        %4438 = vmatprep.subr.mxu0 0.0
        %4439 = vmatpush1.msra.mxu0 %v4431
        %4440 = vmatprep.subr.mxu0 0.0
        %4441 = vmatpush1.msra.mxu0 %v4432
        %4442 = vmatprep.subr.mxu0 0.0
        %4443 = vmatpush1.msra.mxu0 %v4433
        %4444 = vmatprep.subr.mxu0 0.0
        %4445 = vmatpush1.msra.mxu0 %v4434
        %4446 = vmatprep.subr.mxu0 0.0
        %4447 = vmatpush1.msra.mxu0 0.0
        %4448 = vmatprep.subr.mxu0 0.0
        %4449 = vmatpush1.msra.mxu0 0.0
        %4450 = vmatprep.subr.mxu0 0.0
        %4451 = vmatpush1.msra.mxu0 0.0
        %4452 = vmatprep.subr.mxu0 0.0
        %4453 = vmatpush1.msra.mxu0 0.0
        %4454 = vmatprep.subr.mxu0 0.0
        %4455 = vmatpush1.msra.mxu0 0.0
        %4456 = vmatprep.subr.mxu0 0.0
        %4457 = vmatpush1.msra.mxu0 0.0
        %4458 = vmatprep.subr.mxu0 0.0
        %4459 = vmatpush1.msra.mxu0 0.0
        %4460 = vmatprep.subr.mxu0 0.0
        %4461 = vmatpush1.msra.mxu0 0.0
        %4462 = vmatprep.subr.mxu0 0.0
        %4463 = vmatpush1.msra.mxu0 0.0
        %4464 = vmatprep.subr.mxu0 0.0
        %4465 = vmatpush1.msra.mxu0 0.0
        %4466 = vmatprep.subr.mxu0 0.0
        %4467 = vmatpush1.msra.mxu0 0.0
        %4468 = vmatprep.subr.mxu0 0.0
        %4469 = vmatpush1.msra.mxu0 0.0
        %4470 = vmatprep.subr.mxu0 0.0
        %4471 = vmatpush1.msra.mxu0 0.0
        %4472 = vmatprep.subr.mxu0 0.0
        %4473 = vmatpush1.msra.mxu0 0.0
        %4474 = vmatprep.subr.mxu0 0.0
        %4475 = vmatpush1.msra.mxu0 0.0
        %4476 = vmatprep.subr.mxu0 0.0
        %4477 = vmatpush1.msra.mxu0 0.0
        %4478 = vmatprep.subr.mxu0 0.0
        %4479 = vmatpush1.msra.mxu0 0.0
        %4480 = vmatprep.subr.mxu0 0.0
        %4481 = vmatpush1.msra.mxu0 0.0
        %4482 = vmatprep.subr.mxu0 0.0
        %4483 = vmatpush1.msra.mxu0 0.0
        %4484 = vmatprep.subr.mxu0 0.0
        %4485 = vmatpush1.msra.mxu0 0.0
        %4486 = vmatprep.subr.mxu0 0.0
        %4487 = vmatpush1.msra.mxu0 0.0
        %4488 = vmatprep.subr.mxu0 0.0
        %4489 = vmatpush1.msra.mxu0 0.0
        %4490 = vmatprep.subr.mxu0 0.0
        %4491 = vmatpush1.msra.mxu0 0.0
        %4492 = vmatprep.subr.mxu0 0.0
        %4493 = vmatpush1.msra.mxu0 0.0
        %4494 = vmatprep.subr.mxu0 0.0
        %4495 = vmatpush1.msra.mxu0 0.0
        %4496 = vmatprep.subr.mxu0 0.0
        %4497 = vmatpush1.msra.mxu0 0.0
        %4498 = vmatprep.subr.mxu0 0.0
        %4499 = vmatpush1.msra.mxu0 0.0
        %4500 = vmatprep.subr.mxu0 0.0
        %4501 = vmatpush1.msra.mxu0 0.0
        %4502 = vmatprep.mubr.f32.mxu0 0.0
        %4503 = vmatmul.mubr.f32.gmra.mrb[0].mxu0 %v4436
        %v4504 = vpop.f32.mrb[0].mxu0
        %v4505 = vadd.f32 0.0, %v4504
        %v4506 = vpop.f32.mrb[0].mxu0
        %4507 = vdwg.mxu0
        %v4508 = vmax.f32 %v4505, 0.0
        %v4509 = vld [vmem:[%s11] sm:$0xff]
        %v4510 = vld [vmem:[%s11 + $0x8] sm:$0xff]
        %v4511 = vld [vmem:[%s11 + $0x10] sm:$0xff]
        %v4512 = vld [vmem:[%s11 + $0x18] sm:$0xff]
        %v4513 = vld [vmem:[%s11 + $0x20] sm:$0xff]
        %v4514 = vld [vmem:[%s11 + $0x28] sm:$0xff]
        %v4515 = vld [vmem:[%s11 + $0x30] sm:$0xff]
        %v4516 = vld [vmem:[%s11 + $0x38] sm:$0xff]
        %v4517 = vld [vmem:[%s11 + $0x40] sm:$0xff]
        %v4518 = vld [vmem:[%s11 + $0x48] sm:$0xff]
        %v4519 = vld [vmem:[%s11 + $0x50] sm:$0xff]
        %v4520 = vld [vmem:[%s11 + $0x58] sm:$0xff]
        %v4521 = vld [vmem:[%s11 + $0x60] sm:$0xff]
        %v4522 = vld [vmem:[%s11 + $0x68] sm:$0xff]
        %v4523 = vld [vmem:[%s11 + $0x70] sm:$0xff]
        %v4524 = vld [vmem:[%s11 + $0x78] sm:$0xff]
        %4525 = vmatprep.subr.mxu0 0.0
        %4526 = vmatpush1.msra.mxu0 %v4509
        %4527 = vmatprep.subr.mxu0 0.0
        %4528 = vmatpush1.msra.mxu0 %v4510
        %4529 = vmatprep.subr.mxu0 0.0
        %4530 = vmatpush1.msra.mxu0 %v4511
        %4531 = vmatprep.subr.mxu0 0.0
        %4532 = vmatpush1.msra.mxu0 %v4512
        %4533 = vmatprep.subr.mxu0 0.0
        %4534 = vmatpush1.msra.mxu0 %v4513
        %4535 = vmatprep.subr.mxu0 0.0
        %4536 = vmatpush1.msra.mxu0 %v4514
        %4537 = vmatprep.subr.mxu0 0.0
        %4538 = vmatpush1.msra.mxu0 %v4515
        %4539 = vmatprep.subr.mxu0 0.0
        %4540 = vmatpush1.msra.mxu0 %v4516
        %4541 = vmatprep.subr.mxu0 0.0
        %4542 = vmatpush1.msra.mxu0 %v4517
        %4543 = vmatprep.subr.mxu0 0.0
        %4544 = vmatpush1.msra.mxu0 %v4518
        %4545 = vmatprep.subr.mxu0 0.0
        %4546 = vmatpush1.msra.mxu0 %v4519
        %4547 = vmatprep.subr.mxu0 0.0
        %4548 = vmatpush1.msra.mxu0 %v4520
        %4549 = vmatprep.subr.mxu0 0.0
        %4550 = vmatpush1.msra.mxu0 %v4521
        %4551 = vmatprep.subr.mxu0 0.0
        %4552 = vmatpush1.msra.mxu0 %v4522
        %4553 = vmatprep.subr.mxu0 0.0
        %4554 = vmatpush1.msra.mxu0 %v4523
        %4555 = vmatprep.subr.mxu0 0.0
        %4556 = vmatpush1.msra.mxu0 %v4524
        %4557 = vmatprep.subr.mxu0 0.0
        %4558 = vmatpush1.msra.mxu0 0.0
        %4559 = vmatprep.subr.mxu0 0.0
        %4560 = vmatpush1.msra.mxu0 0.0
        %4561 = vmatprep.subr.mxu0 0.0
        %4562 = vmatpush1.msra.mxu0 0.0
        %4563 = vmatprep.subr.mxu0 0.0
        %4564 = vmatpush1.msra.mxu0 0.0
        %4565 = vmatprep.subr.mxu0 0.0
        %4566 = vmatpush1.msra.mxu0 0.0
        %4567 = vmatprep.subr.mxu0 0.0
        %4568 = vmatpush1.msra.mxu0 0.0
        %4569 = vmatprep.subr.mxu0 0.0
        %4570 = vmatpush1.msra.mxu0 0.0
        %4571 = vmatprep.subr.mxu0 0.0
        %4572 = vmatpush1.msra.mxu0 0.0
        %4573 = vmatprep.subr.mxu0 0.0
        %4574 = vmatpush1.msra.mxu0 0.0
        %4575 = vmatprep.subr.mxu0 0.0
        %4576 = vmatpush1.msra.mxu0 0.0
        %4577 = vmatprep.subr.mxu0 0.0
        %4578 = vmatpush1.msra.mxu0 0.0
        %4579 = vmatprep.subr.mxu0 0.0
        %4580 = vmatpush1.msra.mxu0 0.0
        %4581 = vmatprep.subr.mxu0 0.0
        %4582 = vmatpush1.msra.mxu0 0.0
        %4583 = vmatprep.subr.mxu0 0.0
        %4584 = vmatpush1.msra.mxu0 0.0
        %4585 = vmatprep.subr.mxu0 0.0
        %4586 = vmatpush1.msra.mxu0 0.0
        %4587 = vmatprep.subr.mxu0 0.0
        %4588 = vmatpush1.msra.mxu0 0.0
        %4589 = vmatprep.mubr.f32.mxu0 0.0
        %4590 = vmatmul.mubr.f32.gmra.mrb[0].mxu0 %v4508
        %v4591 = vpop.f32.mrb[0].mxu0
        %v4592 = vadd.f32 0.0, %v4591
        %v4593 = vpop.f32.mrb[0].mxu0
        %4594 = vdwg.mxu0
        %v4595 = vadd.f32 %v4430, %v4592
        %v4596 = vlaneseq
        %v4597 = vshrl.u32 %v4596, 7
        %v4598 = vsub.s32 0, %v4597
        %v4599 = vrot.slane %v4595, %v4598
        %v4600 = vlaneseq
        %v4601 = vshrl.u32 %v4600, 7
        %v4602 = vsub.s32 7, %v4601
        %v4603 = vrot.slane %v4595, %v4602
        %v4605 = vrot.slane %v4595, 4
        %v4607 = vsel %vm2365, %v4599, %v4605
        %v4608 = vsel %vm2365, %v4605, %v4603
        %4609 = vmatprep.subr.mxu0 0.0
        %4610 = vmatpush1.msra.mxu0 %v4599
        %4611 = vmatprep.subr.mxu0 0.0
        %4612 = vmatpush1.msra.mxu0 %v4607
        %4613 = vmatprep.subr.mxu0 0.0
        %4614 = vmatpush1.msra.mxu0 %v4608
        %4615 = vmatprep.subr.mxu0 0.0
        %4616 = vmatpush1.msra.mxu0 %v4603
        %4617 = vmatprep.subr.mxu0 0.0
        %4618 = vmatpush1.msra.mxu0 0.0
        %4619 = vmatprep.subr.mxu0 0.0
        %4620 = vmatpush1.msra.mxu0 0.0
        %4621 = vmatprep.subr.mxu0 0.0
        %4622 = vmatpush1.msra.mxu0 0.0
        %4623 = vmatprep.subr.mxu0 0.0
        %4624 = vmatpush1.msra.mxu0 0.0
        %4625 = vmatprep.subr.mxu0 0.0
        %4626 = vmatpush1.msra.mxu0 0.0
        %4627 = vmatprep.subr.mxu0 0.0
        %4628 = vmatpush1.msra.mxu0 0.0
        %4629 = vmatprep.subr.mxu0 0.0
        %4630 = vmatpush1.msra.mxu0 0.0
        %4631 = vmatprep.subr.mxu0 0.0
        %4632 = vmatpush1.msra.mxu0 0.0
        %4633 = vmatprep.subr.mxu0 0.0
        %4634 = vmatpush1.msra.mxu0 0.0
        %4635 = vmatprep.subr.mxu0 0.0
        %4636 = vmatpush1.msra.mxu0 0.0
        %4637 = vmatprep.subr.mxu0 0.0
        %4638 = vmatpush1.msra.mxu0 0.0
        %4639 = vmatprep.subr.mxu0 0.0
        %4640 = vmatpush1.msra.mxu0 0.0
        %4641 = vmatprep.subr.mxu0 0.0
        %4642 = vmatpush1.msra.mxu0 0.0
        %4643 = vmatprep.subr.mxu0 0.0
        %4644 = vmatpush1.msra.mxu0 0.0
        %4645 = vmatprep.subr.mxu0 0.0
        %4646 = vmatpush1.msra.mxu0 0.0
        %4647 = vmatprep.subr.mxu0 0.0
        %4648 = vmatpush1.msra.mxu0 0.0
        %4649 = vmatprep.subr.mxu0 0.0
        %4650 = vmatpush1.msra.mxu0 0.0
        %4651 = vmatprep.subr.mxu0 0.0
        %4652 = vmatpush1.msra.mxu0 0.0
        %4653 = vmatprep.subr.mxu0 0.0
        %4654 = vmatpush1.msra.mxu0 0.0
        %4655 = vmatprep.subr.mxu0 0.0
        %4656 = vmatpush1.msra.mxu0 0.0
        %4657 = vmatprep.subr.mxu0 0.0
        %4658 = vmatpush1.msra.mxu0 0.0
        %4659 = vmatprep.subr.mxu0 0.0
        %4660 = vmatpush1.msra.mxu0 0.0
        %4661 = vmatprep.subr.mxu0 0.0
        %4662 = vmatpush1.msra.mxu0 0.0
        %4663 = vmatprep.subr.mxu0 0.0
        %4664 = vmatpush1.msra.mxu0 0.0
        %4665 = vmatprep.subr.mxu0 0.0
        %4666 = vmatpush1.msra.mxu0 0.0
        %4667 = vmatprep.subr.mxu0 0.0
        %4668 = vmatpush1.msra.mxu0 0.0
        %4669 = vmatprep.subr.mxu0 0.0
        %4670 = vmatpush1.msra.mxu0 0.0
        %4671 = vmatprep.subr.mxu0 0.0
        %4672 = vmatpush1.msra.mxu0 0.0
        %4673 = vmatprep.mubr.f32.mxu0 0.0
        %4674 = vmatmul.mubr.f32.gmra.mrb[0].mxu0 %v2369
        %v4675 = vpop.f32.mrb[0].mxu0
        %v4676 = vadd.f32 0.0, %v4675
        %v4677 = vpop.f32.mrb[0].mxu0
        %4678 = vdwg.mxu0
        %v4679 = vsub.f32 %v4595, %v4676
        %v4680 = vadd.f32 %v2438, %v4427
        %v4681 = vadd.f32 %v4680, %v4676
        %v4683 = vrot.slane %v4681, 7
        %vm4685 = vcmask 1040384
        %v4686 = vsel %vm4685, %v4683, %v4683
        %v4687 = vld [vmem:[%s12] sm:$0xff]
        %v4688 = vld [vmem:[%s12 + $0x8] sm:$0xff]
        %v4689 = vld [vmem:[%s12 + $0x10] sm:$0xff]
        %v4690 = vld [vmem:[%s12 + $0x18] sm:$0xff]
        %s4691 = scalar_lea.vmem %s12, 32
        %v4692 = vld [vmem:[%s4691] sm:$0xff]
        %v4693 = vld [vmem:[%s4691 + $0x8] sm:$0xff]
        %v4694 = vld [vmem:[%s4691 + $0x10] sm:$0xff]
        %v4695 = vld [vmem:[%s4691 + $0x18] sm:$0xff]
        %vm4697 = vcmask 1046528
        %v4698 = vrot.slane %v4686, 1
        %v4699 = vsel %vm4697, %v4698, %v4698
        %v4700 = vsel %vm510, %v4699, 0
        %4702 = vmatprep.subr.mxu0 0.0
        %4703 = vmatpush1.msra.mxu0 %v4692
        %4704 = vmatprep.subr.mxu0 0.0
        %4705 = vmatpush1.msra.mxu0 %v4693
        %4706 = vmatprep.subr.mxu0 0.0
        %4707 = vmatpush1.msra.mxu0 %v4694
        %4708 = vmatprep.subr.mxu0 0.0
        %4709 = vmatpush1.msra.mxu0 %v4695
        %4710 = vmatprep.subr.mxu0 0.0
        %4711 = vmatpush1.msra.mxu0 0.0
        %4712 = vmatprep.subr.mxu0 0.0
        %4713 = vmatpush1.msra.mxu0 0.0
        %4714 = vmatprep.subr.mxu0 0.0
        %4715 = vmatpush1.msra.mxu0 0.0
        %4716 = vmatprep.subr.mxu0 0.0
        %4717 = vmatpush1.msra.mxu0 0.0
        %4718 = vmatprep.subr.mxu0 0.0
        %4719 = vmatpush1.msra.mxu0 0.0
        %4720 = vmatprep.subr.mxu0 0.0
        %4721 = vmatpush1.msra.mxu0 0.0
        %4722 = vmatprep.subr.mxu0 0.0
        %4723 = vmatpush1.msra.mxu0 0.0
        %4724 = vmatprep.subr.mxu0 0.0
        %4725 = vmatpush1.msra.mxu0 0.0
        %4726 = vmatprep.subr.mxu0 0.0
        %4727 = vmatpush1.msra.mxu0 0.0
        %4728 = vmatprep.subr.mxu0 0.0
        %4729 = vmatpush1.msra.mxu0 0.0
        %4730 = vmatprep.subr.mxu0 0.0
        %4731 = vmatpush1.msra.mxu0 0.0
        %4732 = vmatprep.subr.mxu0 0.0
        %4733 = vmatpush1.msra.mxu0 0.0
        %4734 = vmatprep.subr.mxu0 0.0
        %4735 = vmatpush1.msra.mxu0 0.0
        %4736 = vmatprep.subr.mxu0 0.0
        %4737 = vmatpush1.msra.mxu0 0.0
        %4738 = vmatprep.subr.mxu0 0.0
        %4739 = vmatpush1.msra.mxu0 0.0
        %4740 = vmatprep.subr.mxu0 0.0
        %4741 = vmatpush1.msra.mxu0 0.0
        %4742 = vmatprep.subr.mxu0 0.0
        %4743 = vmatpush1.msra.mxu0 0.0
        %4744 = vmatprep.subr.mxu0 0.0
        %4745 = vmatpush1.msra.mxu0 0.0
        %4746 = vmatprep.subr.mxu0 0.0
        %4747 = vmatpush1.msra.mxu0 0.0
        %4748 = vmatprep.subr.mxu0 0.0
        %4749 = vmatpush1.msra.mxu0 0.0
        %4750 = vmatprep.subr.mxu0 0.0
        %4751 = vmatpush1.msra.mxu0 0.0
        %4752 = vmatprep.subr.mxu0 0.0
        %4753 = vmatpush1.msra.mxu0 0.0
        %4754 = vmatprep.subr.mxu0 0.0
        %4755 = vmatpush1.msra.mxu0 0.0
        %4756 = vmatprep.subr.mxu0 0.0
        %4757 = vmatpush1.msra.mxu0 0.0
        %4758 = vmatprep.subr.mxu0 0.0
        %4759 = vmatpush1.msra.mxu0 0.0
        %4760 = vmatprep.subr.mxu0 0.0
        %4761 = vmatpush1.msra.mxu0 0.0
        %4762 = vmatprep.subr.mxu0 0.0
        %4763 = vmatpush1.msra.mxu0 0.0
        %4764 = vmatprep.subr.mxu0 0.0
        %4765 = vmatpush1.msra.mxu0 0.0
        %4766 = vmatprep.mubr.f32.mxu0 0.0
        %4767 = vmatmul.mubr.f32.gmra.mrb[0].mxu0 %v4700
        %v4768 = vpop.f32.mrb[0].mxu0
        %v4769 = vadd.f32 0.0, %v4768
        %v4770 = vpop.f32.mrb[0].mxu0
        %4771 = vdwg.mxu0
        %v4772 = vsel %vm510, %v4686, 0
        %4774 = vmatprep.subr.mxu0 0.0
        %4775 = vmatpush1.msra.mxu0 %v4687
        %4776 = vmatprep.subr.mxu0 0.0
        %4777 = vmatpush1.msra.mxu0 %v4688
        %4778 = vmatprep.subr.mxu0 0.0
        %4779 = vmatpush1.msra.mxu0 %v4689
        %4780 = vmatprep.subr.mxu0 0.0
        %4781 = vmatpush1.msra.mxu0 %v4690
        %4782 = vmatprep.subr.mxu0 0.0
        %4783 = vmatpush1.msra.mxu0 0.0
        %4784 = vmatprep.subr.mxu0 0.0
        %4785 = vmatpush1.msra.mxu0 0.0
        %4786 = vmatprep.subr.mxu0 0.0
        %4787 = vmatpush1.msra.mxu0 0.0
        %4788 = vmatprep.subr.mxu0 0.0
        %4789 = vmatpush1.msra.mxu0 0.0
        %4790 = vmatprep.subr.mxu0 0.0
        %4791 = vmatpush1.msra.mxu0 0.0
        %4792 = vmatprep.subr.mxu0 0.0
        %4793 = vmatpush1.msra.mxu0 0.0
        %4794 = vmatprep.subr.mxu0 0.0
        %4795 = vmatpush1.msra.mxu0 0.0
        %4796 = vmatprep.subr.mxu0 0.0
        %4797 = vmatpush1.msra.mxu0 0.0
        %4798 = vmatprep.subr.mxu0 0.0
        %4799 = vmatpush1.msra.mxu0 0.0
        %4800 = vmatprep.subr.mxu0 0.0
        %4801 = vmatpush1.msra.mxu0 0.0
        %4802 = vmatprep.subr.mxu0 0.0
        %4803 = vmatpush1.msra.mxu0 0.0
        %4804 = vmatprep.subr.mxu0 0.0
        %4805 = vmatpush1.msra.mxu0 0.0
        %4806 = vmatprep.subr.mxu0 0.0
        %4807 = vmatpush1.msra.mxu0 0.0
        %4808 = vmatprep.subr.mxu0 0.0
        %4809 = vmatpush1.msra.mxu0 0.0
        %4810 = vmatprep.subr.mxu0 0.0
        %4811 = vmatpush1.msra.mxu0 0.0
        %4812 = vmatprep.subr.mxu0 0.0
        %4813 = vmatpush1.msra.mxu0 0.0
        %4814 = vmatprep.subr.mxu0 0.0
        %4815 = vmatpush1.msra.mxu0 0.0
        %4816 = vmatprep.subr.mxu0 0.0
        %4817 = vmatpush1.msra.mxu0 0.0
        %4818 = vmatprep.subr.mxu0 0.0
        %4819 = vmatpush1.msra.mxu0 0.0
        %4820 = vmatprep.subr.mxu0 0.0
        %4821 = vmatpush1.msra.mxu0 0.0
        %4822 = vmatprep.subr.mxu0 0.0
        %4823 = vmatpush1.msra.mxu0 0.0
        %4824 = vmatprep.subr.mxu0 0.0
        %4825 = vmatpush1.msra.mxu0 0.0
        %4826 = vmatprep.subr.mxu0 0.0
        %4827 = vmatpush1.msra.mxu0 0.0
        %4828 = vmatprep.subr.mxu0 0.0
        %4829 = vmatpush1.msra.mxu0 0.0
        %4830 = vmatprep.subr.mxu0 0.0
        %4831 = vmatpush1.msra.mxu0 0.0
        %4832 = vmatprep.subr.mxu0 0.0
        %4833 = vmatpush1.msra.mxu0 0.0
        %4834 = vmatprep.subr.mxu0 0.0
        %4835 = vmatpush1.msra.mxu0 0.0
        %4836 = vmatprep.subr.mxu0 0.0
        %4837 = vmatpush1.msra.mxu0 0.0
        %4838 = vmatprep.mubr.f32.mxu0 0.0
        %4839 = vmatmul.mubr.f32.gmra.mrb[0].mxu0 %v4772
        %v4840 = vpop.f32.mrb[0].mxu0
        %v4841 = vadd.f32 %v4769, %v4840
        %v4842 = vpop.f32.mrb[0].mxu0
        %4843 = vdwg.mxu0
        %s4844 = scalar_lea.vmem %s12, 64
        %v4845 = vld [vmem:[%s4844] sm:$0xff]
        %v4846 = vld [vmem:[%s4844 + $0x8] sm:$0xff]
        %v4847 = vld [vmem:[%s4844 + $0x10] sm:$0xff]
        %v4848 = vld [vmem:[%s4844 + $0x18] sm:$0xff]
        %vm4849 = vcmask 1045504
        %v4850 = vrot.slane %v4686, 2
        %v4851 = vsel %vm4849, %v4850, %v4850
        %v4852 = vsel %vm510, %v4851, 0
        %4854 = vmatprep.subr.mxu0 0.0
        %4855 = vmatpush1.msra.mxu0 %v4845
        %4856 = vmatprep.subr.mxu0 0.0
        %4857 = vmatpush1.msra.mxu0 %v4846
        %4858 = vmatprep.subr.mxu0 0.0
        %4859 = vmatpush1.msra.mxu0 %v4847
        %4860 = vmatprep.subr.mxu0 0.0
        %4861 = vmatpush1.msra.mxu0 %v4848
        %4862 = vmatprep.subr.mxu0 0.0
        %4863 = vmatpush1.msra.mxu0 0.0
        %4864 = vmatprep.subr.mxu0 0.0
        %4865 = vmatpush1.msra.mxu0 0.0
        %4866 = vmatprep.subr.mxu0 0.0
        %4867 = vmatpush1.msra.mxu0 0.0
        %4868 = vmatprep.subr.mxu0 0.0
        %4869 = vmatpush1.msra.mxu0 0.0
        %4870 = vmatprep.subr.mxu0 0.0
        %4871 = vmatpush1.msra.mxu0 0.0
        %4872 = vmatprep.subr.mxu0 0.0
        %4873 = vmatpush1.msra.mxu0 0.0
        %4874 = vmatprep.subr.mxu0 0.0
        %4875 = vmatpush1.msra.mxu0 0.0
        %4876 = vmatprep.subr.mxu0 0.0
        %4877 = vmatpush1.msra.mxu0 0.0
        %4878 = vmatprep.subr.mxu0 0.0
        %4879 = vmatpush1.msra.mxu0 0.0
        %4880 = vmatprep.subr.mxu0 0.0
        %4881 = vmatpush1.msra.mxu0 0.0
        %4882 = vmatprep.subr.mxu0 0.0
        %4883 = vmatpush1.msra.mxu0 0.0
        %4884 = vmatprep.subr.mxu0 0.0
        %4885 = vmatpush1.msra.mxu0 0.0
        %4886 = vmatprep.subr.mxu0 0.0
        %4887 = vmatpush1.msra.mxu0 0.0
        %4888 = vmatprep.subr.mxu0 0.0
        %4889 = vmatpush1.msra.mxu0 0.0
        %4890 = vmatprep.subr.mxu0 0.0
        %4891 = vmatpush1.msra.mxu0 0.0
        %4892 = vmatprep.subr.mxu0 0.0
        %4893 = vmatpush1.msra.mxu0 0.0
        %4894 = vmatprep.subr.mxu0 0.0
        %4895 = vmatpush1.msra.mxu0 0.0
        %4896 = vmatprep.subr.mxu0 0.0
        %4897 = vmatpush1.msra.mxu0 0.0
        %4898 = vmatprep.subr.mxu0 0.0
        %4899 = vmatpush1.msra.mxu0 0.0
        %4900 = vmatprep.subr.mxu0 0.0
        %4901 = vmatpush1.msra.mxu0 0.0
        %4902 = vmatprep.subr.mxu0 0.0
        %4903 = vmatpush1.msra.mxu0 0.0
        %4904 = vmatprep.subr.mxu0 0.0
        %4905 = vmatpush1.msra.mxu0 0.0
        %4906 = vmatprep.subr.mxu0 0.0
        %4907 = vmatpush1.msra.mxu0 0.0
        %4908 = vmatprep.subr.mxu0 0.0
        %4909 = vmatpush1.msra.mxu0 0.0
        %4910 = vmatprep.subr.mxu0 0.0
        %4911 = vmatpush1.msra.mxu0 0.0
        %4912 = vmatprep.subr.mxu0 0.0
        %4913 = vmatpush1.msra.mxu0 0.0
        %4914 = vmatprep.subr.mxu0 0.0
        %4915 = vmatpush1.msra.mxu0 0.0
        %4916 = vmatprep.subr.mxu0 0.0
        %4917 = vmatpush1.msra.mxu0 0.0
        %4918 = vmatprep.mubr.f32.mxu0 0.0
        %4919 = vmatmul.mubr.f32.gmra.mrb[0].mxu0 %v4852
        %v4920 = vpop.f32.mrb[0].mxu0
        %v4921 = vadd.f32 0.0, %v4920
        %v4922 = vpop.f32.mrb[0].mxu0
        %4923 = vdwg.mxu0
        %v4924 = vadd.f32 %v4841, %v4921
        %4925 = vst.msk [vmem:[%s477] sm:$0xff] %vm510, %v4679
        %4926 = vst.msk [vmem:[%s484] sm:$0xff] %vm2763, %v4924
        %s4927 = sand.u32 %s323, 1
        %s4928 = scalar_lea.sflag [#allocation3], %s4927
        %s4929 = sand.u32 %s323, 1
        %s4930 = smul.addr %s4929, 8
        %s4931 = scalar_lea.vmem [#allocation2], %s4930
        %s4932 = sand.u32 %s349, 1
        %s4933 = scalar_lea.sflag [#allocation5], %s4932
        %s4934 = sand.u32 %s349, 1
        %s4935 = smul.addr %s4934, 8
        %s4936 = scalar_lea.vmem [#allocation4], %s4935
        // Predicated region
        $region73: #{tpu_custom_call.1} parent=71 // pred_check
          %p4937 = pneg %p333
        $region74: #{tpu_custom_call.1} parent=71 // pred_check_branch
          %4939 = sbr.rel (%p4937) target = $region76
        $region75: #{tpu_custom_call.1} parent=71 // pred_region
          %s4941 = ssub.s32 128, 128
          %4942 = vsyncadd %s4928, %s4941
          %s4943 = smul.addr %s32, 128
          %s4944 = scalar_lea.hbm %s13, %s4943
          %s4946 = sshll.u32 %s4931, 4
          %s4947 = int_to_ptr.vmem [resolvable:$true] %s4946
          %4949 = dma.vmem_to_hbm [thread:$0]  %s4947, 128, %s4944, %s4928
        $region76: #{tpu_custom_call.1} parent=71 // pred_fallthru
          _
        // Predicated region
        $region77: #{tpu_custom_call.1} parent=71 // pred_check
          %p4950 = pneg %p359
        $region78: #{tpu_custom_call.1} parent=71 // pred_check_branch
          %4952 = sbr.rel (%p4950) target = $region80
        $region79: #{tpu_custom_call.1} parent=71 // pred_region
          %s4954 = ssub.s32 128, 128
          %4955 = vsyncadd %s4933, %s4954
          %s4956 = smul.addr %s32, 128
          %s4957 = scalar_lea.hbm %s14, %s4956
          %s4959 = sshll.u32 %s4936, 4
          %s4960 = int_to_ptr.vmem [resolvable:$true] %s4959
          %4962 = dma.vmem_to_hbm [thread:$0]  %s4960, 128, %s4957, %s4933
        $region80: #{tpu_custom_call.1} parent=71 // pred_fallthru
          _
      $region72: #{tpu_custom_call.1} parent=5 // pred_fallthru
        _
      %p4963 = scmp.le.s32.totalorder 2, %s27
      // Predicated region
      $region81: #{tpu_custom_call.1} parent=5 // pred_check
        %p4964 = pneg %p4963
      $region82: #{tpu_custom_call.1} parent=5 // pred_check_branch
        %4966 = sbr.rel (%p4964) target = $region84
      $region83: #{tpu_custom_call.1} parent=5 // pred_region
        %s4967 = ssub.s32 %s27, 2
        // Predicated region
        $region85: #{tpu_custom_call.1} parent=83 // pred_check
          %p4968 = pneg %p339
        $region86: #{tpu_custom_call.1} parent=83 // pred_check_branch
          %4970 = sbr.rel (%p4968) target = $region88
        $region87: #{tpu_custom_call.1} parent=83 // pred_region
          %s4971 = sand.u32 %s324, 1
          %s4972 = scalar_lea.sflag [#allocation3], %s4971
          %s4973 = sand.u32 %s324, 1
          %s4974 = smul.addr %s4973, 8
          %s4975 = scalar_lea.vmem [#allocation2], %s4974
          %4976 = dma.done %s4972, 128
        $region88: #{tpu_custom_call.1} parent=83 // pred_fallthru
          _
        // Predicated region
        $region89: #{tpu_custom_call.1} parent=83 // pred_check
          %p4977 = pneg %p365
        $region90: #{tpu_custom_call.1} parent=83 // pred_check_branch
          %4979 = sbr.rel (%p4977) target = $region92
        $region91: #{tpu_custom_call.1} parent=83 // pred_region
          %s4980 = sand.u32 %s350, 1
          %s4981 = scalar_lea.sflag [#allocation5], %s4980
          %s4982 = sand.u32 %s350, 1
          %s4983 = smul.addr %s4982, 8
          %s4984 = scalar_lea.vmem [#allocation4], %s4983
          %4985 = dma.done %s4981, 128
        $region92: #{tpu_custom_call.1} parent=83 // pred_fallthru
          _
      $region84: #{tpu_custom_call.1} parent=5 // pred_fallthru
        _
    $region6: #{tpu_custom_call.1} parent=1 // loop_footer
      %s31 = sadd.s32 1, %s27
    $region7: #{tpu_custom_call.1} parent=1 // loop_footer_branch
      %26 = sbr.rel target = $region3
    $region8: #{tpu_custom_call.1} parent=1 // loop_exit
      _
    %4986 = vsyncpa [#allocation3], 1
    %s4987 = scalar_lea.sflag [#allocation3], 1
    %4988 = vsyncpa %s4987, 1
    %4989 = vsyncpa [#allocation5], 1
    %s4990 = scalar_lea.sflag [#allocation5], 1
    %4991 = vsyncpa %s4990, 1

</llo_original>
